<compile_context>
chip_gen: v6e
topology: v6e:2x2x1
jax: 0.10.0
libtpu: 0.0.40
codegen_flags: <defaults>
</compile_context>

<pallas_src>
import jax
import jax.numpy as jnp
import numpy as np
from jax import lax
from jax.experimental import pallas as pl
from jax.experimental.pallas import tpu as pltpu


def _disblock_kernel(xp_ref, w1_ref, b1_ref, w2sc_ref, b2sc_ref, out_ref):
    # xp_ref   : (B, H+2, W+2, Cin)   wrapper-padded input, compute dtype
    # w1_ref   : (9*Cin, Cout)        im2col conv1 weights
    # b1_ref   : (1, Cout)            f32
    # w2sc_ref : (9*Cout + Cin, Cout) conv2 weights stacked with 1x1 shortcut
    #                                 weights, pre-scaled by the 0.25 pool factor
    # b2sc_ref : (1, Cout)            f32, b2 + bsc (added after pooling)
    # out_ref  : (B, Hh, Wh, Cout)    f32
    B = xp_ref.shape[0]
    H = xp_ref.shape[1] - 2
    W = xp_ref.shape[2] - 2
    Cin = xp_ref.shape[3]
    Hh, Wh, Cout = out_ref.shape[1], out_ref.shape[2], out_ref.shape[3]
    M = B * H * W
    cdt = w1_ref.dtype  # MXU operand dtype (f32 or bf16); accumulation is f32

    # ---- conv1: single im2col matmul (9 shifted windows concatenated along K) ----
    taps1 = [xp_ref[:, kh:kh + H, kw:kw + W, :].reshape(M, Cin)
             for kh in range(3) for kw in range(3)]
    p1 = jnp.concatenate(taps1, axis=1)                              # (M, 9*Cin)
    h = jnp.dot(p1, w1_ref[...], preferred_element_type=jnp.float32)
    h = jnp.maximum(h + b1_ref[...], 0.0)                            # (M, Cout) f32

    # ---- pad hidden activation by 1 px with value-level concats (no scratch) ----
    h4 = h.astype(cdt).reshape(B, H, W, Cout)
    zr = jnp.zeros((B, 1, W, Cout), cdt)
    zc = jnp.zeros((B, H + 2, 1, Cout), cdt)
    hp = jnp.concatenate([zr, h4, zr], axis=1)                       # (B, H+2, W, Cout)
    hp = jnp.concatenate([zc, hp, zc], axis=2)                       # (B, H+2, W+2, Cout)

    # ---- conv2 + 1x1 shortcut fused into ONE matmul ----
    # (1x1 conv commutes with avg-pool: the shortcut is applied at full resolution
    #  here and pooled together with the conv2 output below. Weights carry the
    #  0.25 pooling scale, so pooling below is a pure sum of 4.)
    taps2 = [hp[:, kh:kh + H, kw:kw + W, :].reshape(M, Cout)
             for kh in range(3) for kw in range(3)]
    x_center = taps1[4]                                              # (M, Cin), kh=kw=1
    p2 = jnp.concatenate(taps2 + [x_center], axis=1)                 # (M, 9*Cout+Cin)
    y = jnp.dot(p2, w2sc_ref[...], preferred_element_type=jnp.float32)  # (M, Cout) f32

    # ---- 2x2 average pooling: reshape + 4 adds; merged bias added post-pool ----
    y5 = y.reshape(B * Hh, 2, Wh, 2, Cout)
    pooled = (y5[:, 0, :, 0, :] + y5[:, 0, :, 1, :]
              + y5[:, 1, :, 0, :] + y5[:, 1, :, 1, :]) + b2sc_ref[...]

    out_ref[...] = pooled.reshape(B, Hh, Wh, Cout).astype(out_ref.dtype)


def optimized_dis_block(x_nchw, params, *, compute_dtype=jnp.float32,
                        images_per_step=1):
    """x_nchw: (N, Cin, H, W) float32. params weights in PyTorch OIHW layout."""
    w1, b1, w2, b2, wsc, bsc = params
    N, Cin, H, W = x_nchw.shape
    Cout = w1.shape[0]
    assert H % 2 == 0 and W % 2 == 0, "AvgPool2d(2) path assumes even H, W"
    assert N % images_per_step == 0
    B = images_per_step
    Hh, Wh = H // 2, W // 2

    # NHWC + 1px zero padding done once in the wrapper (removes in-kernel zeroing
    # and misaligned stores); cast to the MXU operand dtype.
    x_nhwc = jnp.transpose(x_nchw, (0, 2, 3, 1))
    x_pad = jnp.pad(x_nhwc, ((0, 0), (1, 1), (1, 1), (0, 0))).astype(compute_dtype)

    # Weights: OIHW -> im2col layout with K ordered (kh, kw, cin); conv2 and the
    # 1x1 shortcut share one stacked weight matrix that also absorbs the 0.25
    # average-pool factor (exact power of two); biases b2 and bsc are merged and
    # added after pooling (constant bias commutes with averaging).
    w1_flat = jnp.transpose(w1, (2, 3, 1, 0)).reshape(9 * Cin, Cout).astype(compute_dtype)
    w2_flat = jnp.transpose(w2, (2, 3, 1, 0)).reshape(9 * Cout, Cout)
    wsc_flat = jnp.transpose(wsc[:, :, 0, 0], (1, 0))                 # (Cin, Cout)
    w2sc = (0.25 * jnp.concatenate([w2_flat, wsc_flat], axis=0)).astype(compute_dtype)
    b1_2d = b1.reshape(1, Cout).astype(jnp.float32)
    b2sc_2d = (b2 + bsc).reshape(1, Cout).astype(jnp.float32)

    out_nhwc = pl.pallas_call(
        _disblock_kernel,
        out_shape=jax.ShapeDtypeStruct((N, Hh, Wh, Cout), jnp.float32),
        grid=(N // B,),
        in_specs=[
            pl.BlockSpec((B, H + 2, W + 2, Cin), lambda n: (n, 0, 0, 0)),
            pl.BlockSpec((9 * Cin, Cout), lambda n: (0, 0)),
            pl.BlockSpec((1, Cout), lambda n: (0, 0)),
            pl.BlockSpec((9 * Cout + Cin, Cout), lambda n: (0, 0)),
            pl.BlockSpec((1, Cout), lambda n: (0, 0)),
        ],
        out_specs=pl.BlockSpec((B, Hh, Wh, Cout), lambda n: (n, 0, 0, 0)),
        compiler_params=pltpu.CompilerParams(
            # Batch axis is fully independent -> shard across TensorCores on v7x.
            dimension_semantics=("parallel",),
            # Explicit, conservative VMEM budget (safe on v5e/v6e/v7x). For large
            # resolutions, additionally tile over rows with a 1-px halo.
            vmem_limit_bytes=32 * 1024 * 1024,
        ),
    )(x_pad, w1_flat, b1_2d, w2sc, b2sc_2d)

    return jnp.transpose(out_nhwc, (0, 3, 1, 2))  # back to NCHW


# ---------------- parameter setup (deterministic, in-script) ----------------

def _spectral_normalize(w):
    # nn.utils.spectral_norm divides the weight by the largest singular value of
    # the (out, in*kh*kw) reshaped matrix. Computed exactly here (PyTorch uses
    # power iteration, converging to the same value).
    w2d = w.reshape(w.shape[0], -1)
    sigma = jnp.linalg.svd(w2d, compute_uv=False)[0]
    return w / sigma


def make_params(in_channels, out_channels, key):
    ks = jax.random.split(key, 6)
    w1 = jax.random.normal(ks[0], (out_channels, in_channels, 3, 3), jnp.float32) * 0.2
    b1 = jax.random.normal(ks[1], (out_channels,), jnp.float32) * 0.1
    w2 = jax.random.normal(ks[2], (out_channels, out_channels, 3, 3), jnp.float32) * 0.2
    b2 = jax.random.normal(ks[3], (out_channels,), jnp.float32) * 0.1
    wsc = jax.random.normal(ks[4], (out_channels, in_channels, 1, 1), jnp.float32) * 0.2
    bsc = jax.random.normal(ks[5], (out_channels,), jnp.float32) * 0.1
    return (_spectral_normalize(w1), b1,
            _spectral_normalize(w2), b2,
            _spectral_normalize(wsc), bsc)


# ---------------- pure-JAX reference (matches PyTorch semantics) ----------------

def ref_forward(x_nchw, params):
    w1, b1, w2, b2, wsc, bsc = params

    def conv(x, w, b, pad):
        y = lax.conv_general_dilated(
            x, w, window_strides=(1, 1), padding=[(pad, pad), (pad, pad)],
            dimension_numbers=('NCHW', 'OIHW', 'NCHW'))
        return y + b[None, :, None, None]

    def pool(x):
        return lax.reduce_window(x, 0.0, lax.add, (1, 1, 2, 2), (1, 1, 2, 2),
                                 'VALID') * 0.25

    h = conv(x_nchw, w1, b1, 1)
    h = jnp.maximum(h, 0.0)
    h = conv(h, w2, b2, 1)
    h = pool(h)
    s = conv(pool(x_nchw), wsc, bsc, 0)
    return h + s


if __name__ == "__main__":
    N, Cin, Cout, H, W = 2, 4, 8, 16, 16
    key = jax.random.PRNGKey(0)
    kx, kp = jax.random.split(key)
    x = jax.random.normal(kx, (N, Cin, H, W), jnp.float32)
    params = make_params(Cin, Cout, kp)

    ref = jax.block_until_ready(ref_forward(x, params))

    # f32 MXU operands, one image per grid step (batch axis "parallel").
    out_f32 = jax.block_until_ready(optimized_dis_block(x, params))
    assert out_f32.shape == (N, Cout, H // 2, W // 2), out_f32.shape
    np.testing.assert_allclose(np.asarray(out_f32), np.asarray(ref),
                               rtol=1e-4, atol=1e-4)

    # bf16 MXU operands (f32 accumulation), whole batch folded into one grid step.
    out_bf16 = jax.block_until_ready(
        optimized_dis_block(x, params, compute_dtype=jnp.bfloat16,
                            images_per_step=N))
    np.testing.assert_allclose(np.asarray(out_bf16), np.asarray(ref),
                               rtol=2e-2, atol=5e-2)

    print("KERNEL_OK")
</pallas_src>

<mosaic_0001>
module attributes {stable_mosaic.version = 11 : i64} {
  func.func @_disblock_kernel(%arg0: i32, %arg1: memref<1x18x18x4xf32, #tpu.memory_space<vmem>>, %arg2: memref<36x8xf32, #tpu.memory_space<vmem>>, %arg3: memref<1x8xf32, #tpu.memory_space<vmem>>, %arg4: memref<76x8xf32, #tpu.memory_space<vmem>>, %arg5: memref<1x8xf32, #tpu.memory_space<vmem>>, %arg6: memref<1x8x8x8xf32, #tpu.memory_space<vmem>>) attributes {dimension_semantics = [#tpu.dimension_semantics<parallel>], iteration_bounds = array<i64: 2>, scalar_prefetch = 0 : i64, scratch_operands = 0 : i64, tpu.core_type = #tpu.core_type<tc>, window_params = [{transform_indices = @transform_0, window_bounds = array<i64: 1, 18, 18, 4>}, {pipeline_mode = #tpu.pipeline_mode<synchronous>, transform_indices = @transform_1, window_bounds = array<i64: 36, 8>}, {pipeline_mode = #tpu.pipeline_mode<synchronous>, transform_indices = @transform_2, window_bounds = array<i64: 1, 8>}, {pipeline_mode = #tpu.pipeline_mode<synchronous>, transform_indices = @transform_3, window_bounds = array<i64: 76, 8>}, {pipeline_mode = #tpu.pipeline_mode<synchronous>, transform_indices = @transform_4, window_bounds = array<i64: 1, 8>}, {transform_indices = @transform_5, window_bounds = array<i64: 1, 8, 8, 8>}]} {
    %c0 = arith.constant 0 : index
    %c0_0 = arith.constant 0 : index
    %c0_1 = arith.constant 0 : index
    %c0_2 = arith.constant 0 : index
    %0 = vector.load %arg1[%c0, %c0_0, %c0_1, %c0_2] : memref<1x18x18x4xf32, #tpu.memory_space<vmem>>, vector<1x16x16x4xf32>
    %1 = vector.shape_cast %0 : vector<1x16x16x4xf32> to vector<256x4xf32>
    %c0_3 = arith.constant 0 : index
    %c0_4 = arith.constant 0 : index
    %c1 = arith.constant 1 : index
    %c0_5 = arith.constant 0 : index
    %2 = vector.load %arg1[%c0_3, %c0_4, %c1, %c0_5] : memref<1x18x18x4xf32, #tpu.memory_space<vmem>>, vector<1x16x16x4xf32>
    %3 = vector.shape_cast %2 : vector<1x16x16x4xf32> to vector<256x4xf32>
    %c0_6 = arith.constant 0 : index
    %c0_7 = arith.constant 0 : index
    %c2 = arith.constant 2 : index
    %c0_8 = arith.constant 0 : index
    %4 = vector.load %arg1[%c0_6, %c0_7, %c2, %c0_8] : memref<1x18x18x4xf32, #tpu.memory_space<vmem>>, vector<1x16x16x4xf32>
    %5 = vector.shape_cast %4 : vector<1x16x16x4xf32> to vector<256x4xf32>
    %c0_9 = arith.constant 0 : index
    %c1_10 = arith.constant 1 : index
    %c0_11 = arith.constant 0 : index
    %c0_12 = arith.constant 0 : index
    %6 = vector.load %arg1[%c0_9, %c1_10, %c0_11, %c0_12] : memref<1x18x18x4xf32, #tpu.memory_space<vmem>>, vector<1x16x16x4xf32>
    %7 = vector.shape_cast %6 : vector<1x16x16x4xf32> to vector<256x4xf32>
    %c0_13 = arith.constant 0 : index
    %c1_14 = arith.constant 1 : index
    %c1_15 = arith.constant 1 : index
    %c0_16 = arith.constant 0 : index
    %8 = vector.load %arg1[%c0_13, %c1_14, %c1_15, %c0_16] : memref<1x18x18x4xf32, #tpu.memory_space<vmem>>, vector<1x16x16x4xf32>
    %9 = vector.shape_cast %8 : vector<1x16x16x4xf32> to vector<256x4xf32>
    %c0_17 = arith.constant 0 : index
    %c1_18 = arith.constant 1 : index
    %c2_19 = arith.constant 2 : index
    %c0_20 = arith.constant 0 : index
    %10 = vector.load %arg1[%c0_17, %c1_18, %c2_19, %c0_20] : memref<1x18x18x4xf32, #tpu.memory_space<vmem>>, vector<1x16x16x4xf32>
    %11 = vector.shape_cast %10 : vector<1x16x16x4xf32> to vector<256x4xf32>
    %c0_21 = arith.constant 0 : index
    %c2_22 = arith.constant 2 : index
    %c0_23 = arith.constant 0 : index
    %c0_24 = arith.constant 0 : index
    %12 = vector.load %arg1[%c0_21, %c2_22, %c0_23, %c0_24] : memref<1x18x18x4xf32, #tpu.memory_space<vmem>>, vector<1x16x16x4xf32>
    %13 = vector.shape_cast %12 : vector<1x16x16x4xf32> to vector<256x4xf32>
    %c0_25 = arith.constant 0 : index
    %c2_26 = arith.constant 2 : index
    %c1_27 = arith.constant 1 : index
    %c0_28 = arith.constant 0 : index
    %14 = vector.load %arg1[%c0_25, %c2_26, %c1_27, %c0_28] : memref<1x18x18x4xf32, #tpu.memory_space<vmem>>, vector<1x16x16x4xf32>
    %15 = vector.shape_cast %14 : vector<1x16x16x4xf32> to vector<256x4xf32>
    %c0_29 = arith.constant 0 : index
    %c2_30 = arith.constant 2 : index
    %c2_31 = arith.constant 2 : index
    %c0_32 = arith.constant 0 : index
    %16 = vector.load %arg1[%c0_29, %c2_30, %c2_31, %c0_32] : memref<1x18x18x4xf32, #tpu.memory_space<vmem>>, vector<1x16x16x4xf32>
    %17 = vector.shape_cast %16 : vector<1x16x16x4xf32> to vector<256x4xf32>
    %18 = tpu.concatenate %1, %3, %5, %7, %9, %11, %13, %15, %17 in 1 : vector<256x4xf32>, vector<256x4xf32>, vector<256x4xf32>, vector<256x4xf32>, vector<256x4xf32>, vector<256x4xf32>, vector<256x4xf32>, vector<256x4xf32>, vector<256x4xf32> -> vector<256x36xf32>
    %c0_33 = arith.constant 0 : index
    %c0_34 = arith.constant 0 : index
    %19 = vector.load %arg2[%c0_33, %c0_34] : memref<36x8xf32, #tpu.memory_space<vmem>>, vector<36x8xf32>
    %cst = arith.constant dense<0.000000e+00> : vector<256x8xf32>
    %20 = tpu.matmul %18, %19, %cst {dimension_numbers = #tpu.dot_dimension_numbers<[1], [0], [0], [1], [0, 0, 1, 1], [], []>} : vector<256x36xf32>, vector<36x8xf32>, vector<256x8xf32> -> vector<256x8xf32>
    %c0_35 = arith.constant 0 : index
    %c0_36 = arith.constant 0 : index
    %21 = vector.load %arg3[%c0_35, %c0_36] : memref<1x8xf32, #tpu.memory_space<vmem>>, vector<1x8xf32>
    %22 = vector.broadcast %21 : vector<1x8xf32> to vector<256x8xf32>
    %23 = arith.addf %20, %22 : vector<256x8xf32>
    %cst_37 = arith.constant 0.000000e+00 : f32
    %24 = vector.broadcast %cst_37 : f32 to vector<256x8xf32>
    %25 = arith.maximumf %23, %24 : vector<256x8xf32>
    %26 = vector.shape_cast %25 : vector<256x8xf32> to vector<1x16x16x8xf32>
    %cst_38 = arith.constant 0.000000e+00 : f32
    %27 = vector.broadcast %cst_38 : f32 to vector<1x1x16x8xf32>
    %cst_39 = arith.constant 0.000000e+00 : f32
    %28 = vector.broadcast %cst_39 : f32 to vector<1x18x1x8xf32>
    %29 = tpu.concatenate %27, %26, %27 in 1 : vector<1x1x16x8xf32>, vector<1x16x16x8xf32>, vector<1x1x16x8xf32> -> vector<1x18x16x8xf32>
    %30 = tpu.concatenate %28, %29, %28 in 2 : vector<1x18x1x8xf32>, vector<1x18x16x8xf32>, vector<1x18x1x8xf32> -> vector<1x18x18x8xf32>
    %31 = vector.extract_strided_slice %30 {offsets = [0, 0, 0, 0], sizes = [1, 16, 16, 8], strides = [1, 1, 1, 1]} : vector<1x18x18x8xf32> to vector<1x16x16x8xf32>
    %32 = vector.shape_cast %31 : vector<1x16x16x8xf32> to vector<256x8xf32>
    %33 = vector.extract_strided_slice %30 {offsets = [0, 0, 1, 0], sizes = [1, 16, 16, 8], strides = [1, 1, 1, 1]} : vector<1x18x18x8xf32> to vector<1x16x16x8xf32>
    %34 = vector.shape_cast %33 : vector<1x16x16x8xf32> to vector<256x8xf32>
    %35 = vector.extract_strided_slice %30 {offsets = [0, 0, 2, 0], sizes = [1, 16, 16, 8], strides = [1, 1, 1, 1]} : vector<1x18x18x8xf32> to vector<1x16x16x8xf32>
    %36 = vector.shape_cast %35 : vector<1x16x16x8xf32> to vector<256x8xf32>
    %37 = vector.extract_strided_slice %30 {offsets = [0, 1, 0, 0], sizes = [1, 16, 16, 8], strides = [1, 1, 1, 1]} : vector<1x18x18x8xf32> to vector<1x16x16x8xf32>
    %38 = vector.shape_cast %37 : vector<1x16x16x8xf32> to vector<256x8xf32>
    %39 = vector.extract_strided_slice %30 {offsets = [0, 1, 1, 0], sizes = [1, 16, 16, 8], strides = [1, 1, 1, 1]} : vector<1x18x18x8xf32> to vector<1x16x16x8xf32>
    %40 = vector.shape_cast %39 : vector<1x16x16x8xf32> to vector<256x8xf32>
    %41 = vector.extract_strided_slice %30 {offsets = [0, 1, 2, 0], sizes = [1, 16, 16, 8], strides = [1, 1, 1, 1]} : vector<1x18x18x8xf32> to vector<1x16x16x8xf32>
    %42 = vector.shape_cast %41 : vector<1x16x16x8xf32> to vector<256x8xf32>
    %43 = vector.extract_strided_slice %30 {offsets = [0, 2, 0, 0], sizes = [1, 16, 16, 8], strides = [1, 1, 1, 1]} : vector<1x18x18x8xf32> to vector<1x16x16x8xf32>
    %44 = vector.shape_cast %43 : vector<1x16x16x8xf32> to vector<256x8xf32>
    %45 = vector.extract_strided_slice %30 {offsets = [0, 2, 1, 0], sizes = [1, 16, 16, 8], strides = [1, 1, 1, 1]} : vector<1x18x18x8xf32> to vector<1x16x16x8xf32>
    %46 = vector.shape_cast %45 : vector<1x16x16x8xf32> to vector<256x8xf32>
    %47 = vector.extract_strided_slice %30 {offsets = [0, 2, 2, 0], sizes = [1, 16, 16, 8], strides = [1, 1, 1, 1]} : vector<1x18x18x8xf32> to vector<1x16x16x8xf32>
    %48 = vector.shape_cast %47 : vector<1x16x16x8xf32> to vector<256x8xf32>
    %49 = tpu.concatenate %32, %34, %36, %38, %40, %42, %44, %46, %48, %9 in 1 : vector<256x8xf32>, vector<256x8xf32>, vector<256x8xf32>, vector<256x8xf32>, vector<256x8xf32>, vector<256x8xf32>, vector<256x8xf32>, vector<256x8xf32>, vector<256x8xf32>, vector<256x4xf32> -> vector<256x76xf32>
    %c0_40 = arith.constant 0 : index
    %c0_41 = arith.constant 0 : index
    %50 = vector.load %arg4[%c0_40, %c0_41] : memref<76x8xf32, #tpu.memory_space<vmem>>, vector<76x8xf32>
    %cst_42 = arith.constant dense<0.000000e+00> : vector<256x8xf32>
    %51 = tpu.matmul %49, %50, %cst_42 {dimension_numbers = #tpu.dot_dimension_numbers<[1], [0], [0], [1], [0, 0, 1, 1], [], []>} : vector<256x76xf32>, vector<76x8xf32>, vector<256x8xf32> -> vector<256x8xf32>
    %52 = vector.shape_cast %51 : vector<256x8xf32> to vector<8x2x8x2x8xf32>
    %53 = vector.extract_strided_slice %52 {offsets = [0, 0, 0, 0, 0], sizes = [8, 1, 8, 1, 8], strides = [1, 1, 1, 1, 1]} : vector<8x2x8x2x8xf32> to vector<8x1x8x1x8xf32>
    %54 = vector.shape_cast %53 : vector<8x1x8x1x8xf32> to vector<8x8x8xf32>
    %55 = vector.extract_strided_slice %52 {offsets = [0, 0, 0, 1, 0], sizes = [8, 1, 8, 1, 8], strides = [1, 1, 1, 1, 1]} : vector<8x2x8x2x8xf32> to vector<8x1x8x1x8xf32>
    %56 = vector.shape_cast %55 : vector<8x1x8x1x8xf32> to vector<8x8x8xf32>
    %57 = arith.addf %54, %56 : vector<8x8x8xf32>
    %58 = vector.extract_strided_slice %52 {offsets = [0, 1, 0, 0, 0], sizes = [8, 1, 8, 1, 8], strides = [1, 1, 1, 1, 1]} : vector<8x2x8x2x8xf32> to vector<8x1x8x1x8xf32>
    %59 = vector.shape_cast %58 : vector<8x1x8x1x8xf32> to vector<8x8x8xf32>
    %60 = arith.addf %57, %59 : vector<8x8x8xf32>
    %61 = vector.extract_strided_slice %52 {offsets = [0, 1, 0, 1, 0], sizes = [8, 1, 8, 1, 8], strides = [1, 1, 1, 1, 1]} : vector<8x2x8x2x8xf32> to vector<8x1x8x1x8xf32>
    %62 = vector.shape_cast %61 : vector<8x1x8x1x8xf32> to vector<8x8x8xf32>
    %63 = arith.addf %60, %62 : vector<8x8x8xf32>
    %c0_43 = arith.constant 0 : index
    %c0_44 = arith.constant 0 : index
    %64 = vector.load %arg5[%c0_43, %c0_44] : memref<1x8xf32, #tpu.memory_space<vmem>>, vector<1x8xf32>
    %65 = vector.shape_cast %64 : vector<1x8xf32> to vector<1x1x8xf32>
    %66 = vector.broadcast %65 : vector<1x1x8xf32> to vector<8x8x8xf32>
    %67 = arith.addf %63, %66 : vector<8x8x8xf32>
    %68 = vector.shape_cast %67 : vector<8x8x8xf32> to vector<1x8x8x8xf32>
    %c0_45 = arith.constant 0 : index
    %c0_46 = arith.constant 0 : index
    %c0_47 = arith.constant 0 : index
    %c0_48 = arith.constant 0 : index
    %69 = vector.load %arg6[%c0_45, %c0_46, %c0_47, %c0_48] : memref<1x8x8x8xf32, #tpu.memory_space<vmem>>, vector<1x8x8x8xf32>
    tpu.vector_store %arg6[%c0_45, %c0_46, %c0_47, %c0_48], %68 {strides = array<i32>} : memref<1x8x8x8xf32, #tpu.memory_space<vmem>>, vector<1x8x8x8xf32>,
    return
  }
  func.func @transform_0(%arg0: i32) -> (i32, i32, i32, i32) {
    %c0_i32 = arith.constant 0 : i32
    %c0_i32_0 = arith.constant 0 : i32
    %c0_i32_1 = arith.constant 0 : i32
    %c0_i32_2 = arith.constant 0 : i32
    return %arg0, %c0_i32, %c0_i32_0, %c0_i32_1 : i32, i32, i32, i32
  }
  func.func @transform_1(%arg0: i32) -> (i32, i32) {
    %c0_i32 = arith.constant 0 : i32
    %c0_i32_0 = arith.constant 0 : i32
    %c0_i32_1 = arith.constant 0 : i32
    return %c0_i32, %c0_i32_0 : i32, i32
  }
  func.func @transform_2(%arg0: i32) -> (i32, i32) {
    %c0_i32 = arith.constant 0 : i32
    %c0_i32_0 = arith.constant 0 : i32
    %c0_i32_1 = arith.constant 0 : i32
    return %c0_i32, %c0_i32_0 : i32, i32
  }
  func.func @transform_3(%arg0: i32) -> (i32, i32) {
    %c0_i32 = arith.constant 0 : i32
    %c0_i32_0 = arith.constant 0 : i32
    %c0_i32_1 = arith.constant 0 : i32
    return %c0_i32, %c0_i32_0 : i32, i32
  }
  func.func @transform_4(%arg0: i32) -> (i32, i32) {
    %c0_i32 = arith.constant 0 : i32
    %c0_i32_0 = arith.constant 0 : i32
    %c0_i32_1 = arith.constant 0 : i32
    return %c0_i32, %c0_i32_0 : i32, i32
  }
  func.func @transform_5(%arg0: i32) -> (i32, i32, i32, i32) {
    %c0_i32 = arith.constant 0 : i32
    %c0_i32_0 = arith.constant 0 : i32
    %c0_i32_1 = arith.constant 0 : i32
    %c0_i32_2 = arith.constant 0 : i32
    return %arg0, %c0_i32, %c0_i32_0, %c0_i32_1 : i32, i32, i32, i32
  }
}

</mosaic_0001>

<llo_original>
// kernel: tpu_custom_call.1
$region0: #{tpu_custom_call.1}
  #allocation0 [shape = 'u32[]', space=smem, size = 0x4, offset = 0x4, fixed_abs, tag = 'smem constant byte address 0x4 - core index']
  #allocation1 [shape = 'u32[144,128]{1,0:T(1,128)}', space=vmem, size = 0x12000, scoped, tag = 'internal scratch']
  %s0 = inlined_call_operand.vmem [shape: f32[2,18,18,4], index: 0, kind: input, shape index: {}]
  %s1 = inlined_call_operand.vmem [shape: f32[36,8], index: 1, kind: input, shape index: {}]
  %s2 = inlined_call_operand.vmem [shape: f32[1,8], index: 2, kind: input, shape index: {}]
  %s3 = inlined_call_operand.vmem [shape: f32[76,8], index: 3, kind: input, shape index: {}]
  %s4 = inlined_call_operand.vmem [shape: f32[1,8], index: 4, kind: input, shape index: {}]
  %s5 = inlined_call_operand.hbm [shape: f32[2,8,8,8], index: 5, kind: output, shape index: {}]
  %s6 = sld [smem:[#allocation0]]
  $region53: #{tpu_custom_call.1} parent=0
    _
  %s8 = ssub.s32 1, %s6
  %s9 = scalar_select 0, %s8, %s6
  $region1: #{tpu_custom_call.1} parent=0
    #allocation2 [shape = 'u8[65536]{0}', space=vmem, size = 0x10000, scoped, tag = 'output window, operand 0']
    #allocation3 [shape = 's32[2]{0}', space=sflag, size = 0x8, scoped, tag = 'scoped memory for tpu_custom_call.1']
    %10 = vsyncpa [#allocation3], 0
    %s11 = scalar_lea.sflag [#allocation3], 1
    %12 = vsyncpa %s11, 0
    loop: start=0, step=1, limit=4
    $region2: #{tpu_custom_call.1} parent=1 // loop_pre_header
      _
    $region3: #{tpu_custom_call.1} parent=1 // loop_header
      %s14 = sphi 0, %s18
      %p15 = scmp.ge.s32.totalorder %s14, 4
      %s24 = sphi 0, %s26
      %s27 = sphi 0, %s24
      %s28 = sphi 0, %s27
      %s44 = sphi 0, %s28
      %s48 = sphi 0, %s48
      %s50 = sphi 0, %s48
      %s51 = sphi 0, %s50
      %s65 = sphi 0, %s51
      %s69 = sphi 0, %s69
      %s71 = sphi 0, %s69
      %s72 = sphi 0, %s71
      %s86 = sphi 0, %s72
      %s90 = sphi 0, %s90
      %s92 = sphi 0, %s90
      %s93 = sphi 0, %s92
      %s107 = sphi 0, %s93
      %s111 = sphi 0, %s111
      %s113 = sphi 0, %s111
      %s114 = sphi 0, %s113
      %s128 = sphi 0, %s114
      %s134 = sphi 0, %s136
      %s137 = sphi 0, %s134
      %s138 = sphi 0, %s137
      %s154 = sphi 0, %s138
    $region4: #{tpu_custom_call.1} parent=1 // loop_header_branch
      %17 = sbr.rel (%p15) target = $region8
    $region5: #{tpu_custom_call.1} parent=1 // loop_body
      %s19 = ssub.s32 %s14, 1
      %s20 = ssub.s32 %s14, 2
      %s21 = sadd.s32 %s14, 1
      %s22 = ssub.s32 %s14, %s21
      %p23 = scmp.eq.s32.totalorder %s22, 0
      %s25 = sadd.s32 %s24, 1
      %s26 = scalar_select %p23, %s24, %s25
      %p29 = pneg %p23
      %p30 = scmp.eq.s32.totalorder %s14, 1
      %p31 = por %p29, %p30
      %p32 = scmp.ne.s32.totalorder %s24, %s27
      %p33 = scmp.eq.s32.totalorder %s14, 0
      %p34 = por %p32, %p33
      %p35 = scmp.ne.s32.totalorder %s24, %s27
      %p36 = scmp.eq.s32.totalorder %s19, 1
      %p37 = por %p35, %p36
      %p38 = scmp.ne.s32.totalorder %s27, %s28
      %p39 = scmp.eq.s32.totalorder %s19, 0
      %p40 = por %p38, %p39
      %p41 = scmp.ne.s32.totalorder %s27, %s28
      %p42 = scmp.eq.s32.totalorder %s20, 1
      %p43 = por %p41, %p42
      %p45 = scmp.ne.s32.totalorder %s28, %s44
      %p46 = scmp.eq.s32.totalorder %s20, 0
      %p47 = por %p45, %p46
      %s49 = sadd.s32 %s48, 1
      %p52 = scmp.eq.s32.totalorder %s14, 1
      %p53 = scmp.ne.s32.totalorder %s48, %s50
      %p54 = scmp.eq.s32.totalorder %s14, 0
      %p55 = por %p53, %p54
      %p56 = scmp.ne.s32.totalorder %s48, %s50
      %p57 = scmp.eq.s32.totalorder %s19, 1
      %p58 = por %p56, %p57
      %p59 = scmp.ne.s32.totalorder %s50, %s51
      %p60 = scmp.eq.s32.totalorder %s19, 0
      %p61 = por %p59, %p60
      %p62 = scmp.ne.s32.totalorder %s50, %s51
      %p63 = scmp.eq.s32.totalorder %s20, 1
      %p64 = por %p62, %p63
      %p66 = scmp.ne.s32.totalorder %s51, %s65
      %p67 = scmp.eq.s32.totalorder %s20, 0
      %p68 = por %p66, %p67
      %s70 = sadd.s32 %s69, 1
      %p73 = scmp.eq.s32.totalorder %s14, 1
      %p74 = scmp.ne.s32.totalorder %s69, %s71
      %p75 = scmp.eq.s32.totalorder %s14, 0
      %p76 = por %p74, %p75
      %p77 = scmp.ne.s32.totalorder %s69, %s71
      %p78 = scmp.eq.s32.totalorder %s19, 1
      %p79 = por %p77, %p78
      %p80 = scmp.ne.s32.totalorder %s71, %s72
      %p81 = scmp.eq.s32.totalorder %s19, 0
      %p82 = por %p80, %p81
      %p83 = scmp.ne.s32.totalorder %s71, %s72
      %p84 = scmp.eq.s32.totalorder %s20, 1
      %p85 = por %p83, %p84
      %p87 = scmp.ne.s32.totalorder %s72, %s86
      %p88 = scmp.eq.s32.totalorder %s20, 0
      %p89 = por %p87, %p88
      %s91 = sadd.s32 %s90, 1
      %p94 = scmp.eq.s32.totalorder %s14, 1
      %p95 = scmp.ne.s32.totalorder %s90, %s92
      %p96 = scmp.eq.s32.totalorder %s14, 0
      %p97 = por %p95, %p96
      %p98 = scmp.ne.s32.totalorder %s90, %s92
      %p99 = scmp.eq.s32.totalorder %s19, 1
      %p100 = por %p98, %p99
      %p101 = scmp.ne.s32.totalorder %s92, %s93
      %p102 = scmp.eq.s32.totalorder %s19, 0
      %p103 = por %p101, %p102
      %p104 = scmp.ne.s32.totalorder %s92, %s93
      %p105 = scmp.eq.s32.totalorder %s20, 1
      %p106 = por %p104, %p105
      %p108 = scmp.ne.s32.totalorder %s93, %s107
      %p109 = scmp.eq.s32.totalorder %s20, 0
      %p110 = por %p108, %p109
      %s112 = sadd.s32 %s111, 1
      %p115 = scmp.eq.s32.totalorder %s14, 1
      %p116 = scmp.ne.s32.totalorder %s111, %s113
      %p117 = scmp.eq.s32.totalorder %s14, 0
      %p118 = por %p116, %p117
      %p119 = scmp.ne.s32.totalorder %s111, %s113
      %p120 = scmp.eq.s32.totalorder %s19, 1
      %p121 = por %p119, %p120
      %p122 = scmp.ne.s32.totalorder %s113, %s114
      %p123 = scmp.eq.s32.totalorder %s19, 0
      %p124 = por %p122, %p123
      %p125 = scmp.ne.s32.totalorder %s113, %s114
      %p126 = scmp.eq.s32.totalorder %s20, 1
      %p127 = por %p125, %p126
      %p129 = scmp.ne.s32.totalorder %s114, %s128
      %p130 = scmp.eq.s32.totalorder %s20, 0
      %p131 = por %p129, %p130
      %s132 = ssub.s32 %s14, %s21
      %p133 = scmp.eq.s32.totalorder %s132, 0
      %s135 = sadd.s32 %s134, 1
      %s136 = scalar_select %p133, %s134, %s135
      %p139 = pneg %p133
      %p140 = scmp.eq.s32.totalorder %s14, 1
      %p141 = por %p139, %p140
      %p142 = scmp.ne.s32.totalorder %s134, %s137
      %p143 = scmp.eq.s32.totalorder %s14, 0
      %p144 = por %p142, %p143
      %p145 = scmp.ne.s32.totalorder %s134, %s137
      %p146 = scmp.eq.s32.totalorder %s19, 1
      %p147 = por %p145, %p146
      %p148 = scmp.ne.s32.totalorder %s137, %s138
      %p149 = scmp.eq.s32.totalorder %s19, 0
      %p150 = por %p148, %p149
      %p151 = scmp.ne.s32.totalorder %s137, %s138
      %p152 = scmp.eq.s32.totalorder %s20, 1
      %p153 = por %p151, %p152
      %p155 = scmp.ne.s32.totalorder %s138, %s154
      %p156 = scmp.eq.s32.totalorder %s20, 0
      %p157 = por %p155, %p156
      %p158 = scmp.le.s32.totalorder 1, %s14
      %p159 = scmp.lt.s32.totalorder %s14, 3
      %p160 = pnand %p158, %p159
      %p161 = pneg %p160
      // Predicated region
      $region9: #{tpu_custom_call.1} parent=5 // pred_check
        _
      $region10: #{tpu_custom_call.1} parent=5 // pred_check_branch
        %163 = sbr.rel (%p160) target = $region12
      $region11: #{tpu_custom_call.1} parent=5 // pred_region
        %s164 = ssub.s32 %s14, 1
        // Predicated region
        $region13: #{tpu_custom_call.1} parent=11 // pred_check
          %p165 = pneg %p61
        $region14: #{tpu_custom_call.1} parent=11 // pred_check_branch
          %167 = sbr.rel (%p165) target = $region16
        $region15: #{tpu_custom_call.1} parent=11 // pred_region
          _
        $region16: #{tpu_custom_call.1} parent=11 // pred_fallthru
          _
        // Predicated region
        $region17: #{tpu_custom_call.1} parent=11 // pred_check
          %p168 = pneg %p82
        $region18: #{tpu_custom_call.1} parent=11 // pred_check_branch
          %170 = sbr.rel (%p168) target = $region20
        $region19: #{tpu_custom_call.1} parent=11 // pred_region
          _
        $region20: #{tpu_custom_call.1} parent=11 // pred_fallthru
          _
        // Predicated region
        $region21: #{tpu_custom_call.1} parent=11 // pred_check
          %p171 = pneg %p103
        $region22: #{tpu_custom_call.1} parent=11 // pred_check_branch
          %173 = sbr.rel (%p171) target = $region24
        $region23: #{tpu_custom_call.1} parent=11 // pred_region
          _
        $region24: #{tpu_custom_call.1} parent=11 // pred_fallthru
          _
        // Predicated region
        $region25: #{tpu_custom_call.1} parent=11 // pred_check
          %p174 = pneg %p124
        $region26: #{tpu_custom_call.1} parent=11 // pred_check_branch
          %176 = sbr.rel (%p174) target = $region28
        $region27: #{tpu_custom_call.1} parent=11 // pred_region
          _
        $region28: #{tpu_custom_call.1} parent=11 // pred_fallthru
          _
      $region12: #{tpu_custom_call.1} parent=5 // pred_fallthru
        _
      %p177 = scmp.lt.s32.totalorder %s14, 2
      // Predicated region
      $region29: #{tpu_custom_call.1} parent=5 // pred_check
        %p178 = pneg %p177
      $region30: #{tpu_custom_call.1} parent=5 // pred_check_branch
        %180 = sbr.rel (%p178) target = $region32
      $region31: #{tpu_custom_call.1} parent=5 // pred_region
        // Predicated region
        $region33: #{tpu_custom_call.1} parent=31 // pred_check
          %p181 = pneg %p34
        $region34: #{tpu_custom_call.1} parent=31 // pred_check_branch
          %183 = sbr.rel (%p181) target = $region36
        $region35: #{tpu_custom_call.1} parent=31 // pred_region
          %p184 = scmp.lt.s32.totalorder %s14, 1
          %s185 = scalar_select %p184, %s14, 1
          %s186 = smul.addr %s185, 54
          %s187 = smul.addr %s186, 8
          %s188 = scalar_lea.vmem %s0, %s187
        $region36: #{tpu_custom_call.1} parent=31 // pred_fallthru
          _
      $region32: #{tpu_custom_call.1} parent=5 // pred_fallthru
        _
      %p189 = scmp.le.s32.totalorder 1, %s14
      %p190 = scmp.lt.s32.totalorder %s14, 3
      %p191 = pnand %p189, %p190
      %p192 = pneg %p191
      // Predicated region
      $region37: #{tpu_custom_call.1} parent=5 // pred_check
        _
      $region38: #{tpu_custom_call.1} parent=5 // pred_check_branch
        %194 = sbr.rel (%p191) target = $region40
      $region39: #{tpu_custom_call.1} parent=5 // pred_region
        %s195 = ssub.s32 %s14, 1
        %p196 = scmp.lt.s32.totalorder %s19, 1
        %s197 = scalar_select %p196, %s19, 1
        %s198 = smul.addr %s197, 54
        %s199 = smul.addr %s198, 8
        %s200 = scalar_lea.vmem %s0, %s199
        %p201 = pneg %p40
        %p202 = pneg %p37
        %p203 = pneg %p61
        %p204 = pneg %p58
        %p205 = pneg %p82
        %p206 = pneg %p79
        %p207 = pneg %p103
        %p208 = pneg %p100
        %p209 = pneg %p124
        %p210 = pneg %p121
        %p211 = pneg %p150
        %p212 = pneg %p147
        %s213 = sand.u32 %s137, 1
        %s214 = scalar_lea.sflag [#allocation3], %s213
        %s215 = sand.u32 %s137, 1
        %s216 = smul.addr %s215, 64
        %s217 = scalar_lea.vmem [#allocation2], %s216
        %p218 = scmp.lt.s32.totalorder %s19, 1
        %s219 = scalar_select %p218, %s19, 1
        %s220 = smul.addr %s219, 54
        %s221 = smul.addr %s220, 8
        %s222 = scalar_lea.vmem %s0, %s221
        %v223 = vld [vmem:[%s222] sm:$0xff]
        %v224 = vld [vmem:[%s222 + $0x8] sm:$0xff]
        %v225 = vld [vmem:[%s222 + $0x18] sm:$0xff]
        %v226 = vld [vmem:[%s222 + $0x20] sm:$0xff]
        %v227 = vld [vmem:[%s222 + $0x30] sm:$0xff]
        %v228 = vld [vmem:[%s222 + $0x38] sm:$0xff]
        %v229 = vld [vmem:[%s222 + $0x48] sm:$0xff]
        %v230 = vld [vmem:[%s222 + $0x50] sm:$0xff]
        %v231 = vld [vmem:[%s222 + $0x60] sm:$0xff]
        %v232 = vld [vmem:[%s222 + $0x68] sm:$0xff]
        %v233 = vld [vmem:[%s222 + $0x78] sm:$0xff]
        %v234 = vld [vmem:[%s222 + $0x80] sm:$0xff]
        %v235 = vld [vmem:[%s222 + $0x90] sm:$0xff]
        %v236 = vld [vmem:[%s222 + $0x98] sm:$0xff]
        %v237 = vld [vmem:[%s222 + $0xa8] sm:$0xff]
        %v238 = vld [vmem:[%s222 + $0xb0] sm:$0xff]
        %v239 = vld [vmem:[%s222 + $0xc0] sm:$0xff]
        %v240 = vld [vmem:[%s222 + $0xc8] sm:$0xff]
        %v241 = vld [vmem:[%s222 + $0xd8] sm:$0xff]
        %v242 = vld [vmem:[%s222 + $0xe0] sm:$0xff]
        %v243 = vld [vmem:[%s222 + $0xf0] sm:$0xff]
        %v244 = vld [vmem:[%s222 + $0xf8] sm:$0xff]
        %v245 = vld [vmem:[%s222 + $0x108] sm:$0xff]
        %v246 = vld [vmem:[%s222 + $0x110] sm:$0xff]
        %v247 = vld [vmem:[%s222 + $0x120] sm:$0xff]
        %v248 = vld [vmem:[%s222 + $0x128] sm:$0xff]
        %v249 = vld [vmem:[%s222 + $0x138] sm:$0xff]
        %v250 = vld [vmem:[%s222 + $0x140] sm:$0xff]
        %v251 = vld [vmem:[%s222 + $0x150] sm:$0xff]
        %v252 = vld [vmem:[%s222 + $0x158] sm:$0xff]
        %v253 = vld [vmem:[%s222 + $0x168] sm:$0xff]
        %v254 = vld [vmem:[%s222 + $0x170] sm:$0xff]
        %v255 = vld [vmem:[%s222 + $0x1] sm:$0xff]
        %v256 = vld [vmem:[%s222 + $0x9] sm:$0xff]
        %v257 = vld [vmem:[%s222 + $0x19] sm:$0xff]
        %v258 = vld [vmem:[%s222 + $0x21] sm:$0xff]
        %v259 = vld [vmem:[%s222 + $0x31] sm:$0xff]
        %v260 = vld [vmem:[%s222 + $0x39] sm:$0xff]
        %v261 = vld [vmem:[%s222 + $0x49] sm:$0xff]
        %v262 = vld [vmem:[%s222 + $0x51] sm:$0xff]
        %v263 = vld [vmem:[%s222 + $0x61] sm:$0xff]
        %v264 = vld [vmem:[%s222 + $0x69] sm:$0xff]
        %v265 = vld [vmem:[%s222 + $0x79] sm:$0xff]
        %v266 = vld [vmem:[%s222 + $0x81] sm:$0xff]
        %v267 = vld [vmem:[%s222 + $0x91] sm:$0xff]
        %v268 = vld [vmem:[%s222 + $0x99] sm:$0xff]
        %v269 = vld [vmem:[%s222 + $0xa9] sm:$0xff]
        %v270 = vld [vmem:[%s222 + $0xb1] sm:$0xff]
        %v271 = vld [vmem:[%s222 + $0xc1] sm:$0xff]
        %v272 = vld [vmem:[%s222 + $0xc9] sm:$0xff]
        %v273 = vld [vmem:[%s222 + $0xd9] sm:$0xff]
        %v274 = vld [vmem:[%s222 + $0xe1] sm:$0xff]
        %v275 = vld [vmem:[%s222 + $0xf1] sm:$0xff]
        %v276 = vld [vmem:[%s222 + $0xf9] sm:$0xff]
        %v277 = vld [vmem:[%s222 + $0x109] sm:$0xff]
        %v278 = vld [vmem:[%s222 + $0x111] sm:$0xff]
        %v279 = vld [vmem:[%s222 + $0x121] sm:$0xff]
        %v280 = vld [vmem:[%s222 + $0x129] sm:$0xff]
        %v281 = vld [vmem:[%s222 + $0x139] sm:$0xff]
        %v282 = vld [vmem:[%s222 + $0x141] sm:$0xff]
        %v283 = vld [vmem:[%s222 + $0x151] sm:$0xff]
        %v284 = vld [vmem:[%s222 + $0x159] sm:$0xff]
        %v285 = vld [vmem:[%s222 + $0x169] sm:$0xff]
        %v286 = vld [vmem:[%s222 + $0x171] sm:$0xff]
        %v287 = vld [vmem:[%s222 + $0x2] sm:$0xff]
        %v288 = vld [vmem:[%s222 + $0xa] sm:$0xff]
        %v289 = vld [vmem:[%s222 + $0x1a] sm:$0xff]
        %v290 = vld [vmem:[%s222 + $0x22] sm:$0xff]
        %v291 = vld [vmem:[%s222 + $0x32] sm:$0xff]
        %v292 = vld [vmem:[%s222 + $0x3a] sm:$0xff]
        %v293 = vld [vmem:[%s222 + $0x4a] sm:$0xff]
        %v294 = vld [vmem:[%s222 + $0x52] sm:$0xff]
        %v295 = vld [vmem:[%s222 + $0x62] sm:$0xff]
        %v296 = vld [vmem:[%s222 + $0x6a] sm:$0xff]
        %v297 = vld [vmem:[%s222 + $0x7a] sm:$0xff]
        %v298 = vld [vmem:[%s222 + $0x82] sm:$0xff]
        %v299 = vld [vmem:[%s222 + $0x92] sm:$0xff]
        %v300 = vld [vmem:[%s222 + $0x9a] sm:$0xff]
        %v301 = vld [vmem:[%s222 + $0xaa] sm:$0xff]
        %v302 = vld [vmem:[%s222 + $0xb2] sm:$0xff]
        %v303 = vld [vmem:[%s222 + $0xc2] sm:$0xff]
        %v304 = vld [vmem:[%s222 + $0xca] sm:$0xff]
        %v305 = vld [vmem:[%s222 + $0xda] sm:$0xff]
        %v306 = vld [vmem:[%s222 + $0xe2] sm:$0xff]
        %v307 = vld [vmem:[%s222 + $0xf2] sm:$0xff]
        %v308 = vld [vmem:[%s222 + $0xfa] sm:$0xff]
        %v309 = vld [vmem:[%s222 + $0x10a] sm:$0xff]
        %v310 = vld [vmem:[%s222 + $0x112] sm:$0xff]
        %v311 = vld [vmem:[%s222 + $0x122] sm:$0xff]
        %v312 = vld [vmem:[%s222 + $0x12a] sm:$0xff]
        %v313 = vld [vmem:[%s222 + $0x13a] sm:$0xff]
        %v314 = vld [vmem:[%s222 + $0x142] sm:$0xff]
        %v315 = vld [vmem:[%s222 + $0x152] sm:$0xff]
        %v316 = vld [vmem:[%s222 + $0x15a] sm:$0xff]
        %v317 = vld [vmem:[%s222 + $0x16a] sm:$0xff]
        %v318 = vld [vmem:[%s222 + $0x172] sm:$0xff]
        %s319 = scalar_lea.vmem %s222, 24
        %v320 = vld [vmem:[%s319] sm:$0xff]
        %v321 = vld [vmem:[%s319 + $0x8] sm:$0xff]
        %v322 = vld [vmem:[%s319 + $0x18] sm:$0xff]
        %v323 = vld [vmem:[%s319 + $0x20] sm:$0xff]
        %v324 = vld [vmem:[%s319 + $0x30] sm:$0xff]
        %v325 = vld [vmem:[%s319 + $0x38] sm:$0xff]
        %v326 = vld [vmem:[%s319 + $0x48] sm:$0xff]
        %v327 = vld [vmem:[%s319 + $0x50] sm:$0xff]
        %v328 = vld [vmem:[%s319 + $0x60] sm:$0xff]
        %v329 = vld [vmem:[%s319 + $0x68] sm:$0xff]
        %v330 = vld [vmem:[%s319 + $0x78] sm:$0xff]
        %v331 = vld [vmem:[%s319 + $0x80] sm:$0xff]
        %v332 = vld [vmem:[%s319 + $0x90] sm:$0xff]
        %v333 = vld [vmem:[%s319 + $0x98] sm:$0xff]
        %v334 = vld [vmem:[%s319 + $0xa8] sm:$0xff]
        %v335 = vld [vmem:[%s319 + $0xb0] sm:$0xff]
        %v336 = vld [vmem:[%s319 + $0xc0] sm:$0xff]
        %v337 = vld [vmem:[%s319 + $0xc8] sm:$0xff]
        %v338 = vld [vmem:[%s319 + $0xd8] sm:$0xff]
        %v339 = vld [vmem:[%s319 + $0xe0] sm:$0xff]
        %v340 = vld [vmem:[%s319 + $0xf0] sm:$0xff]
        %v341 = vld [vmem:[%s319 + $0xf8] sm:$0xff]
        %v342 = vld [vmem:[%s319 + $0x108] sm:$0xff]
        %v343 = vld [vmem:[%s319 + $0x110] sm:$0xff]
        %v344 = vld [vmem:[%s319 + $0x120] sm:$0xff]
        %v345 = vld [vmem:[%s319 + $0x128] sm:$0xff]
        %v346 = vld [vmem:[%s319 + $0x138] sm:$0xff]
        %v347 = vld [vmem:[%s319 + $0x140] sm:$0xff]
        %v348 = vld [vmem:[%s319 + $0x150] sm:$0xff]
        %v349 = vld [vmem:[%s319 + $0x158] sm:$0xff]
        %v350 = vld [vmem:[%s319 + $0x168] sm:$0xff]
        %v351 = vld [vmem:[%s319 + $0x170] sm:$0xff]
        %v352 = vld [vmem:[%s319 + $0x1] sm:$0xff]
        %v353 = vld [vmem:[%s319 + $0x9] sm:$0xff]
        %v354 = vld [vmem:[%s319 + $0x19] sm:$0xff]
        %v355 = vld [vmem:[%s319 + $0x21] sm:$0xff]
        %v356 = vld [vmem:[%s319 + $0x31] sm:$0xff]
        %v357 = vld [vmem:[%s319 + $0x39] sm:$0xff]
        %v358 = vld [vmem:[%s319 + $0x49] sm:$0xff]
        %v359 = vld [vmem:[%s319 + $0x51] sm:$0xff]
        %v360 = vld [vmem:[%s319 + $0x61] sm:$0xff]
        %v361 = vld [vmem:[%s319 + $0x69] sm:$0xff]
        %v362 = vld [vmem:[%s319 + $0x79] sm:$0xff]
        %v363 = vld [vmem:[%s319 + $0x81] sm:$0xff]
        %v364 = vld [vmem:[%s319 + $0x91] sm:$0xff]
        %v365 = vld [vmem:[%s319 + $0x99] sm:$0xff]
        %v366 = vld [vmem:[%s319 + $0xa9] sm:$0xff]
        %v367 = vld [vmem:[%s319 + $0xb1] sm:$0xff]
        %v368 = vld [vmem:[%s319 + $0xc1] sm:$0xff]
        %v369 = vld [vmem:[%s319 + $0xc9] sm:$0xff]
        %v370 = vld [vmem:[%s319 + $0xd9] sm:$0xff]
        %v371 = vld [vmem:[%s319 + $0xe1] sm:$0xff]
        %v372 = vld [vmem:[%s319 + $0xf1] sm:$0xff]
        %v373 = vld [vmem:[%s319 + $0xf9] sm:$0xff]
        %v374 = vld [vmem:[%s319 + $0x109] sm:$0xff]
        %v375 = vld [vmem:[%s319 + $0x111] sm:$0xff]
        %v376 = vld [vmem:[%s319 + $0x121] sm:$0xff]
        %v377 = vld [vmem:[%s319 + $0x129] sm:$0xff]
        %v378 = vld [vmem:[%s319 + $0x139] sm:$0xff]
        %v379 = vld [vmem:[%s319 + $0x141] sm:$0xff]
        %v380 = vld [vmem:[%s319 + $0x151] sm:$0xff]
        %v381 = vld [vmem:[%s319 + $0x159] sm:$0xff]
        %v382 = vld [vmem:[%s319 + $0x169] sm:$0xff]
        %v383 = vld [vmem:[%s319 + $0x171] sm:$0xff]
        %v384 = vld [vmem:[%s319 + $0x2] sm:$0xff]
        %v385 = vld [vmem:[%s319 + $0xa] sm:$0xff]
        %v386 = vld [vmem:[%s319 + $0x1a] sm:$0xff]
        %v387 = vld [vmem:[%s319 + $0x22] sm:$0xff]
        %v388 = vld [vmem:[%s319 + $0x32] sm:$0xff]
        %v389 = vld [vmem:[%s319 + $0x3a] sm:$0xff]
        %v390 = vld [vmem:[%s319 + $0x4a] sm:$0xff]
        %v391 = vld [vmem:[%s319 + $0x52] sm:$0xff]
        %v392 = vld [vmem:[%s319 + $0x62] sm:$0xff]
        %v393 = vld [vmem:[%s319 + $0x6a] sm:$0xff]
        %v394 = vld [vmem:[%s319 + $0x7a] sm:$0xff]
        %v395 = vld [vmem:[%s319 + $0x82] sm:$0xff]
        %v396 = vld [vmem:[%s319 + $0x92] sm:$0xff]
        %v397 = vld [vmem:[%s319 + $0x9a] sm:$0xff]
        %v398 = vld [vmem:[%s319 + $0xaa] sm:$0xff]
        %v399 = vld [vmem:[%s319 + $0xb2] sm:$0xff]
        %v400 = vld [vmem:[%s319 + $0xc2] sm:$0xff]
        %v401 = vld [vmem:[%s319 + $0xca] sm:$0xff]
        %v402 = vld [vmem:[%s319 + $0xda] sm:$0xff]
        %v403 = vld [vmem:[%s319 + $0xe2] sm:$0xff]
        %v404 = vld [vmem:[%s319 + $0xf2] sm:$0xff]
        %v405 = vld [vmem:[%s319 + $0xfa] sm:$0xff]
        %v406 = vld [vmem:[%s319 + $0x10a] sm:$0xff]
        %v407 = vld [vmem:[%s319 + $0x112] sm:$0xff]
        %v408 = vld [vmem:[%s319 + $0x122] sm:$0xff]
        %v409 = vld [vmem:[%s319 + $0x12a] sm:$0xff]
        %v410 = vld [vmem:[%s319 + $0x13a] sm:$0xff]
        %v411 = vld [vmem:[%s319 + $0x142] sm:$0xff]
        %v412 = vld [vmem:[%s319 + $0x152] sm:$0xff]
        %v413 = vld [vmem:[%s319 + $0x15a] sm:$0xff]
        %v414 = vld [vmem:[%s319 + $0x16a] sm:$0xff]
        %v415 = vld [vmem:[%s319 + $0x172] sm:$0xff]
        %s416 = scalar_lea.vmem %s222, 48
        %v417 = vld [vmem:[%s416] sm:$0xff]
        %v418 = vld [vmem:[%s416 + $0x8] sm:$0xff]
        %v419 = vld [vmem:[%s416 + $0x18] sm:$0xff]
        %v420 = vld [vmem:[%s416 + $0x20] sm:$0xff]
        %v421 = vld [vmem:[%s416 + $0x30] sm:$0xff]
        %v422 = vld [vmem:[%s416 + $0x38] sm:$0xff]
        %v423 = vld [vmem:[%s416 + $0x48] sm:$0xff]
        %v424 = vld [vmem:[%s416 + $0x50] sm:$0xff]
        %v425 = vld [vmem:[%s416 + $0x60] sm:$0xff]
        %v426 = vld [vmem:[%s416 + $0x68] sm:$0xff]
        %v427 = vld [vmem:[%s416 + $0x78] sm:$0xff]
        %v428 = vld [vmem:[%s416 + $0x80] sm:$0xff]
        %v429 = vld [vmem:[%s416 + $0x90] sm:$0xff]
        %v430 = vld [vmem:[%s416 + $0x98] sm:$0xff]
        %v431 = vld [vmem:[%s416 + $0xa8] sm:$0xff]
        %v432 = vld [vmem:[%s416 + $0xb0] sm:$0xff]
        %v433 = vld [vmem:[%s416 + $0xc0] sm:$0xff]
        %v434 = vld [vmem:[%s416 + $0xc8] sm:$0xff]
        %v435 = vld [vmem:[%s416 + $0xd8] sm:$0xff]
        %v436 = vld [vmem:[%s416 + $0xe0] sm:$0xff]
        %v437 = vld [vmem:[%s416 + $0xf0] sm:$0xff]
        %v438 = vld [vmem:[%s416 + $0xf8] sm:$0xff]
        %v439 = vld [vmem:[%s416 + $0x108] sm:$0xff]
        %v440 = vld [vmem:[%s416 + $0x110] sm:$0xff]
        %v441 = vld [vmem:[%s416 + $0x120] sm:$0xff]
        %v442 = vld [vmem:[%s416 + $0x128] sm:$0xff]
        %v443 = vld [vmem:[%s416 + $0x138] sm:$0xff]
        %v444 = vld [vmem:[%s416 + $0x140] sm:$0xff]
        %v445 = vld [vmem:[%s416 + $0x150] sm:$0xff]
        %v446 = vld [vmem:[%s416 + $0x158] sm:$0xff]
        %v447 = vld [vmem:[%s416 + $0x168] sm:$0xff]
        %v448 = vld [vmem:[%s416 + $0x170] sm:$0xff]
        %v449 = vld [vmem:[%s416 + $0x1] sm:$0xff]
        %v450 = vld [vmem:[%s416 + $0x9] sm:$0xff]
        %v451 = vld [vmem:[%s416 + $0x19] sm:$0xff]
        %v452 = vld [vmem:[%s416 + $0x21] sm:$0xff]
        %v453 = vld [vmem:[%s416 + $0x31] sm:$0xff]
        %v454 = vld [vmem:[%s416 + $0x39] sm:$0xff]
        %v455 = vld [vmem:[%s416 + $0x49] sm:$0xff]
        %v456 = vld [vmem:[%s416 + $0x51] sm:$0xff]
        %v457 = vld [vmem:[%s416 + $0x61] sm:$0xff]
        %v458 = vld [vmem:[%s416 + $0x69] sm:$0xff]
        %v459 = vld [vmem:[%s416 + $0x79] sm:$0xff]
        %v460 = vld [vmem:[%s416 + $0x81] sm:$0xff]
        %v461 = vld [vmem:[%s416 + $0x91] sm:$0xff]
        %v462 = vld [vmem:[%s416 + $0x99] sm:$0xff]
        %v463 = vld [vmem:[%s416 + $0xa9] sm:$0xff]
        %v464 = vld [vmem:[%s416 + $0xb1] sm:$0xff]
        %v465 = vld [vmem:[%s416 + $0xc1] sm:$0xff]
        %v466 = vld [vmem:[%s416 + $0xc9] sm:$0xff]
        %v467 = vld [vmem:[%s416 + $0xd9] sm:$0xff]
        %v468 = vld [vmem:[%s416 + $0xe1] sm:$0xff]
        %v469 = vld [vmem:[%s416 + $0xf1] sm:$0xff]
        %v470 = vld [vmem:[%s416 + $0xf9] sm:$0xff]
        %v471 = vld [vmem:[%s416 + $0x109] sm:$0xff]
        %v472 = vld [vmem:[%s416 + $0x111] sm:$0xff]
        %v473 = vld [vmem:[%s416 + $0x121] sm:$0xff]
        %v474 = vld [vmem:[%s416 + $0x129] sm:$0xff]
        %v475 = vld [vmem:[%s416 + $0x139] sm:$0xff]
        %v476 = vld [vmem:[%s416 + $0x141] sm:$0xff]
        %v477 = vld [vmem:[%s416 + $0x151] sm:$0xff]
        %v478 = vld [vmem:[%s416 + $0x159] sm:$0xff]
        %v479 = vld [vmem:[%s416 + $0x169] sm:$0xff]
        %v480 = vld [vmem:[%s416 + $0x171] sm:$0xff]
        %v481 = vld [vmem:[%s416 + $0x2] sm:$0xff]
        %v482 = vld [vmem:[%s416 + $0xa] sm:$0xff]
        %v483 = vld [vmem:[%s416 + $0x1a] sm:$0xff]
        %v484 = vld [vmem:[%s416 + $0x22] sm:$0xff]
        %v485 = vld [vmem:[%s416 + $0x32] sm:$0xff]
        %v486 = vld [vmem:[%s416 + $0x3a] sm:$0xff]
        %v487 = vld [vmem:[%s416 + $0x4a] sm:$0xff]
        %v488 = vld [vmem:[%s416 + $0x52] sm:$0xff]
        %v489 = vld [vmem:[%s416 + $0x62] sm:$0xff]
        %v490 = vld [vmem:[%s416 + $0x6a] sm:$0xff]
        %v491 = vld [vmem:[%s416 + $0x7a] sm:$0xff]
        %v492 = vld [vmem:[%s416 + $0x82] sm:$0xff]
        %v493 = vld [vmem:[%s416 + $0x92] sm:$0xff]
        %v494 = vld [vmem:[%s416 + $0x9a] sm:$0xff]
        %v495 = vld [vmem:[%s416 + $0xaa] sm:$0xff]
        %v496 = vld [vmem:[%s416 + $0xb2] sm:$0xff]
        %v497 = vld [vmem:[%s416 + $0xc2] sm:$0xff]
        %v498 = vld [vmem:[%s416 + $0xca] sm:$0xff]
        %v499 = vld [vmem:[%s416 + $0xda] sm:$0xff]
        %v500 = vld [vmem:[%s416 + $0xe2] sm:$0xff]
        %v501 = vld [vmem:[%s416 + $0xf2] sm:$0xff]
        %v502 = vld [vmem:[%s416 + $0xfa] sm:$0xff]
        %v503 = vld [vmem:[%s416 + $0x10a] sm:$0xff]
        %v504 = vld [vmem:[%s416 + $0x112] sm:$0xff]
        %v505 = vld [vmem:[%s416 + $0x122] sm:$0xff]
        %v506 = vld [vmem:[%s416 + $0x12a] sm:$0xff]
        %v507 = vld [vmem:[%s416 + $0x13a] sm:$0xff]
        %v508 = vld [vmem:[%s416 + $0x142] sm:$0xff]
        %v509 = vld [vmem:[%s416 + $0x152] sm:$0xff]
        %v510 = vld [vmem:[%s416 + $0x15a] sm:$0xff]
        %v511 = vld [vmem:[%s416 + $0x16a] sm:$0xff]
        %v512 = vld [vmem:[%s416 + $0x172] sm:$0xff]
        %545 = vrot.lane.b32.xlu0 %v255, 4
        %v546 = vpop.permute.xlu0 %545
        %547 = vrot.lane.b32.xlu0 %v256, 4
        %v548 = vpop.permute.xlu0 %547
        %549 = vrot.lane.b32.xlu0 %v257, 4
        %v550 = vpop.permute.xlu0 %549
        %551 = vrot.lane.b32.xlu0 %v258, 4
        %v552 = vpop.permute.xlu0 %551
        %553 = vrot.lane.b32.xlu0 %v259, 4
        %v554 = vpop.permute.xlu0 %553
        %555 = vrot.lane.b32.xlu0 %v260, 4
        %v556 = vpop.permute.xlu0 %555
        %557 = vrot.lane.b32.xlu0 %v261, 4
        %v558 = vpop.permute.xlu0 %557
        %559 = vrot.lane.b32.xlu0 %v262, 4
        %v560 = vpop.permute.xlu0 %559
        %561 = vrot.lane.b32.xlu0 %v263, 4
        %v562 = vpop.permute.xlu0 %561
        %563 = vrot.lane.b32.xlu0 %v264, 4
        %v564 = vpop.permute.xlu0 %563
        %565 = vrot.lane.b32.xlu0 %v265, 4
        %v566 = vpop.permute.xlu0 %565
        %567 = vrot.lane.b32.xlu0 %v266, 4
        %v568 = vpop.permute.xlu0 %567
        %569 = vrot.lane.b32.xlu0 %v267, 4
        %v570 = vpop.permute.xlu0 %569
        %571 = vrot.lane.b32.xlu0 %v268, 4
        %v572 = vpop.permute.xlu0 %571
        %573 = vrot.lane.b32.xlu0 %v269, 4
        %v574 = vpop.permute.xlu0 %573
        %575 = vrot.lane.b32.xlu0 %v270, 4
        %v576 = vpop.permute.xlu0 %575
        %577 = vrot.lane.b32.xlu0 %v271, 4
        %v578 = vpop.permute.xlu0 %577
        %579 = vrot.lane.b32.xlu0 %v272, 4
        %v580 = vpop.permute.xlu0 %579
        %581 = vrot.lane.b32.xlu0 %v273, 4
        %v582 = vpop.permute.xlu0 %581
        %583 = vrot.lane.b32.xlu0 %v274, 4
        %v584 = vpop.permute.xlu0 %583
        %585 = vrot.lane.b32.xlu0 %v275, 4
        %v586 = vpop.permute.xlu0 %585
        %587 = vrot.lane.b32.xlu0 %v276, 4
        %v588 = vpop.permute.xlu0 %587
        %589 = vrot.lane.b32.xlu0 %v277, 4
        %v590 = vpop.permute.xlu0 %589
        %591 = vrot.lane.b32.xlu0 %v278, 4
        %v592 = vpop.permute.xlu0 %591
        %593 = vrot.lane.b32.xlu0 %v279, 4
        %v594 = vpop.permute.xlu0 %593
        %595 = vrot.lane.b32.xlu0 %v280, 4
        %v596 = vpop.permute.xlu0 %595
        %597 = vrot.lane.b32.xlu0 %v281, 4
        %v598 = vpop.permute.xlu0 %597
        %599 = vrot.lane.b32.xlu0 %v282, 4
        %v600 = vpop.permute.xlu0 %599
        %601 = vrot.lane.b32.xlu0 %v283, 4
        %v602 = vpop.permute.xlu0 %601
        %603 = vrot.lane.b32.xlu0 %v284, 4
        %v604 = vpop.permute.xlu0 %603
        %605 = vrot.lane.b32.xlu0 %v285, 4
        %v606 = vpop.permute.xlu0 %605
        %607 = vrot.lane.b32.xlu0 %v286, 4
        %v608 = vpop.permute.xlu0 %607
        %673 = vrot.lane.b32.xlu0 %v287, 8
        %v674 = vpop.permute.xlu0 %673
        %675 = vrot.lane.b32.xlu0 %v288, 8
        %v676 = vpop.permute.xlu0 %675
        %677 = vrot.lane.b32.xlu0 %v289, 8
        %v678 = vpop.permute.xlu0 %677
        %679 = vrot.lane.b32.xlu0 %v290, 8
        %v680 = vpop.permute.xlu0 %679
        %681 = vrot.lane.b32.xlu0 %v291, 8
        %v682 = vpop.permute.xlu0 %681
        %683 = vrot.lane.b32.xlu0 %v292, 8
        %v684 = vpop.permute.xlu0 %683
        %685 = vrot.lane.b32.xlu0 %v293, 8
        %v686 = vpop.permute.xlu0 %685
        %687 = vrot.lane.b32.xlu0 %v294, 8
        %v688 = vpop.permute.xlu0 %687
        %689 = vrot.lane.b32.xlu0 %v295, 8
        %v690 = vpop.permute.xlu0 %689
        %691 = vrot.lane.b32.xlu0 %v296, 8
        %v692 = vpop.permute.xlu0 %691
        %693 = vrot.lane.b32.xlu0 %v297, 8
        %v694 = vpop.permute.xlu0 %693
        %695 = vrot.lane.b32.xlu0 %v298, 8
        %v696 = vpop.permute.xlu0 %695
        %697 = vrot.lane.b32.xlu0 %v299, 8
        %v698 = vpop.permute.xlu0 %697
        %699 = vrot.lane.b32.xlu0 %v300, 8
        %v700 = vpop.permute.xlu0 %699
        %701 = vrot.lane.b32.xlu0 %v301, 8
        %v702 = vpop.permute.xlu0 %701
        %703 = vrot.lane.b32.xlu0 %v302, 8
        %v704 = vpop.permute.xlu0 %703
        %705 = vrot.lane.b32.xlu0 %v303, 8
        %v706 = vpop.permute.xlu0 %705
        %707 = vrot.lane.b32.xlu0 %v304, 8
        %v708 = vpop.permute.xlu0 %707
        %709 = vrot.lane.b32.xlu0 %v305, 8
        %v710 = vpop.permute.xlu0 %709
        %711 = vrot.lane.b32.xlu0 %v306, 8
        %v712 = vpop.permute.xlu0 %711
        %713 = vrot.lane.b32.xlu0 %v307, 8
        %v714 = vpop.permute.xlu0 %713
        %715 = vrot.lane.b32.xlu0 %v308, 8
        %v716 = vpop.permute.xlu0 %715
        %717 = vrot.lane.b32.xlu0 %v309, 8
        %v718 = vpop.permute.xlu0 %717
        %719 = vrot.lane.b32.xlu0 %v310, 8
        %v720 = vpop.permute.xlu0 %719
        %721 = vrot.lane.b32.xlu0 %v311, 8
        %v722 = vpop.permute.xlu0 %721
        %723 = vrot.lane.b32.xlu0 %v312, 8
        %v724 = vpop.permute.xlu0 %723
        %725 = vrot.lane.b32.xlu0 %v313, 8
        %v726 = vpop.permute.xlu0 %725
        %727 = vrot.lane.b32.xlu0 %v314, 8
        %v728 = vpop.permute.xlu0 %727
        %729 = vrot.lane.b32.xlu0 %v315, 8
        %v730 = vpop.permute.xlu0 %729
        %731 = vrot.lane.b32.xlu0 %v316, 8
        %v732 = vpop.permute.xlu0 %731
        %733 = vrot.lane.b32.xlu0 %v317, 8
        %v734 = vpop.permute.xlu0 %733
        %735 = vrot.lane.b32.xlu0 %v318, 8
        %v736 = vpop.permute.xlu0 %735
        %801 = vrot.lane.b32.xlu0 %v320, 12
        %v802 = vpop.permute.xlu0 %801
        %803 = vrot.lane.b32.xlu0 %v321, 12
        %v804 = vpop.permute.xlu0 %803
        %805 = vrot.lane.b32.xlu0 %v322, 12
        %v806 = vpop.permute.xlu0 %805
        %807 = vrot.lane.b32.xlu0 %v323, 12
        %v808 = vpop.permute.xlu0 %807
        %809 = vrot.lane.b32.xlu0 %v324, 12
        %v810 = vpop.permute.xlu0 %809
        %811 = vrot.lane.b32.xlu0 %v325, 12
        %v812 = vpop.permute.xlu0 %811
        %813 = vrot.lane.b32.xlu0 %v326, 12
        %v814 = vpop.permute.xlu0 %813
        %815 = vrot.lane.b32.xlu0 %v327, 12
        %v816 = vpop.permute.xlu0 %815
        %817 = vrot.lane.b32.xlu0 %v328, 12
        %v818 = vpop.permute.xlu0 %817
        %819 = vrot.lane.b32.xlu0 %v329, 12
        %v820 = vpop.permute.xlu0 %819
        %821 = vrot.lane.b32.xlu0 %v330, 12
        %v822 = vpop.permute.xlu0 %821
        %823 = vrot.lane.b32.xlu0 %v331, 12
        %v824 = vpop.permute.xlu0 %823
        %825 = vrot.lane.b32.xlu0 %v332, 12
        %v826 = vpop.permute.xlu0 %825
        %827 = vrot.lane.b32.xlu0 %v333, 12
        %v828 = vpop.permute.xlu0 %827
        %829 = vrot.lane.b32.xlu0 %v334, 12
        %v830 = vpop.permute.xlu0 %829
        %831 = vrot.lane.b32.xlu0 %v335, 12
        %v832 = vpop.permute.xlu0 %831
        %833 = vrot.lane.b32.xlu0 %v336, 12
        %v834 = vpop.permute.xlu0 %833
        %835 = vrot.lane.b32.xlu0 %v337, 12
        %v836 = vpop.permute.xlu0 %835
        %837 = vrot.lane.b32.xlu0 %v338, 12
        %v838 = vpop.permute.xlu0 %837
        %839 = vrot.lane.b32.xlu0 %v339, 12
        %v840 = vpop.permute.xlu0 %839
        %841 = vrot.lane.b32.xlu0 %v340, 12
        %v842 = vpop.permute.xlu0 %841
        %843 = vrot.lane.b32.xlu0 %v341, 12
        %v844 = vpop.permute.xlu0 %843
        %845 = vrot.lane.b32.xlu0 %v342, 12
        %v846 = vpop.permute.xlu0 %845
        %847 = vrot.lane.b32.xlu0 %v343, 12
        %v848 = vpop.permute.xlu0 %847
        %849 = vrot.lane.b32.xlu0 %v344, 12
        %v850 = vpop.permute.xlu0 %849
        %851 = vrot.lane.b32.xlu0 %v345, 12
        %v852 = vpop.permute.xlu0 %851
        %853 = vrot.lane.b32.xlu0 %v346, 12
        %v854 = vpop.permute.xlu0 %853
        %855 = vrot.lane.b32.xlu0 %v347, 12
        %v856 = vpop.permute.xlu0 %855
        %857 = vrot.lane.b32.xlu0 %v348, 12
        %v858 = vpop.permute.xlu0 %857
        %859 = vrot.lane.b32.xlu0 %v349, 12
        %v860 = vpop.permute.xlu0 %859
        %861 = vrot.lane.b32.xlu0 %v350, 12
        %v862 = vpop.permute.xlu0 %861
        %863 = vrot.lane.b32.xlu0 %v351, 12
        %v864 = vpop.permute.xlu0 %863
        %929 = vrot.lane.b32.xlu0 %v352, 16
        %v930 = vpop.permute.xlu0 %929
        %931 = vrot.lane.b32.xlu0 %v353, 16
        %v932 = vpop.permute.xlu0 %931
        %933 = vrot.lane.b32.xlu0 %v354, 16
        %v934 = vpop.permute.xlu0 %933
        %935 = vrot.lane.b32.xlu0 %v355, 16
        %v936 = vpop.permute.xlu0 %935
        %937 = vrot.lane.b32.xlu0 %v356, 16
        %v938 = vpop.permute.xlu0 %937
        %939 = vrot.lane.b32.xlu0 %v357, 16
        %v940 = vpop.permute.xlu0 %939
        %941 = vrot.lane.b32.xlu0 %v358, 16
        %v942 = vpop.permute.xlu0 %941
        %943 = vrot.lane.b32.xlu0 %v359, 16
        %v944 = vpop.permute.xlu0 %943
        %945 = vrot.lane.b32.xlu0 %v360, 16
        %v946 = vpop.permute.xlu0 %945
        %947 = vrot.lane.b32.xlu0 %v361, 16
        %v948 = vpop.permute.xlu0 %947
        %949 = vrot.lane.b32.xlu0 %v362, 16
        %v950 = vpop.permute.xlu0 %949
        %951 = vrot.lane.b32.xlu0 %v363, 16
        %v952 = vpop.permute.xlu0 %951
        %953 = vrot.lane.b32.xlu0 %v364, 16
        %v954 = vpop.permute.xlu0 %953
        %955 = vrot.lane.b32.xlu0 %v365, 16
        %v956 = vpop.permute.xlu0 %955
        %957 = vrot.lane.b32.xlu0 %v366, 16
        %v958 = vpop.permute.xlu0 %957
        %959 = vrot.lane.b32.xlu0 %v367, 16
        %v960 = vpop.permute.xlu0 %959
        %961 = vrot.lane.b32.xlu0 %v368, 16
        %v962 = vpop.permute.xlu0 %961
        %963 = vrot.lane.b32.xlu0 %v369, 16
        %v964 = vpop.permute.xlu0 %963
        %965 = vrot.lane.b32.xlu0 %v370, 16
        %v966 = vpop.permute.xlu0 %965
        %967 = vrot.lane.b32.xlu0 %v371, 16
        %v968 = vpop.permute.xlu0 %967
        %969 = vrot.lane.b32.xlu0 %v372, 16
        %v970 = vpop.permute.xlu0 %969
        %971 = vrot.lane.b32.xlu0 %v373, 16
        %v972 = vpop.permute.xlu0 %971
        %973 = vrot.lane.b32.xlu0 %v374, 16
        %v974 = vpop.permute.xlu0 %973
        %975 = vrot.lane.b32.xlu0 %v375, 16
        %v976 = vpop.permute.xlu0 %975
        %977 = vrot.lane.b32.xlu0 %v376, 16
        %v978 = vpop.permute.xlu0 %977
        %979 = vrot.lane.b32.xlu0 %v377, 16
        %v980 = vpop.permute.xlu0 %979
        %981 = vrot.lane.b32.xlu0 %v378, 16
        %v982 = vpop.permute.xlu0 %981
        %983 = vrot.lane.b32.xlu0 %v379, 16
        %v984 = vpop.permute.xlu0 %983
        %985 = vrot.lane.b32.xlu0 %v380, 16
        %v986 = vpop.permute.xlu0 %985
        %987 = vrot.lane.b32.xlu0 %v381, 16
        %v988 = vpop.permute.xlu0 %987
        %989 = vrot.lane.b32.xlu0 %v382, 16
        %v990 = vpop.permute.xlu0 %989
        %991 = vrot.lane.b32.xlu0 %v383, 16
        %v992 = vpop.permute.xlu0 %991
        %1057 = vrot.lane.b32.xlu0 %v384, 20
        %v1058 = vpop.permute.xlu0 %1057
        %1059 = vrot.lane.b32.xlu0 %v385, 20
        %v1060 = vpop.permute.xlu0 %1059
        %1061 = vrot.lane.b32.xlu0 %v386, 20
        %v1062 = vpop.permute.xlu0 %1061
        %1063 = vrot.lane.b32.xlu0 %v387, 20
        %v1064 = vpop.permute.xlu0 %1063
        %1065 = vrot.lane.b32.xlu0 %v388, 20
        %v1066 = vpop.permute.xlu0 %1065
        %1067 = vrot.lane.b32.xlu0 %v389, 20
        %v1068 = vpop.permute.xlu0 %1067
        %1069 = vrot.lane.b32.xlu0 %v390, 20
        %v1070 = vpop.permute.xlu0 %1069
        %1071 = vrot.lane.b32.xlu0 %v391, 20
        %v1072 = vpop.permute.xlu0 %1071
        %1073 = vrot.lane.b32.xlu0 %v392, 20
        %v1074 = vpop.permute.xlu0 %1073
        %1075 = vrot.lane.b32.xlu0 %v393, 20
        %v1076 = vpop.permute.xlu0 %1075
        %1077 = vrot.lane.b32.xlu0 %v394, 20
        %v1078 = vpop.permute.xlu0 %1077
        %1079 = vrot.lane.b32.xlu0 %v395, 20
        %v1080 = vpop.permute.xlu0 %1079
        %1081 = vrot.lane.b32.xlu0 %v396, 20
        %v1082 = vpop.permute.xlu0 %1081
        %1083 = vrot.lane.b32.xlu0 %v397, 20
        %v1084 = vpop.permute.xlu0 %1083
        %1085 = vrot.lane.b32.xlu0 %v398, 20
        %v1086 = vpop.permute.xlu0 %1085
        %1087 = vrot.lane.b32.xlu0 %v399, 20
        %v1088 = vpop.permute.xlu0 %1087
        %1089 = vrot.lane.b32.xlu0 %v400, 20
        %v1090 = vpop.permute.xlu0 %1089
        %1091 = vrot.lane.b32.xlu0 %v401, 20
        %v1092 = vpop.permute.xlu0 %1091
        %1093 = vrot.lane.b32.xlu0 %v402, 20
        %v1094 = vpop.permute.xlu0 %1093
        %1095 = vrot.lane.b32.xlu0 %v403, 20
        %v1096 = vpop.permute.xlu0 %1095
        %1097 = vrot.lane.b32.xlu0 %v404, 20
        %v1098 = vpop.permute.xlu0 %1097
        %1099 = vrot.lane.b32.xlu0 %v405, 20
        %v1100 = vpop.permute.xlu0 %1099
        %1101 = vrot.lane.b32.xlu0 %v406, 20
        %v1102 = vpop.permute.xlu0 %1101
        %1103 = vrot.lane.b32.xlu0 %v407, 20
        %v1104 = vpop.permute.xlu0 %1103
        %1105 = vrot.lane.b32.xlu0 %v408, 20
        %v1106 = vpop.permute.xlu0 %1105
        %1107 = vrot.lane.b32.xlu0 %v409, 20
        %v1108 = vpop.permute.xlu0 %1107
        %1109 = vrot.lane.b32.xlu0 %v410, 20
        %v1110 = vpop.permute.xlu0 %1109
        %1111 = vrot.lane.b32.xlu0 %v411, 20
        %v1112 = vpop.permute.xlu0 %1111
        %1113 = vrot.lane.b32.xlu0 %v412, 20
        %v1114 = vpop.permute.xlu0 %1113
        %1115 = vrot.lane.b32.xlu0 %v413, 20
        %v1116 = vpop.permute.xlu0 %1115
        %1117 = vrot.lane.b32.xlu0 %v414, 20
        %v1118 = vpop.permute.xlu0 %1117
        %1119 = vrot.lane.b32.xlu0 %v415, 20
        %v1120 = vpop.permute.xlu0 %1119
        %1185 = vrot.lane.b32.xlu0 %v417, 24
        %v1186 = vpop.permute.xlu0 %1185
        %1187 = vrot.lane.b32.xlu0 %v418, 24
        %v1188 = vpop.permute.xlu0 %1187
        %1189 = vrot.lane.b32.xlu0 %v419, 24
        %v1190 = vpop.permute.xlu0 %1189
        %1191 = vrot.lane.b32.xlu0 %v420, 24
        %v1192 = vpop.permute.xlu0 %1191
        %1193 = vrot.lane.b32.xlu0 %v421, 24
        %v1194 = vpop.permute.xlu0 %1193
        %1195 = vrot.lane.b32.xlu0 %v422, 24
        %v1196 = vpop.permute.xlu0 %1195
        %1197 = vrot.lane.b32.xlu0 %v423, 24
        %v1198 = vpop.permute.xlu0 %1197
        %1199 = vrot.lane.b32.xlu0 %v424, 24
        %v1200 = vpop.permute.xlu0 %1199
        %1201 = vrot.lane.b32.xlu0 %v425, 24
        %v1202 = vpop.permute.xlu0 %1201
        %1203 = vrot.lane.b32.xlu0 %v426, 24
        %v1204 = vpop.permute.xlu0 %1203
        %1205 = vrot.lane.b32.xlu0 %v427, 24
        %v1206 = vpop.permute.xlu0 %1205
        %1207 = vrot.lane.b32.xlu0 %v428, 24
        %v1208 = vpop.permute.xlu0 %1207
        %1209 = vrot.lane.b32.xlu0 %v429, 24
        %v1210 = vpop.permute.xlu0 %1209
        %1211 = vrot.lane.b32.xlu0 %v430, 24
        %v1212 = vpop.permute.xlu0 %1211
        %1213 = vrot.lane.b32.xlu0 %v431, 24
        %v1214 = vpop.permute.xlu0 %1213
        %1215 = vrot.lane.b32.xlu0 %v432, 24
        %v1216 = vpop.permute.xlu0 %1215
        %1217 = vrot.lane.b32.xlu0 %v433, 24
        %v1218 = vpop.permute.xlu0 %1217
        %1219 = vrot.lane.b32.xlu0 %v434, 24
        %v1220 = vpop.permute.xlu0 %1219
        %1221 = vrot.lane.b32.xlu0 %v435, 24
        %v1222 = vpop.permute.xlu0 %1221
        %1223 = vrot.lane.b32.xlu0 %v436, 24
        %v1224 = vpop.permute.xlu0 %1223
        %1225 = vrot.lane.b32.xlu0 %v437, 24
        %v1226 = vpop.permute.xlu0 %1225
        %1227 = vrot.lane.b32.xlu0 %v438, 24
        %v1228 = vpop.permute.xlu0 %1227
        %1229 = vrot.lane.b32.xlu0 %v439, 24
        %v1230 = vpop.permute.xlu0 %1229
        %1231 = vrot.lane.b32.xlu0 %v440, 24
        %v1232 = vpop.permute.xlu0 %1231
        %1233 = vrot.lane.b32.xlu0 %v441, 24
        %v1234 = vpop.permute.xlu0 %1233
        %1235 = vrot.lane.b32.xlu0 %v442, 24
        %v1236 = vpop.permute.xlu0 %1235
        %1237 = vrot.lane.b32.xlu0 %v443, 24
        %v1238 = vpop.permute.xlu0 %1237
        %1239 = vrot.lane.b32.xlu0 %v444, 24
        %v1240 = vpop.permute.xlu0 %1239
        %1241 = vrot.lane.b32.xlu0 %v445, 24
        %v1242 = vpop.permute.xlu0 %1241
        %1243 = vrot.lane.b32.xlu0 %v446, 24
        %v1244 = vpop.permute.xlu0 %1243
        %1245 = vrot.lane.b32.xlu0 %v447, 24
        %v1246 = vpop.permute.xlu0 %1245
        %1247 = vrot.lane.b32.xlu0 %v448, 24
        %v1248 = vpop.permute.xlu0 %1247
        %1313 = vrot.lane.b32.xlu0 %v449, 28
        %v1314 = vpop.permute.xlu0 %1313
        %1315 = vrot.lane.b32.xlu0 %v450, 28
        %v1316 = vpop.permute.xlu0 %1315
        %1317 = vrot.lane.b32.xlu0 %v451, 28
        %v1318 = vpop.permute.xlu0 %1317
        %1319 = vrot.lane.b32.xlu0 %v452, 28
        %v1320 = vpop.permute.xlu0 %1319
        %1321 = vrot.lane.b32.xlu0 %v453, 28
        %v1322 = vpop.permute.xlu0 %1321
        %1323 = vrot.lane.b32.xlu0 %v454, 28
        %v1324 = vpop.permute.xlu0 %1323
        %1325 = vrot.lane.b32.xlu0 %v455, 28
        %v1326 = vpop.permute.xlu0 %1325
        %1327 = vrot.lane.b32.xlu0 %v456, 28
        %v1328 = vpop.permute.xlu0 %1327
        %1329 = vrot.lane.b32.xlu0 %v457, 28
        %v1330 = vpop.permute.xlu0 %1329
        %1331 = vrot.lane.b32.xlu0 %v458, 28
        %v1332 = vpop.permute.xlu0 %1331
        %1333 = vrot.lane.b32.xlu0 %v459, 28
        %v1334 = vpop.permute.xlu0 %1333
        %1335 = vrot.lane.b32.xlu0 %v460, 28
        %v1336 = vpop.permute.xlu0 %1335
        %1337 = vrot.lane.b32.xlu0 %v461, 28
        %v1338 = vpop.permute.xlu0 %1337
        %1339 = vrot.lane.b32.xlu0 %v462, 28
        %v1340 = vpop.permute.xlu0 %1339
        %1341 = vrot.lane.b32.xlu0 %v463, 28
        %v1342 = vpop.permute.xlu0 %1341
        %1343 = vrot.lane.b32.xlu0 %v464, 28
        %v1344 = vpop.permute.xlu0 %1343
        %1345 = vrot.lane.b32.xlu0 %v465, 28
        %v1346 = vpop.permute.xlu0 %1345
        %1347 = vrot.lane.b32.xlu0 %v466, 28
        %v1348 = vpop.permute.xlu0 %1347
        %1349 = vrot.lane.b32.xlu0 %v467, 28
        %v1350 = vpop.permute.xlu0 %1349
        %1351 = vrot.lane.b32.xlu0 %v468, 28
        %v1352 = vpop.permute.xlu0 %1351
        %1353 = vrot.lane.b32.xlu0 %v469, 28
        %v1354 = vpop.permute.xlu0 %1353
        %1355 = vrot.lane.b32.xlu0 %v470, 28
        %v1356 = vpop.permute.xlu0 %1355
        %1357 = vrot.lane.b32.xlu0 %v471, 28
        %v1358 = vpop.permute.xlu0 %1357
        %1359 = vrot.lane.b32.xlu0 %v472, 28
        %v1360 = vpop.permute.xlu0 %1359
        %1361 = vrot.lane.b32.xlu0 %v473, 28
        %v1362 = vpop.permute.xlu0 %1361
        %1363 = vrot.lane.b32.xlu0 %v474, 28
        %v1364 = vpop.permute.xlu0 %1363
        %1365 = vrot.lane.b32.xlu0 %v475, 28
        %v1366 = vpop.permute.xlu0 %1365
        %1367 = vrot.lane.b32.xlu0 %v476, 28
        %v1368 = vpop.permute.xlu0 %1367
        %1369 = vrot.lane.b32.xlu0 %v477, 28
        %v1370 = vpop.permute.xlu0 %1369
        %1371 = vrot.lane.b32.xlu0 %v478, 28
        %v1372 = vpop.permute.xlu0 %1371
        %1373 = vrot.lane.b32.xlu0 %v479, 28
        %v1374 = vpop.permute.xlu0 %1373
        %1375 = vrot.lane.b32.xlu0 %v480, 28
        %v1376 = vpop.permute.xlu0 %1375
        %1441 = vrot.lane.b32.xlu0 %v481, 32
        %v1442 = vpop.permute.xlu0 %1441
        %1443 = vrot.lane.b32.xlu0 %v482, 32
        %v1444 = vpop.permute.xlu0 %1443
        %1445 = vrot.lane.b32.xlu0 %v483, 32
        %v1446 = vpop.permute.xlu0 %1445
        %1447 = vrot.lane.b32.xlu0 %v484, 32
        %v1448 = vpop.permute.xlu0 %1447
        %1449 = vrot.lane.b32.xlu0 %v485, 32
        %v1450 = vpop.permute.xlu0 %1449
        %1451 = vrot.lane.b32.xlu0 %v486, 32
        %v1452 = vpop.permute.xlu0 %1451
        %1453 = vrot.lane.b32.xlu0 %v487, 32
        %v1454 = vpop.permute.xlu0 %1453
        %1455 = vrot.lane.b32.xlu0 %v488, 32
        %v1456 = vpop.permute.xlu0 %1455
        %1457 = vrot.lane.b32.xlu0 %v489, 32
        %v1458 = vpop.permute.xlu0 %1457
        %1459 = vrot.lane.b32.xlu0 %v490, 32
        %v1460 = vpop.permute.xlu0 %1459
        %1461 = vrot.lane.b32.xlu0 %v491, 32
        %v1462 = vpop.permute.xlu0 %1461
        %1463 = vrot.lane.b32.xlu0 %v492, 32
        %v1464 = vpop.permute.xlu0 %1463
        %1465 = vrot.lane.b32.xlu0 %v493, 32
        %v1466 = vpop.permute.xlu0 %1465
        %1467 = vrot.lane.b32.xlu0 %v494, 32
        %v1468 = vpop.permute.xlu0 %1467
        %1469 = vrot.lane.b32.xlu0 %v495, 32
        %v1470 = vpop.permute.xlu0 %1469
        %1471 = vrot.lane.b32.xlu0 %v496, 32
        %v1472 = vpop.permute.xlu0 %1471
        %1473 = vrot.lane.b32.xlu0 %v497, 32
        %v1474 = vpop.permute.xlu0 %1473
        %1475 = vrot.lane.b32.xlu0 %v498, 32
        %v1476 = vpop.permute.xlu0 %1475
        %1477 = vrot.lane.b32.xlu0 %v499, 32
        %v1478 = vpop.permute.xlu0 %1477
        %1479 = vrot.lane.b32.xlu0 %v500, 32
        %v1480 = vpop.permute.xlu0 %1479
        %1481 = vrot.lane.b32.xlu0 %v501, 32
        %v1482 = vpop.permute.xlu0 %1481
        %1483 = vrot.lane.b32.xlu0 %v502, 32
        %v1484 = vpop.permute.xlu0 %1483
        %1485 = vrot.lane.b32.xlu0 %v503, 32
        %v1486 = vpop.permute.xlu0 %1485
        %1487 = vrot.lane.b32.xlu0 %v504, 32
        %v1488 = vpop.permute.xlu0 %1487
        %1489 = vrot.lane.b32.xlu0 %v505, 32
        %v1490 = vpop.permute.xlu0 %1489
        %1491 = vrot.lane.b32.xlu0 %v506, 32
        %v1492 = vpop.permute.xlu0 %1491
        %1493 = vrot.lane.b32.xlu0 %v507, 32
        %v1494 = vpop.permute.xlu0 %1493
        %1495 = vrot.lane.b32.xlu0 %v508, 32
        %v1496 = vpop.permute.xlu0 %1495
        %1497 = vrot.lane.b32.xlu0 %v509, 32
        %v1498 = vpop.permute.xlu0 %1497
        %1499 = vrot.lane.b32.xlu0 %v510, 32
        %v1500 = vpop.permute.xlu0 %1499
        %1501 = vrot.lane.b32.xlu0 %v511, 32
        %v1502 = vpop.permute.xlu0 %1501
        %1503 = vrot.lane.b32.xlu0 %v512, 32
        %v1504 = vpop.permute.xlu0 %1503
        %vm1537 = vcmask 31744
        %v1538 = vsel %vm1537, %v223, %v546
        %v1539 = vsel %vm1537, %v224, %v548
        %v1540 = vsel %vm1537, %v225, %v550
        %v1541 = vsel %vm1537, %v226, %v552
        %v1542 = vsel %vm1537, %v227, %v554
        %v1543 = vsel %vm1537, %v228, %v556
        %v1544 = vsel %vm1537, %v229, %v558
        %v1545 = vsel %vm1537, %v230, %v560
        %v1546 = vsel %vm1537, %v231, %v562
        %v1547 = vsel %vm1537, %v232, %v564
        %v1548 = vsel %vm1537, %v233, %v566
        %v1549 = vsel %vm1537, %v234, %v568
        %v1550 = vsel %vm1537, %v235, %v570
        %v1551 = vsel %vm1537, %v236, %v572
        %v1552 = vsel %vm1537, %v237, %v574
        %v1553 = vsel %vm1537, %v238, %v576
        %v1554 = vsel %vm1537, %v239, %v578
        %v1555 = vsel %vm1537, %v240, %v580
        %v1556 = vsel %vm1537, %v241, %v582
        %v1557 = vsel %vm1537, %v242, %v584
        %v1558 = vsel %vm1537, %v243, %v586
        %v1559 = vsel %vm1537, %v244, %v588
        %v1560 = vsel %vm1537, %v245, %v590
        %v1561 = vsel %vm1537, %v246, %v592
        %v1562 = vsel %vm1537, %v247, %v594
        %v1563 = vsel %vm1537, %v248, %v596
        %v1564 = vsel %vm1537, %v249, %v598
        %v1565 = vsel %vm1537, %v250, %v600
        %v1566 = vsel %vm1537, %v251, %v602
        %v1567 = vsel %vm1537, %v252, %v604
        %v1568 = vsel %vm1537, %v253, %v606
        %v1569 = vsel %vm1537, %v254, %v608
        %vm1570 = vcmask 64512
        %v1571 = vsel %vm1570, %v1538, %v674
        %v1572 = vsel %vm1570, %v1539, %v676
        %v1573 = vsel %vm1570, %v1540, %v678
        %v1574 = vsel %vm1570, %v1541, %v680
        %v1575 = vsel %vm1570, %v1542, %v682
        %v1576 = vsel %vm1570, %v1543, %v684
        %v1577 = vsel %vm1570, %v1544, %v686
        %v1578 = vsel %vm1570, %v1545, %v688
        %v1579 = vsel %vm1570, %v1546, %v690
        %v1580 = vsel %vm1570, %v1547, %v692
        %v1581 = vsel %vm1570, %v1548, %v694
        %v1582 = vsel %vm1570, %v1549, %v696
        %v1583 = vsel %vm1570, %v1550, %v698
        %v1584 = vsel %vm1570, %v1551, %v700
        %v1585 = vsel %vm1570, %v1552, %v702
        %v1586 = vsel %vm1570, %v1553, %v704
        %v1587 = vsel %vm1570, %v1554, %v706
        %v1588 = vsel %vm1570, %v1555, %v708
        %v1589 = vsel %vm1570, %v1556, %v710
        %v1590 = vsel %vm1570, %v1557, %v712
        %v1591 = vsel %vm1570, %v1558, %v714
        %v1592 = vsel %vm1570, %v1559, %v716
        %v1593 = vsel %vm1570, %v1560, %v718
        %v1594 = vsel %vm1570, %v1561, %v720
        %v1595 = vsel %vm1570, %v1562, %v722
        %v1596 = vsel %vm1570, %v1563, %v724
        %v1597 = vsel %vm1570, %v1564, %v726
        %v1598 = vsel %vm1570, %v1565, %v728
        %v1599 = vsel %vm1570, %v1566, %v730
        %v1600 = vsel %vm1570, %v1567, %v732
        %v1601 = vsel %vm1570, %v1568, %v734
        %v1602 = vsel %vm1570, %v1569, %v736
        %vm1603 = vcmask 97280
        %v1604 = vsel %vm1603, %v1571, %v802
        %v1605 = vsel %vm1603, %v1572, %v804
        %v1606 = vsel %vm1603, %v1573, %v806
        %v1607 = vsel %vm1603, %v1574, %v808
        %v1608 = vsel %vm1603, %v1575, %v810
        %v1609 = vsel %vm1603, %v1576, %v812
        %v1610 = vsel %vm1603, %v1577, %v814
        %v1611 = vsel %vm1603, %v1578, %v816
        %v1612 = vsel %vm1603, %v1579, %v818
        %v1613 = vsel %vm1603, %v1580, %v820
        %v1614 = vsel %vm1603, %v1581, %v822
        %v1615 = vsel %vm1603, %v1582, %v824
        %v1616 = vsel %vm1603, %v1583, %v826
        %v1617 = vsel %vm1603, %v1584, %v828
        %v1618 = vsel %vm1603, %v1585, %v830
        %v1619 = vsel %vm1603, %v1586, %v832
        %v1620 = vsel %vm1603, %v1587, %v834
        %v1621 = vsel %vm1603, %v1588, %v836
        %v1622 = vsel %vm1603, %v1589, %v838
        %v1623 = vsel %vm1603, %v1590, %v840
        %v1624 = vsel %vm1603, %v1591, %v842
        %v1625 = vsel %vm1603, %v1592, %v844
        %v1626 = vsel %vm1603, %v1593, %v846
        %v1627 = vsel %vm1603, %v1594, %v848
        %v1628 = vsel %vm1603, %v1595, %v850
        %v1629 = vsel %vm1603, %v1596, %v852
        %v1630 = vsel %vm1603, %v1597, %v854
        %v1631 = vsel %vm1603, %v1598, %v856
        %v1632 = vsel %vm1603, %v1599, %v858
        %v1633 = vsel %vm1603, %v1600, %v860
        %v1634 = vsel %vm1603, %v1601, %v862
        %v1635 = vsel %vm1603, %v1602, %v864
        %vm1636 = vcmask 130048
        %v1637 = vsel %vm1636, %v1604, %v930
        %v1638 = vsel %vm1636, %v1605, %v932
        %v1639 = vsel %vm1636, %v1606, %v934
        %v1640 = vsel %vm1636, %v1607, %v936
        %v1641 = vsel %vm1636, %v1608, %v938
        %v1642 = vsel %vm1636, %v1609, %v940
        %v1643 = vsel %vm1636, %v1610, %v942
        %v1644 = vsel %vm1636, %v1611, %v944
        %v1645 = vsel %vm1636, %v1612, %v946
        %v1646 = vsel %vm1636, %v1613, %v948
        %v1647 = vsel %vm1636, %v1614, %v950
        %v1648 = vsel %vm1636, %v1615, %v952
        %v1649 = vsel %vm1636, %v1616, %v954
        %v1650 = vsel %vm1636, %v1617, %v956
        %v1651 = vsel %vm1636, %v1618, %v958
        %v1652 = vsel %vm1636, %v1619, %v960
        %v1653 = vsel %vm1636, %v1620, %v962
        %v1654 = vsel %vm1636, %v1621, %v964
        %v1655 = vsel %vm1636, %v1622, %v966
        %v1656 = vsel %vm1636, %v1623, %v968
        %v1657 = vsel %vm1636, %v1624, %v970
        %v1658 = vsel %vm1636, %v1625, %v972
        %v1659 = vsel %vm1636, %v1626, %v974
        %v1660 = vsel %vm1636, %v1627, %v976
        %v1661 = vsel %vm1636, %v1628, %v978
        %v1662 = vsel %vm1636, %v1629, %v980
        %v1663 = vsel %vm1636, %v1630, %v982
        %v1664 = vsel %vm1636, %v1631, %v984
        %v1665 = vsel %vm1636, %v1632, %v986
        %v1666 = vsel %vm1636, %v1633, %v988
        %v1667 = vsel %vm1636, %v1634, %v990
        %v1668 = vsel %vm1636, %v1635, %v992
        %vm1669 = vcmask 162816
        %v1670 = vsel %vm1669, %v1637, %v1058
        %v1671 = vsel %vm1669, %v1638, %v1060
        %v1672 = vsel %vm1669, %v1639, %v1062
        %v1673 = vsel %vm1669, %v1640, %v1064
        %v1674 = vsel %vm1669, %v1641, %v1066
        %v1675 = vsel %vm1669, %v1642, %v1068
        %v1676 = vsel %vm1669, %v1643, %v1070
        %v1677 = vsel %vm1669, %v1644, %v1072
        %v1678 = vsel %vm1669, %v1645, %v1074
        %v1679 = vsel %vm1669, %v1646, %v1076
        %v1680 = vsel %vm1669, %v1647, %v1078
        %v1681 = vsel %vm1669, %v1648, %v1080
        %v1682 = vsel %vm1669, %v1649, %v1082
        %v1683 = vsel %vm1669, %v1650, %v1084
        %v1684 = vsel %vm1669, %v1651, %v1086
        %v1685 = vsel %vm1669, %v1652, %v1088
        %v1686 = vsel %vm1669, %v1653, %v1090
        %v1687 = vsel %vm1669, %v1654, %v1092
        %v1688 = vsel %vm1669, %v1655, %v1094
        %v1689 = vsel %vm1669, %v1656, %v1096
        %v1690 = vsel %vm1669, %v1657, %v1098
        %v1691 = vsel %vm1669, %v1658, %v1100
        %v1692 = vsel %vm1669, %v1659, %v1102
        %v1693 = vsel %vm1669, %v1660, %v1104
        %v1694 = vsel %vm1669, %v1661, %v1106
        %v1695 = vsel %vm1669, %v1662, %v1108
        %v1696 = vsel %vm1669, %v1663, %v1110
        %v1697 = vsel %vm1669, %v1664, %v1112
        %v1698 = vsel %vm1669, %v1665, %v1114
        %v1699 = vsel %vm1669, %v1666, %v1116
        %v1700 = vsel %vm1669, %v1667, %v1118
        %v1701 = vsel %vm1669, %v1668, %v1120
        %vm1702 = vcmask 195584
        %v1703 = vsel %vm1702, %v1670, %v1186
        %v1704 = vsel %vm1702, %v1671, %v1188
        %v1705 = vsel %vm1702, %v1672, %v1190
        %v1706 = vsel %vm1702, %v1673, %v1192
        %v1707 = vsel %vm1702, %v1674, %v1194
        %v1708 = vsel %vm1702, %v1675, %v1196
        %v1709 = vsel %vm1702, %v1676, %v1198
        %v1710 = vsel %vm1702, %v1677, %v1200
        %v1711 = vsel %vm1702, %v1678, %v1202
        %v1712 = vsel %vm1702, %v1679, %v1204
        %v1713 = vsel %vm1702, %v1680, %v1206
        %v1714 = vsel %vm1702, %v1681, %v1208
        %v1715 = vsel %vm1702, %v1682, %v1210
        %v1716 = vsel %vm1702, %v1683, %v1212
        %v1717 = vsel %vm1702, %v1684, %v1214
        %v1718 = vsel %vm1702, %v1685, %v1216
        %v1719 = vsel %vm1702, %v1686, %v1218
        %v1720 = vsel %vm1702, %v1687, %v1220
        %v1721 = vsel %vm1702, %v1688, %v1222
        %v1722 = vsel %vm1702, %v1689, %v1224
        %v1723 = vsel %vm1702, %v1690, %v1226
        %v1724 = vsel %vm1702, %v1691, %v1228
        %v1725 = vsel %vm1702, %v1692, %v1230
        %v1726 = vsel %vm1702, %v1693, %v1232
        %v1727 = vsel %vm1702, %v1694, %v1234
        %v1728 = vsel %vm1702, %v1695, %v1236
        %v1729 = vsel %vm1702, %v1696, %v1238
        %v1730 = vsel %vm1702, %v1697, %v1240
        %v1731 = vsel %vm1702, %v1698, %v1242
        %v1732 = vsel %vm1702, %v1699, %v1244
        %v1733 = vsel %vm1702, %v1700, %v1246
        %v1734 = vsel %vm1702, %v1701, %v1248
        %vm1735 = vcmask 228352
        %v1736 = vsel %vm1735, %v1703, %v1314
        %v1737 = vsel %vm1735, %v1704, %v1316
        %v1738 = vsel %vm1735, %v1705, %v1318
        %v1739 = vsel %vm1735, %v1706, %v1320
        %v1740 = vsel %vm1735, %v1707, %v1322
        %v1741 = vsel %vm1735, %v1708, %v1324
        %v1742 = vsel %vm1735, %v1709, %v1326
        %v1743 = vsel %vm1735, %v1710, %v1328
        %v1744 = vsel %vm1735, %v1711, %v1330
        %v1745 = vsel %vm1735, %v1712, %v1332
        %v1746 = vsel %vm1735, %v1713, %v1334
        %v1747 = vsel %vm1735, %v1714, %v1336
        %v1748 = vsel %vm1735, %v1715, %v1338
        %v1749 = vsel %vm1735, %v1716, %v1340
        %v1750 = vsel %vm1735, %v1717, %v1342
        %v1751 = vsel %vm1735, %v1718, %v1344
        %v1752 = vsel %vm1735, %v1719, %v1346
        %v1753 = vsel %vm1735, %v1720, %v1348
        %v1754 = vsel %vm1735, %v1721, %v1350
        %v1755 = vsel %vm1735, %v1722, %v1352
        %v1756 = vsel %vm1735, %v1723, %v1354
        %v1757 = vsel %vm1735, %v1724, %v1356
        %v1758 = vsel %vm1735, %v1725, %v1358
        %v1759 = vsel %vm1735, %v1726, %v1360
        %v1760 = vsel %vm1735, %v1727, %v1362
        %v1761 = vsel %vm1735, %v1728, %v1364
        %v1762 = vsel %vm1735, %v1729, %v1366
        %v1763 = vsel %vm1735, %v1730, %v1368
        %v1764 = vsel %vm1735, %v1731, %v1370
        %v1765 = vsel %vm1735, %v1732, %v1372
        %v1766 = vsel %vm1735, %v1733, %v1374
        %v1767 = vsel %vm1735, %v1734, %v1376
        %vm1768 = vcmask 261120
        %v1769 = vsel %vm1768, %v1736, %v1442
        %v1770 = vsel %vm1768, %v1737, %v1444
        %v1771 = vsel %vm1768, %v1738, %v1446
        %v1772 = vsel %vm1768, %v1739, %v1448
        %v1773 = vsel %vm1768, %v1740, %v1450
        %v1774 = vsel %vm1768, %v1741, %v1452
        %v1775 = vsel %vm1768, %v1742, %v1454
        %v1776 = vsel %vm1768, %v1743, %v1456
        %v1777 = vsel %vm1768, %v1744, %v1458
        %v1778 = vsel %vm1768, %v1745, %v1460
        %v1779 = vsel %vm1768, %v1746, %v1462
        %v1780 = vsel %vm1768, %v1747, %v1464
        %v1781 = vsel %vm1768, %v1748, %v1466
        %v1782 = vsel %vm1768, %v1749, %v1468
        %v1783 = vsel %vm1768, %v1750, %v1470
        %v1784 = vsel %vm1768, %v1751, %v1472
        %v1785 = vsel %vm1768, %v1752, %v1474
        %v1786 = vsel %vm1768, %v1753, %v1476
        %v1787 = vsel %vm1768, %v1754, %v1478
        %v1788 = vsel %vm1768, %v1755, %v1480
        %v1789 = vsel %vm1768, %v1756, %v1482
        %v1790 = vsel %vm1768, %v1757, %v1484
        %v1791 = vsel %vm1768, %v1758, %v1486
        %v1792 = vsel %vm1768, %v1759, %v1488
        %v1793 = vsel %vm1768, %v1760, %v1490
        %v1794 = vsel %vm1768, %v1761, %v1492
        %v1795 = vsel %vm1768, %v1762, %v1494
        %v1796 = vsel %vm1768, %v1763, %v1496
        %v1797 = vsel %vm1768, %v1764, %v1498
        %v1798 = vsel %vm1768, %v1765, %v1500
        %v1799 = vsel %vm1768, %v1766, %v1502
        %v1800 = vsel %vm1768, %v1767, %v1504
        %v1801 = vld [vmem:[%s1] sm:$0xff]
        %v1802 = vld [vmem:[%s1 + $0x8] sm:$0xff]
        %v1803 = vld [vmem:[%s1 + $0x10] sm:$0xff]
        %v1804 = vld [vmem:[%s1 + $0x18] sm:$0xff]
        %v1805 = vld [vmem:[%s1 + $0x20] sm:$0xf]
        %v1806 = vld [vmem:[%s2] sm:$0x1]
        %v1808 = vlaneseq
        %v1809 = vshrl.u32 %v1808, 7
        %v1810 = vsub.s32 0, %v1809
        %v1811 = vrot.slane %v1806, %v1810
        %vm1813 = vcmask 293888
        %v1815 = vsel %vm1813, %v1769, 0
        %v1818 = vsel %vm1813, %v1770, 0
        %v1821 = vsel %vm1813, %v1771, 0
        %v1824 = vsel %vm1813, %v1772, 0
        %v1827 = vsel %vm1813, %v1773, 0
        %v1830 = vsel %vm1813, %v1774, 0
        %v1833 = vsel %vm1813, %v1775, 0
        %v1836 = vsel %vm1813, %v1776, 0
        %v1839 = vsel %vm1813, %v1777, 0
        %v1842 = vsel %vm1813, %v1778, 0
        %v1845 = vsel %vm1813, %v1779, 0
        %v1848 = vsel %vm1813, %v1780, 0
        %v1851 = vsel %vm1813, %v1781, 0
        %v1854 = vsel %vm1813, %v1782, 0
        %v1857 = vsel %vm1813, %v1783, 0
        %v1860 = vsel %vm1813, %v1784, 0
        %v1863 = vsel %vm1813, %v1785, 0
        %v1866 = vsel %vm1813, %v1786, 0
        %v1869 = vsel %vm1813, %v1787, 0
        %v1872 = vsel %vm1813, %v1788, 0
        %v1875 = vsel %vm1813, %v1789, 0
        %v1878 = vsel %vm1813, %v1790, 0
        %v1881 = vsel %vm1813, %v1791, 0
        %v1884 = vsel %vm1813, %v1792, 0
        %v1887 = vsel %vm1813, %v1793, 0
        %v1890 = vsel %vm1813, %v1794, 0
        %v1893 = vsel %vm1813, %v1795, 0
        %v1896 = vsel %vm1813, %v1796, 0
        %v1899 = vsel %vm1813, %v1797, 0
        %v1902 = vsel %vm1813, %v1798, 0
        %v1905 = vsel %vm1813, %v1799, 0
        %v1908 = vsel %vm1813, %v1800, 0
        %vm1910 = vcmask 1043456
        %v1912 = vsel %vm1910, %v1805, 0
        %1914 = vmatprep.subr.mxu0 0.0
        %1915 = vmatpush1.msra.mxu0 0.0
        %1916 = vmatprep.subr.mxu0 0.0
        %1917 = vmatpush1.msra.mxu0 0.0
        %1918 = vmatprep.subr.mxu0 0.0
        %1919 = vmatpush1.msra.mxu0 0.0
        %1920 = vmatprep.subr.mxu0 0.0
        %1921 = vmatpush1.msra.mxu0 0.0
        %1922 = vmatprep.subr.mxu0 0.0
        %1923 = vmatpush1.msra.mxu0 0.0
        %1924 = vmatprep.subr.mxu0 0.0
        %1925 = vmatpush1.msra.mxu0 0.0
        %1926 = vmatprep.subr.mxu0 0.0
        %1927 = vmatpush1.msra.mxu0 0.0
        %1928 = vmatprep.subr.mxu0 0.0
        %1929 = vmatpush1.msra.mxu0 0.0
        %1930 = vmatprep.subr.mxu0 0.0
        %1931 = vmatpush1.msra.mxu0 0.0
        %1932 = vmatprep.subr.mxu0 0.0
        %1933 = vmatpush1.msra.mxu0 0.0
        %1934 = vmatprep.subr.mxu0 0.0
        %1935 = vmatpush1.msra.mxu0 0.0
        %1936 = vmatprep.subr.mxu0 0.0
        %1937 = vmatpush1.msra.mxu0 %v1912
        %1938 = vmatprep.subr.mxu0 0.0
        %1939 = vmatpush1.msra.mxu0 %v1804
        %1940 = vmatprep.subr.mxu0 0.0
        %1941 = vmatpush1.msra.mxu0 %v1803
        %1942 = vmatprep.subr.mxu0 0.0
        %1943 = vmatpush1.msra.mxu0 %v1802
        %1944 = vmatprep.subr.mxu0 0.0
        %1945 = vmatpush1.msra.mxu0 %v1801
        %1946 = vmatprep.subr.mxu0 0.0
        %1947 = vmatpush2.msra.mxu0 0.0
        %1948 = vmatprep.subr.mxu0 0.0
        %1949 = vmatpush2.msra.mxu0 0.0
        %1950 = vmatprep.subr.mxu0 0.0
        %1951 = vmatpush2.msra.mxu0 0.0
        %1952 = vmatprep.subr.mxu0 0.0
        %1953 = vmatpush2.msra.mxu0 0.0
        %1954 = vmatprep.subr.mxu0 0.0
        %1955 = vmatpush2.msra.mxu0 0.0
        %1956 = vmatprep.subr.mxu0 0.0
        %1957 = vmatpush2.msra.mxu0 0.0
        %1958 = vmatprep.subr.mxu0 0.0
        %1959 = vmatpush2.msra.mxu0 0.0
        %1960 = vmatprep.subr.mxu0 0.0
        %1961 = vmatpush2.msra.mxu0 0.0
        %1962 = vmatprep.subr.mxu0 0.0
        %1963 = vmatpush2.msra.mxu0 0.0
        %1964 = vmatprep.subr.mxu0 0.0
        %1965 = vmatpush2.msra.mxu0 0.0
        %1966 = vmatprep.subr.mxu0 0.0
        %1967 = vmatpush2.msra.mxu0 0.0
        %1968 = vmatprep.subr.mxu0 0.0
        %1969 = vmatpush2.msra.mxu0 0.0
        %1970 = vmatprep.subr.mxu0 0.0
        %1971 = vmatpush2.msra.mxu0 0.0
        %1972 = vmatprep.subr.mxu0 0.0
        %1973 = vmatpush2.msra.mxu0 0.0
        %1974 = vmatprep.subr.mxu0 0.0
        %1975 = vmatpush2.msra.mxu0 0.0
        %1976 = vmatprep.subr.mxu0 0.0
        %1977 = vmatpush2.msra.mxu0 0.0
        %1978 = vmatprep.mubr.f32.mxu0 0.0
        %1979 = vmatmul.mubr.f32.gmra.mxu0 %v1815
        %v1980 = vpop.f32.mrf.mxu0
        %v1981 = vadd.f32 %v1811, %v1980
        %v1982 = vpop.f32.mrf.mxu0
        %1983 = vmatprep.mubr.f32.mxu0 0.0
        %1984 = vmatmul.mubr.f32.gmra.mxu0 %v1818
        %v1985 = vpop.f32.mrf.mxu0
        %v1986 = vadd.f32 %v1811, %v1985
        %v1987 = vpop.f32.mrf.mxu0
        %1988 = vmatprep.mubr.f32.mxu0 0.0
        %1989 = vmatmul.mubr.f32.gmra.mxu0 %v1821
        %v1990 = vpop.f32.mrf.mxu0
        %v1991 = vadd.f32 %v1811, %v1990
        %v1992 = vpop.f32.mrf.mxu0
        %1993 = vmatprep.mubr.f32.mxu0 0.0
        %1994 = vmatmul.mubr.f32.gmra.mxu0 %v1824
        %v1995 = vpop.f32.mrf.mxu0
        %v1996 = vadd.f32 %v1811, %v1995
        %v1997 = vpop.f32.mrf.mxu0
        %1998 = vmatprep.mubr.f32.mxu0 0.0
        %1999 = vmatmul.mubr.f32.gmra.mxu0 %v1827
        %v2000 = vpop.f32.mrf.mxu0
        %v2001 = vadd.f32 %v1811, %v2000
        %v2002 = vpop.f32.mrf.mxu0
        %2003 = vmatprep.mubr.f32.mxu0 0.0
        %2004 = vmatmul.mubr.f32.gmra.mxu0 %v1830
        %v2005 = vpop.f32.mrf.mxu0
        %v2006 = vadd.f32 %v1811, %v2005
        %v2007 = vpop.f32.mrf.mxu0
        %2008 = vmatprep.mubr.f32.mxu0 0.0
        %2009 = vmatmul.mubr.f32.gmra.mxu0 %v1833
        %v2010 = vpop.f32.mrf.mxu0
        %v2011 = vadd.f32 %v1811, %v2010
        %v2012 = vpop.f32.mrf.mxu0
        %2013 = vmatprep.mubr.f32.mxu0 0.0
        %2014 = vmatmul.mubr.f32.gmra.mxu0 %v1836
        %v2015 = vpop.f32.mrf.mxu0
        %v2016 = vadd.f32 %v1811, %v2015
        %v2017 = vpop.f32.mrf.mxu0
        %2018 = vmatprep.mubr.f32.mxu0 0.0
        %2019 = vmatmul.mubr.f32.gmra.mxu0 %v1839
        %v2020 = vpop.f32.mrf.mxu0
        %v2021 = vadd.f32 %v1811, %v2020
        %v2022 = vpop.f32.mrf.mxu0
        %2023 = vmatprep.mubr.f32.mxu0 0.0
        %2024 = vmatmul.mubr.f32.gmra.mxu0 %v1842
        %v2025 = vpop.f32.mrf.mxu0
        %v2026 = vadd.f32 %v1811, %v2025
        %v2027 = vpop.f32.mrf.mxu0
        %2028 = vmatprep.mubr.f32.mxu0 0.0
        %2029 = vmatmul.mubr.f32.gmra.mxu0 %v1845
        %v2030 = vpop.f32.mrf.mxu0
        %v2031 = vadd.f32 %v1811, %v2030
        %v2032 = vpop.f32.mrf.mxu0
        %2033 = vmatprep.mubr.f32.mxu0 0.0
        %2034 = vmatmul.mubr.f32.gmra.mxu0 %v1848
        %v2035 = vpop.f32.mrf.mxu0
        %v2036 = vadd.f32 %v1811, %v2035
        %v2037 = vpop.f32.mrf.mxu0
        %2038 = vmatprep.mubr.f32.mxu0 0.0
        %2039 = vmatmul.mubr.f32.gmra.mxu0 %v1851
        %v2040 = vpop.f32.mrf.mxu0
        %v2041 = vadd.f32 %v1811, %v2040
        %v2042 = vpop.f32.mrf.mxu0
        %2043 = vmatprep.mubr.f32.mxu0 0.0
        %2044 = vmatmul.mubr.f32.gmra.mxu0 %v1854
        %v2045 = vpop.f32.mrf.mxu0
        %v2046 = vadd.f32 %v1811, %v2045
        %v2047 = vpop.f32.mrf.mxu0
        %2048 = vmatprep.mubr.f32.mxu0 0.0
        %2049 = vmatmul.mubr.f32.gmra.mxu0 %v1857
        %v2050 = vpop.f32.mrf.mxu0
        %v2051 = vadd.f32 %v1811, %v2050
        %v2052 = vpop.f32.mrf.mxu0
        %2053 = vmatprep.mubr.f32.mxu0 0.0
        %2054 = vmatmul.mubr.f32.gmra.mxu0 %v1860
        %v2055 = vpop.f32.mrf.mxu0
        %v2056 = vadd.f32 %v1811, %v2055
        %v2057 = vpop.f32.mrf.mxu0
        %2058 = vmatprep.mubr.f32.mxu0 0.0
        %2059 = vmatmul.mubr.f32.gmra.mxu0 %v1863
        %v2060 = vpop.f32.mrf.mxu0
        %v2061 = vadd.f32 %v1811, %v2060
        %v2062 = vpop.f32.mrf.mxu0
        %2063 = vmatprep.mubr.f32.mxu0 0.0
        %2064 = vmatmul.mubr.f32.gmra.mxu0 %v1866
        %v2065 = vpop.f32.mrf.mxu0
        %v2066 = vadd.f32 %v1811, %v2065
        %v2067 = vpop.f32.mrf.mxu0
        %2068 = vmatprep.mubr.f32.mxu0 0.0
        %2069 = vmatmul.mubr.f32.gmra.mxu0 %v1869
        %v2070 = vpop.f32.mrf.mxu0
        %v2071 = vadd.f32 %v1811, %v2070
        %v2072 = vpop.f32.mrf.mxu0
        %2073 = vmatprep.mubr.f32.mxu0 0.0
        %2074 = vmatmul.mubr.f32.gmra.mxu0 %v1872
        %v2075 = vpop.f32.mrf.mxu0
        %v2076 = vadd.f32 %v1811, %v2075
        %v2077 = vpop.f32.mrf.mxu0
        %2078 = vmatprep.mubr.f32.mxu0 0.0
        %2079 = vmatmul.mubr.f32.gmra.mxu0 %v1875
        %v2080 = vpop.f32.mrf.mxu0
        %v2081 = vadd.f32 %v1811, %v2080
        %v2082 = vpop.f32.mrf.mxu0
        %2083 = vmatprep.mubr.f32.mxu0 0.0
        %2084 = vmatmul.mubr.f32.gmra.mxu0 %v1878
        %v2085 = vpop.f32.mrf.mxu0
        %v2086 = vadd.f32 %v1811, %v2085
        %v2087 = vpop.f32.mrf.mxu0
        %2088 = vmatprep.mubr.f32.mxu0 0.0
        %2089 = vmatmul.mubr.f32.gmra.mxu0 %v1881
        %v2090 = vpop.f32.mrf.mxu0
        %v2091 = vadd.f32 %v1811, %v2090
        %v2092 = vpop.f32.mrf.mxu0
        %2093 = vmatprep.mubr.f32.mxu0 0.0
        %2094 = vmatmul.mubr.f32.gmra.mxu0 %v1884
        %v2095 = vpop.f32.mrf.mxu0
        %v2096 = vadd.f32 %v1811, %v2095
        %v2097 = vpop.f32.mrf.mxu0
        %2098 = vmatprep.mubr.f32.mxu0 0.0
        %2099 = vmatmul.mubr.f32.gmra.mxu0 %v1887
        %v2100 = vpop.f32.mrf.mxu0
        %v2101 = vadd.f32 %v1811, %v2100
        %v2102 = vpop.f32.mrf.mxu0
        %2103 = vmatprep.mubr.f32.mxu0 0.0
        %2104 = vmatmul.mubr.f32.gmra.mxu0 %v1890
        %v2105 = vpop.f32.mrf.mxu0
        %v2106 = vadd.f32 %v1811, %v2105
        %v2107 = vpop.f32.mrf.mxu0
        %2108 = vmatprep.mubr.f32.mxu0 0.0
        %2109 = vmatmul.mubr.f32.gmra.mxu0 %v1893
        %v2110 = vpop.f32.mrf.mxu0
        %v2111 = vadd.f32 %v1811, %v2110
        %v2112 = vpop.f32.mrf.mxu0
        %2113 = vmatprep.mubr.f32.mxu0 0.0
        %2114 = vmatmul.mubr.f32.gmra.mxu0 %v1896
        %v2115 = vpop.f32.mrf.mxu0
        %v2116 = vadd.f32 %v1811, %v2115
        %v2117 = vpop.f32.mrf.mxu0
        %2118 = vmatprep.mubr.f32.mxu0 0.0
        %2119 = vmatmul.mubr.f32.gmra.mxu0 %v1899
        %v2120 = vpop.f32.mrf.mxu0
        %v2121 = vadd.f32 %v1811, %v2120
        %v2122 = vpop.f32.mrf.mxu0
        %2123 = vmatprep.mubr.f32.mxu0 0.0
        %2124 = vmatmul.mubr.f32.gmra.mxu0 %v1902
        %v2125 = vpop.f32.mrf.mxu0
        %v2126 = vadd.f32 %v1811, %v2125
        %v2127 = vpop.f32.mrf.mxu0
        %2128 = vmatprep.mubr.f32.mxu0 0.0
        %2129 = vmatmul.mubr.f32.gmra.mxu0 %v1905
        %v2130 = vpop.f32.mrf.mxu0
        %v2131 = vadd.f32 %v1811, %v2130
        %v2132 = vpop.f32.mrf.mxu0
        %2133 = vmatprep.mubr.f32.mxu0 0.0
        %2134 = vmatmul.mubr.f32.gmra.mxu0 %v1908
        %v2135 = vpop.f32.mrf.mxu0
        %v2136 = vadd.f32 %v1811, %v2135
        %v2137 = vpop.f32.mrf.mxu0
        %2138 = vdwg.mxu0
        %v2139 = vmax.f32 %v1981, 0.0
        %v2140 = vmax.f32 %v1986, 0.0
        %v2141 = vmax.f32 %v1991, 0.0
        %v2142 = vmax.f32 %v1996, 0.0
        %v2143 = vmax.f32 %v2001, 0.0
        %v2144 = vmax.f32 %v2006, 0.0
        %v2145 = vmax.f32 %v2011, 0.0
        %v2146 = vmax.f32 %v2016, 0.0
        %v2147 = vmax.f32 %v2021, 0.0
        %v2148 = vmax.f32 %v2026, 0.0
        %v2149 = vmax.f32 %v2031, 0.0
        %v2150 = vmax.f32 %v2036, 0.0
        %v2151 = vmax.f32 %v2041, 0.0
        %v2152 = vmax.f32 %v2046, 0.0
        %v2153 = vmax.f32 %v2051, 0.0
        %v2154 = vmax.f32 %v2056, 0.0
        %v2155 = vmax.f32 %v2061, 0.0
        %v2156 = vmax.f32 %v2066, 0.0
        %v2157 = vmax.f32 %v2071, 0.0
        %v2158 = vmax.f32 %v2076, 0.0
        %v2159 = vmax.f32 %v2081, 0.0
        %v2160 = vmax.f32 %v2086, 0.0
        %v2161 = vmax.f32 %v2091, 0.0
        %v2162 = vmax.f32 %v2096, 0.0
        %v2163 = vmax.f32 %v2101, 0.0
        %v2164 = vmax.f32 %v2106, 0.0
        %v2165 = vmax.f32 %v2111, 0.0
        %v2166 = vmax.f32 %v2116, 0.0
        %v2167 = vmax.f32 %v2121, 0.0
        %v2168 = vmax.f32 %v2126, 0.0
        %v2169 = vmax.f32 %v2131, 0.0
        %v2170 = vmax.f32 %v2136, 0.0
        %vm2204 = vcmask 1040384
        %v2205 = vrot.slane 0.0, 7
        %v2206 = vsel %vm2204, %v2205, %v2205
        %v2207 = vrot.slane %v2139, 7
        %v2208 = vrot.slane %v2140, 7
        %v2209 = vsel %vm2204, %v2207, %v2208
        %v2210 = vrot.slane %v2141, 7
        %v2211 = vrot.slane %v2142, 7
        %v2212 = vsel %vm2204, %v2210, %v2211
        %v2213 = vrot.slane %v2143, 7
        %v2214 = vrot.slane %v2144, 7
        %v2215 = vsel %vm2204, %v2213, %v2214
        %v2216 = vrot.slane %v2145, 7
        %v2217 = vrot.slane %v2146, 7
        %v2218 = vsel %vm2204, %v2216, %v2217
        %v2219 = vrot.slane %v2147, 7
        %v2220 = vrot.slane %v2148, 7
        %v2221 = vsel %vm2204, %v2219, %v2220
        %v2222 = vrot.slane %v2149, 7
        %v2223 = vrot.slane %v2150, 7
        %v2224 = vsel %vm2204, %v2222, %v2223
        %v2225 = vrot.slane %v2151, 7
        %v2226 = vrot.slane %v2152, 7
        %v2227 = vsel %vm2204, %v2225, %v2226
        %v2228 = vrot.slane %v2153, 7
        %v2229 = vrot.slane %v2154, 7
        %v2230 = vsel %vm2204, %v2228, %v2229
        %v2231 = vrot.slane %v2155, 7
        %v2232 = vrot.slane %v2156, 7
        %v2233 = vsel %vm2204, %v2231, %v2232
        %v2234 = vrot.slane %v2157, 7
        %v2235 = vrot.slane %v2158, 7
        %v2236 = vsel %vm2204, %v2234, %v2235
        %v2237 = vrot.slane %v2159, 7
        %v2238 = vrot.slane %v2160, 7
        %v2239 = vsel %vm2204, %v2237, %v2238
        %v2240 = vrot.slane %v2161, 7
        %v2241 = vrot.slane %v2162, 7
        %v2242 = vsel %vm2204, %v2240, %v2241
        %v2243 = vrot.slane %v2163, 7
        %v2244 = vrot.slane %v2164, 7
        %v2245 = vsel %vm2204, %v2243, %v2244
        %v2246 = vrot.slane %v2165, 7
        %v2247 = vrot.slane %v2166, 7
        %v2248 = vsel %vm2204, %v2246, %v2247
        %v2249 = vrot.slane %v2167, 7
        %v2250 = vrot.slane %v2168, 7
        %v2251 = vsel %vm2204, %v2249, %v2250
        %v2252 = vrot.slane %v2169, 7
        %v2253 = vrot.slane %v2170, 7
        %v2254 = vsel %vm2204, %v2252, %v2253
        %v2304 = vsel %vm2204, 0.0, %v2205
        %v2305 = vsel %vm2204, 0.0, %v2207
        %v2306 = vsel %vm2204, 0.0, %v2210
        %v2307 = vsel %vm2204, 0.0, %v2213
        %v2308 = vsel %vm2204, 0.0, %v2216
        %v2309 = vsel %vm2204, 0.0, %v2219
        %v2310 = vsel %vm2204, 0.0, %v2222
        %v2311 = vsel %vm2204, 0.0, %v2225
        %v2312 = vsel %vm2204, 0.0, %v2228
        %v2313 = vsel %vm2204, 0.0, %v2231
        %v2314 = vsel %vm2204, 0.0, %v2234
        %v2315 = vsel %vm2204, 0.0, %v2237
        %v2316 = vsel %vm2204, 0.0, %v2240
        %v2317 = vsel %vm2204, 0.0, %v2243
        %v2318 = vsel %vm2204, 0.0, %v2246
        %v2319 = vsel %vm2204, 0.0, %v2249
        %v2320 = vsel %vm2204, 0.0, %v2252
        %v2321 = vsel %vm2204, %v2205, 0.0
        %v2322 = vsel %vm2204, %v2208, 0.0
        %v2323 = vsel %vm2204, %v2211, 0.0
        %v2324 = vsel %vm2204, %v2214, 0.0
        %v2325 = vsel %vm2204, %v2217, 0.0
        %v2326 = vsel %vm2204, %v2220, 0.0
        %v2327 = vsel %vm2204, %v2223, 0.0
        %v2328 = vsel %vm2204, %v2226, 0.0
        %v2329 = vsel %vm2204, %v2229, 0.0
        %v2330 = vsel %vm2204, %v2232, 0.0
        %v2331 = vsel %vm2204, %v2235, 0.0
        %v2332 = vsel %vm2204, %v2238, 0.0
        %v2333 = vsel %vm2204, %v2241, 0.0
        %v2334 = vsel %vm2204, %v2244, 0.0
        %v2335 = vsel %vm2204, %v2247, 0.0
        %v2336 = vsel %vm2204, %v2250, 0.0
        %v2337 = vsel %vm2204, %v2253, 0.0
        %vm2370 = vcmask 1046528
        %v2371 = vrot.slane %v2304, 1
        %v2372 = vrot.slane %v2206, 1
        %v2373 = vsel %vm2370, %v2371, %v2372
        %v2374 = vrot.slane %v2321, 1
        %v2375 = vsel %vm2370, %v2372, %v2374
        %v2376 = vrot.slane %v2305, 1
        %v2377 = vrot.slane %v2209, 1
        %v2378 = vsel %vm2370, %v2376, %v2377
        %v2379 = vrot.slane %v2322, 1
        %v2380 = vsel %vm2370, %v2377, %v2379
        %v2381 = vrot.slane %v2306, 1
        %v2382 = vrot.slane %v2212, 1
        %v2383 = vsel %vm2370, %v2381, %v2382
        %v2384 = vrot.slane %v2323, 1
        %v2385 = vsel %vm2370, %v2382, %v2384
        %v2386 = vrot.slane %v2307, 1
        %v2387 = vrot.slane %v2215, 1
        %v2388 = vsel %vm2370, %v2386, %v2387
        %v2389 = vrot.slane %v2324, 1
        %v2390 = vsel %vm2370, %v2387, %v2389
        %v2391 = vrot.slane %v2308, 1
        %v2392 = vrot.slane %v2218, 1
        %v2393 = vsel %vm2370, %v2391, %v2392
        %v2394 = vrot.slane %v2325, 1
        %v2395 = vsel %vm2370, %v2392, %v2394
        %v2396 = vrot.slane %v2309, 1
        %v2397 = vrot.slane %v2221, 1
        %v2398 = vsel %vm2370, %v2396, %v2397
        %v2399 = vrot.slane %v2326, 1
        %v2400 = vsel %vm2370, %v2397, %v2399
        %v2401 = vrot.slane %v2310, 1
        %v2402 = vrot.slane %v2224, 1
        %v2403 = vsel %vm2370, %v2401, %v2402
        %v2404 = vrot.slane %v2327, 1
        %v2405 = vsel %vm2370, %v2402, %v2404
        %v2406 = vrot.slane %v2311, 1
        %v2407 = vrot.slane %v2227, 1
        %v2408 = vsel %vm2370, %v2406, %v2407
        %v2409 = vrot.slane %v2328, 1
        %v2410 = vsel %vm2370, %v2407, %v2409
        %v2411 = vrot.slane %v2312, 1
        %v2412 = vrot.slane %v2230, 1
        %v2413 = vsel %vm2370, %v2411, %v2412
        %v2414 = vrot.slane %v2329, 1
        %v2415 = vsel %vm2370, %v2412, %v2414
        %v2416 = vrot.slane %v2313, 1
        %v2417 = vrot.slane %v2233, 1
        %v2418 = vsel %vm2370, %v2416, %v2417
        %v2419 = vrot.slane %v2330, 1
        %v2420 = vsel %vm2370, %v2417, %v2419
        %v2421 = vrot.slane %v2314, 1
        %v2422 = vrot.slane %v2236, 1
        %v2423 = vsel %vm2370, %v2421, %v2422
        %v2424 = vrot.slane %v2331, 1
        %v2425 = vsel %vm2370, %v2422, %v2424
        %v2426 = vrot.slane %v2315, 1
        %v2427 = vrot.slane %v2239, 1
        %v2428 = vsel %vm2370, %v2426, %v2427
        %v2429 = vrot.slane %v2332, 1
        %v2430 = vsel %vm2370, %v2427, %v2429
        %v2431 = vrot.slane %v2316, 1
        %v2432 = vrot.slane %v2242, 1
        %v2433 = vsel %vm2370, %v2431, %v2432
        %v2434 = vrot.slane %v2333, 1
        %v2435 = vsel %vm2370, %v2432, %v2434
        %v2436 = vrot.slane %v2317, 1
        %v2437 = vrot.slane %v2245, 1
        %v2438 = vsel %vm2370, %v2436, %v2437
        %v2439 = vrot.slane %v2334, 1
        %v2440 = vsel %vm2370, %v2437, %v2439
        %v2441 = vrot.slane %v2318, 1
        %v2442 = vrot.slane %v2248, 1
        %v2443 = vsel %vm2370, %v2441, %v2442
        %v2444 = vrot.slane %v2335, 1
        %v2445 = vsel %vm2370, %v2442, %v2444
        %v2446 = vrot.slane %v2319, 1
        %v2447 = vrot.slane %v2251, 1
        %v2448 = vsel %vm2370, %v2446, %v2447
        %v2449 = vrot.slane %v2336, 1
        %v2450 = vsel %vm2370, %v2447, %v2449
        %vm2451 = vcmask 1045504
        %v2452 = vrot.slane %v2304, 2
        %v2453 = vrot.slane %v2206, 2
        %v2454 = vsel %vm2451, %v2452, %v2453
        %v2455 = vrot.slane %v2321, 2
        %v2456 = vsel %vm2451, %v2453, %v2455
        %v2457 = vrot.slane %v2305, 2
        %v2458 = vrot.slane %v2209, 2
        %v2459 = vsel %vm2451, %v2457, %v2458
        %v2460 = vrot.slane %v2322, 2
        %v2461 = vsel %vm2451, %v2458, %v2460
        %v2462 = vrot.slane %v2306, 2
        %v2463 = vrot.slane %v2212, 2
        %v2464 = vsel %vm2451, %v2462, %v2463
        %v2465 = vrot.slane %v2323, 2
        %v2466 = vsel %vm2451, %v2463, %v2465
        %v2467 = vrot.slane %v2307, 2
        %v2468 = vrot.slane %v2215, 2
        %v2469 = vsel %vm2451, %v2467, %v2468
        %v2470 = vrot.slane %v2324, 2
        %v2471 = vsel %vm2451, %v2468, %v2470
        %v2472 = vrot.slane %v2308, 2
        %v2473 = vrot.slane %v2218, 2
        %v2474 = vsel %vm2451, %v2472, %v2473
        %v2475 = vrot.slane %v2325, 2
        %v2476 = vsel %vm2451, %v2473, %v2475
        %v2477 = vrot.slane %v2309, 2
        %v2478 = vrot.slane %v2221, 2
        %v2479 = vsel %vm2451, %v2477, %v2478
        %v2480 = vrot.slane %v2326, 2
        %v2481 = vsel %vm2451, %v2478, %v2480
        %v2482 = vrot.slane %v2310, 2
        %v2483 = vrot.slane %v2224, 2
        %v2484 = vsel %vm2451, %v2482, %v2483
        %v2485 = vrot.slane %v2327, 2
        %v2486 = vsel %vm2451, %v2483, %v2485
        %v2487 = vrot.slane %v2311, 2
        %v2488 = vrot.slane %v2227, 2
        %v2489 = vsel %vm2451, %v2487, %v2488
        %v2490 = vrot.slane %v2328, 2
        %v2491 = vsel %vm2451, %v2488, %v2490
        %v2492 = vrot.slane %v2312, 2
        %v2493 = vrot.slane %v2230, 2
        %v2494 = vsel %vm2451, %v2492, %v2493
        %v2495 = vrot.slane %v2329, 2
        %v2496 = vsel %vm2451, %v2493, %v2495
        %v2497 = vrot.slane %v2313, 2
        %v2498 = vrot.slane %v2233, 2
        %v2499 = vsel %vm2451, %v2497, %v2498
        %v2500 = vrot.slane %v2330, 2
        %v2501 = vsel %vm2451, %v2498, %v2500
        %v2502 = vrot.slane %v2314, 2
        %v2503 = vrot.slane %v2236, 2
        %v2504 = vsel %vm2451, %v2502, %v2503
        %v2505 = vrot.slane %v2331, 2
        %v2506 = vsel %vm2451, %v2503, %v2505
        %v2507 = vrot.slane %v2315, 2
        %v2508 = vrot.slane %v2239, 2
        %v2509 = vsel %vm2451, %v2507, %v2508
        %v2510 = vrot.slane %v2332, 2
        %v2511 = vsel %vm2451, %v2508, %v2510
        %v2512 = vrot.slane %v2316, 2
        %v2513 = vrot.slane %v2242, 2
        %v2514 = vsel %vm2451, %v2512, %v2513
        %v2515 = vrot.slane %v2333, 2
        %v2516 = vsel %vm2451, %v2513, %v2515
        %v2517 = vrot.slane %v2317, 2
        %v2518 = vrot.slane %v2245, 2
        %v2519 = vsel %vm2451, %v2517, %v2518
        %v2520 = vrot.slane %v2334, 2
        %v2521 = vsel %vm2451, %v2518, %v2520
        %v2522 = vrot.slane %v2318, 2
        %v2523 = vrot.slane %v2248, 2
        %v2524 = vsel %vm2451, %v2522, %v2523
        %v2525 = vrot.slane %v2335, 2
        %v2526 = vsel %vm2451, %v2523, %v2525
        %v2527 = vrot.slane %v2319, 2
        %v2528 = vrot.slane %v2251, 2
        %v2529 = vsel %vm2451, %v2527, %v2528
        %v2530 = vrot.slane %v2336, 2
        %v2531 = vsel %vm2451, %v2528, %v2530
        %v2534 = vrot.slane %v2320, 1
        %v2535 = vrot.slane %v2254, 1
        %v2536 = vsel %vm2370, %v2534, %v2535
        %v2537 = vrot.slane %v2337, 1
        %v2538 = vsel %vm2370, %v2535, %v2537
        %v2539 = vrot.slane %v2320, 2
        %v2540 = vrot.slane %v2254, 2
        %v2541 = vsel %vm2451, %v2539, %v2540
        %v2542 = vrot.slane %v2337, 2
        %v2543 = vsel %vm2451, %v2540, %v2542
        %2544 = vrot.lane.b32.xlu0 %v2373, 8
        %v2545 = vpop.permute.xlu0 %2544
        %2546 = vrot.lane.b32.xlu0 %v2375, 8
        %v2547 = vpop.permute.xlu0 %2546
        %2548 = vrot.lane.b32.xlu0 %v2378, 8
        %v2549 = vpop.permute.xlu0 %2548
        %2550 = vrot.lane.b32.xlu0 %v2380, 8
        %v2551 = vpop.permute.xlu0 %2550
        %2552 = vrot.lane.b32.xlu0 %v2383, 8
        %v2553 = vpop.permute.xlu0 %2552
        %2554 = vrot.lane.b32.xlu0 %v2385, 8
        %v2555 = vpop.permute.xlu0 %2554
        %2556 = vrot.lane.b32.xlu0 %v2388, 8
        %v2557 = vpop.permute.xlu0 %2556
        %2558 = vrot.lane.b32.xlu0 %v2390, 8
        %v2559 = vpop.permute.xlu0 %2558
        %2560 = vrot.lane.b32.xlu0 %v2393, 8
        %v2561 = vpop.permute.xlu0 %2560
        %2562 = vrot.lane.b32.xlu0 %v2395, 8
        %v2563 = vpop.permute.xlu0 %2562
        %2564 = vrot.lane.b32.xlu0 %v2398, 8
        %v2565 = vpop.permute.xlu0 %2564
        %2566 = vrot.lane.b32.xlu0 %v2400, 8
        %v2567 = vpop.permute.xlu0 %2566
        %2568 = vrot.lane.b32.xlu0 %v2403, 8
        %v2569 = vpop.permute.xlu0 %2568
        %2570 = vrot.lane.b32.xlu0 %v2405, 8
        %v2571 = vpop.permute.xlu0 %2570
        %2572 = vrot.lane.b32.xlu0 %v2408, 8
        %v2573 = vpop.permute.xlu0 %2572
        %2574 = vrot.lane.b32.xlu0 %v2410, 8
        %v2575 = vpop.permute.xlu0 %2574
        %2576 = vrot.lane.b32.xlu0 %v2413, 8
        %v2577 = vpop.permute.xlu0 %2576
        %2578 = vrot.lane.b32.xlu0 %v2415, 8
        %v2579 = vpop.permute.xlu0 %2578
        %2580 = vrot.lane.b32.xlu0 %v2418, 8
        %v2581 = vpop.permute.xlu0 %2580
        %2582 = vrot.lane.b32.xlu0 %v2420, 8
        %v2583 = vpop.permute.xlu0 %2582
        %2584 = vrot.lane.b32.xlu0 %v2423, 8
        %v2585 = vpop.permute.xlu0 %2584
        %2586 = vrot.lane.b32.xlu0 %v2425, 8
        %v2587 = vpop.permute.xlu0 %2586
        %2588 = vrot.lane.b32.xlu0 %v2428, 8
        %v2589 = vpop.permute.xlu0 %2588
        %2590 = vrot.lane.b32.xlu0 %v2430, 8
        %v2591 = vpop.permute.xlu0 %2590
        %2592 = vrot.lane.b32.xlu0 %v2433, 8
        %v2593 = vpop.permute.xlu0 %2592
        %2594 = vrot.lane.b32.xlu0 %v2435, 8
        %v2595 = vpop.permute.xlu0 %2594
        %2596 = vrot.lane.b32.xlu0 %v2438, 8
        %v2597 = vpop.permute.xlu0 %2596
        %2598 = vrot.lane.b32.xlu0 %v2440, 8
        %v2599 = vpop.permute.xlu0 %2598
        %2600 = vrot.lane.b32.xlu0 %v2443, 8
        %v2601 = vpop.permute.xlu0 %2600
        %2602 = vrot.lane.b32.xlu0 %v2445, 8
        %v2603 = vpop.permute.xlu0 %2602
        %2604 = vrot.lane.b32.xlu0 %v2448, 8
        %v2605 = vpop.permute.xlu0 %2604
        %2606 = vrot.lane.b32.xlu0 %v2450, 8
        %v2607 = vpop.permute.xlu0 %2606
        %2640 = vrot.lane.b32.xlu0 %v2454, 16
        %v2641 = vpop.permute.xlu0 %2640
        %2642 = vrot.lane.b32.xlu0 %v2456, 16
        %v2643 = vpop.permute.xlu0 %2642
        %2644 = vrot.lane.b32.xlu0 %v2459, 16
        %v2645 = vpop.permute.xlu0 %2644
        %2646 = vrot.lane.b32.xlu0 %v2461, 16
        %v2647 = vpop.permute.xlu0 %2646
        %2648 = vrot.lane.b32.xlu0 %v2464, 16
        %v2649 = vpop.permute.xlu0 %2648
        %2650 = vrot.lane.b32.xlu0 %v2466, 16
        %v2651 = vpop.permute.xlu0 %2650
        %2652 = vrot.lane.b32.xlu0 %v2469, 16
        %v2653 = vpop.permute.xlu0 %2652
        %2654 = vrot.lane.b32.xlu0 %v2471, 16
        %v2655 = vpop.permute.xlu0 %2654
        %2656 = vrot.lane.b32.xlu0 %v2474, 16
        %v2657 = vpop.permute.xlu0 %2656
        %2658 = vrot.lane.b32.xlu0 %v2476, 16
        %v2659 = vpop.permute.xlu0 %2658
        %2660 = vrot.lane.b32.xlu0 %v2479, 16
        %v2661 = vpop.permute.xlu0 %2660
        %2662 = vrot.lane.b32.xlu0 %v2481, 16
        %v2663 = vpop.permute.xlu0 %2662
        %2664 = vrot.lane.b32.xlu0 %v2484, 16
        %v2665 = vpop.permute.xlu0 %2664
        %2666 = vrot.lane.b32.xlu0 %v2486, 16
        %v2667 = vpop.permute.xlu0 %2666
        %2668 = vrot.lane.b32.xlu0 %v2489, 16
        %v2669 = vpop.permute.xlu0 %2668
        %2670 = vrot.lane.b32.xlu0 %v2491, 16
        %v2671 = vpop.permute.xlu0 %2670
        %2672 = vrot.lane.b32.xlu0 %v2494, 16
        %v2673 = vpop.permute.xlu0 %2672
        %2674 = vrot.lane.b32.xlu0 %v2496, 16
        %v2675 = vpop.permute.xlu0 %2674
        %2676 = vrot.lane.b32.xlu0 %v2499, 16
        %v2677 = vpop.permute.xlu0 %2676
        %2678 = vrot.lane.b32.xlu0 %v2501, 16
        %v2679 = vpop.permute.xlu0 %2678
        %2680 = vrot.lane.b32.xlu0 %v2504, 16
        %v2681 = vpop.permute.xlu0 %2680
        %2682 = vrot.lane.b32.xlu0 %v2506, 16
        %v2683 = vpop.permute.xlu0 %2682
        %2684 = vrot.lane.b32.xlu0 %v2509, 16
        %v2685 = vpop.permute.xlu0 %2684
        %2686 = vrot.lane.b32.xlu0 %v2511, 16
        %v2687 = vpop.permute.xlu0 %2686
        %2688 = vrot.lane.b32.xlu0 %v2514, 16
        %v2689 = vpop.permute.xlu0 %2688
        %2690 = vrot.lane.b32.xlu0 %v2516, 16
        %v2691 = vpop.permute.xlu0 %2690
        %2692 = vrot.lane.b32.xlu0 %v2519, 16
        %v2693 = vpop.permute.xlu0 %2692
        %2694 = vrot.lane.b32.xlu0 %v2521, 16
        %v2695 = vpop.permute.xlu0 %2694
        %2696 = vrot.lane.b32.xlu0 %v2524, 16
        %v2697 = vpop.permute.xlu0 %2696
        %2698 = vrot.lane.b32.xlu0 %v2526, 16
        %v2699 = vpop.permute.xlu0 %2698
        %2700 = vrot.lane.b32.xlu0 %v2529, 16
        %v2701 = vpop.permute.xlu0 %2700
        %2702 = vrot.lane.b32.xlu0 %v2531, 16
        %v2703 = vpop.permute.xlu0 %2702
        %2736 = vrot.lane.b32.xlu0 %v2305, 24
        %v2737 = vpop.permute.xlu0 %2736
        %2738 = vrot.lane.b32.xlu0 %v2209, 24
        %v2739 = vpop.permute.xlu0 %2738
        %2740 = vrot.lane.b32.xlu0 %v2306, 24
        %v2741 = vpop.permute.xlu0 %2740
        %2742 = vrot.lane.b32.xlu0 %v2212, 24
        %v2743 = vpop.permute.xlu0 %2742
        %2744 = vrot.lane.b32.xlu0 %v2307, 24
        %v2745 = vpop.permute.xlu0 %2744
        %2746 = vrot.lane.b32.xlu0 %v2215, 24
        %v2747 = vpop.permute.xlu0 %2746
        %2748 = vrot.lane.b32.xlu0 %v2308, 24
        %v2749 = vpop.permute.xlu0 %2748
        %2750 = vrot.lane.b32.xlu0 %v2218, 24
        %v2751 = vpop.permute.xlu0 %2750
        %2752 = vrot.lane.b32.xlu0 %v2309, 24
        %v2753 = vpop.permute.xlu0 %2752
        %2754 = vrot.lane.b32.xlu0 %v2221, 24
        %v2755 = vpop.permute.xlu0 %2754
        %2756 = vrot.lane.b32.xlu0 %v2310, 24
        %v2757 = vpop.permute.xlu0 %2756
        %2758 = vrot.lane.b32.xlu0 %v2224, 24
        %v2759 = vpop.permute.xlu0 %2758
        %2760 = vrot.lane.b32.xlu0 %v2311, 24
        %v2761 = vpop.permute.xlu0 %2760
        %2762 = vrot.lane.b32.xlu0 %v2227, 24
        %v2763 = vpop.permute.xlu0 %2762
        %2764 = vrot.lane.b32.xlu0 %v2312, 24
        %v2765 = vpop.permute.xlu0 %2764
        %2766 = vrot.lane.b32.xlu0 %v2230, 24
        %v2767 = vpop.permute.xlu0 %2766
        %2768 = vrot.lane.b32.xlu0 %v2313, 24
        %v2769 = vpop.permute.xlu0 %2768
        %2770 = vrot.lane.b32.xlu0 %v2233, 24
        %v2771 = vpop.permute.xlu0 %2770
        %2772 = vrot.lane.b32.xlu0 %v2314, 24
        %v2773 = vpop.permute.xlu0 %2772
        %2774 = vrot.lane.b32.xlu0 %v2236, 24
        %v2775 = vpop.permute.xlu0 %2774
        %2776 = vrot.lane.b32.xlu0 %v2315, 24
        %v2777 = vpop.permute.xlu0 %2776
        %2778 = vrot.lane.b32.xlu0 %v2239, 24
        %v2779 = vpop.permute.xlu0 %2778
        %2780 = vrot.lane.b32.xlu0 %v2316, 24
        %v2781 = vpop.permute.xlu0 %2780
        %2782 = vrot.lane.b32.xlu0 %v2242, 24
        %v2783 = vpop.permute.xlu0 %2782
        %2784 = vrot.lane.b32.xlu0 %v2317, 24
        %v2785 = vpop.permute.xlu0 %2784
        %2786 = vrot.lane.b32.xlu0 %v2245, 24
        %v2787 = vpop.permute.xlu0 %2786
        %2788 = vrot.lane.b32.xlu0 %v2318, 24
        %v2789 = vpop.permute.xlu0 %2788
        %2790 = vrot.lane.b32.xlu0 %v2248, 24
        %v2791 = vpop.permute.xlu0 %2790
        %2792 = vrot.lane.b32.xlu0 %v2319, 24
        %v2793 = vpop.permute.xlu0 %2792
        %2794 = vrot.lane.b32.xlu0 %v2251, 24
        %v2795 = vpop.permute.xlu0 %2794
        %2796 = vrot.lane.b32.xlu0 %v2320, 24
        %v2797 = vpop.permute.xlu0 %2796
        %2798 = vrot.lane.b32.xlu0 %v2254, 24
        %v2799 = vpop.permute.xlu0 %2798
        %2832 = vrot.lane.b32.xlu0 %v2378, 32
        %v2833 = vpop.permute.xlu0 %2832
        %2834 = vrot.lane.b32.xlu0 %v2380, 32
        %v2835 = vpop.permute.xlu0 %2834
        %2836 = vrot.lane.b32.xlu0 %v2383, 32
        %v2837 = vpop.permute.xlu0 %2836
        %2838 = vrot.lane.b32.xlu0 %v2385, 32
        %v2839 = vpop.permute.xlu0 %2838
        %2840 = vrot.lane.b32.xlu0 %v2388, 32
        %v2841 = vpop.permute.xlu0 %2840
        %2842 = vrot.lane.b32.xlu0 %v2390, 32
        %v2843 = vpop.permute.xlu0 %2842
        %2844 = vrot.lane.b32.xlu0 %v2393, 32
        %v2845 = vpop.permute.xlu0 %2844
        %2846 = vrot.lane.b32.xlu0 %v2395, 32
        %v2847 = vpop.permute.xlu0 %2846
        %2848 = vrot.lane.b32.xlu0 %v2398, 32
        %v2849 = vpop.permute.xlu0 %2848
        %2850 = vrot.lane.b32.xlu0 %v2400, 32
        %v2851 = vpop.permute.xlu0 %2850
        %2852 = vrot.lane.b32.xlu0 %v2403, 32
        %v2853 = vpop.permute.xlu0 %2852
        %2854 = vrot.lane.b32.xlu0 %v2405, 32
        %v2855 = vpop.permute.xlu0 %2854
        %2856 = vrot.lane.b32.xlu0 %v2408, 32
        %v2857 = vpop.permute.xlu0 %2856
        %2858 = vrot.lane.b32.xlu0 %v2410, 32
        %v2859 = vpop.permute.xlu0 %2858
        %2860 = vrot.lane.b32.xlu0 %v2413, 32
        %v2861 = vpop.permute.xlu0 %2860
        %2862 = vrot.lane.b32.xlu0 %v2415, 32
        %v2863 = vpop.permute.xlu0 %2862
        %2864 = vrot.lane.b32.xlu0 %v2418, 32
        %v2865 = vpop.permute.xlu0 %2864
        %2866 = vrot.lane.b32.xlu0 %v2420, 32
        %v2867 = vpop.permute.xlu0 %2866
        %2868 = vrot.lane.b32.xlu0 %v2423, 32
        %v2869 = vpop.permute.xlu0 %2868
        %2870 = vrot.lane.b32.xlu0 %v2425, 32
        %v2871 = vpop.permute.xlu0 %2870
        %2872 = vrot.lane.b32.xlu0 %v2428, 32
        %v2873 = vpop.permute.xlu0 %2872
        %2874 = vrot.lane.b32.xlu0 %v2430, 32
        %v2875 = vpop.permute.xlu0 %2874
        %2876 = vrot.lane.b32.xlu0 %v2433, 32
        %v2877 = vpop.permute.xlu0 %2876
        %2878 = vrot.lane.b32.xlu0 %v2435, 32
        %v2879 = vpop.permute.xlu0 %2878
        %2880 = vrot.lane.b32.xlu0 %v2438, 32
        %v2881 = vpop.permute.xlu0 %2880
        %2882 = vrot.lane.b32.xlu0 %v2440, 32
        %v2883 = vpop.permute.xlu0 %2882
        %2884 = vrot.lane.b32.xlu0 %v2443, 32
        %v2885 = vpop.permute.xlu0 %2884
        %2886 = vrot.lane.b32.xlu0 %v2445, 32
        %v2887 = vpop.permute.xlu0 %2886
        %2888 = vrot.lane.b32.xlu0 %v2448, 32
        %v2889 = vpop.permute.xlu0 %2888
        %2890 = vrot.lane.b32.xlu0 %v2450, 32
        %v2891 = vpop.permute.xlu0 %2890
        %2892 = vrot.lane.b32.xlu0 %v2536, 32
        %v2893 = vpop.permute.xlu0 %2892
        %2894 = vrot.lane.b32.xlu0 %v2538, 32
        %v2895 = vpop.permute.xlu0 %2894
        %2928 = vrot.lane.b32.xlu0 %v2459, 40
        %v2929 = vpop.permute.xlu0 %2928
        %2930 = vrot.lane.b32.xlu0 %v2461, 40
        %v2931 = vpop.permute.xlu0 %2930
        %2932 = vrot.lane.b32.xlu0 %v2464, 40
        %v2933 = vpop.permute.xlu0 %2932
        %2934 = vrot.lane.b32.xlu0 %v2466, 40
        %v2935 = vpop.permute.xlu0 %2934
        %2936 = vrot.lane.b32.xlu0 %v2469, 40
        %v2937 = vpop.permute.xlu0 %2936
        %2938 = vrot.lane.b32.xlu0 %v2471, 40
        %v2939 = vpop.permute.xlu0 %2938
        %2940 = vrot.lane.b32.xlu0 %v2474, 40
        %v2941 = vpop.permute.xlu0 %2940
        %2942 = vrot.lane.b32.xlu0 %v2476, 40
        %v2943 = vpop.permute.xlu0 %2942
        %2944 = vrot.lane.b32.xlu0 %v2479, 40
        %v2945 = vpop.permute.xlu0 %2944
        %2946 = vrot.lane.b32.xlu0 %v2481, 40
        %v2947 = vpop.permute.xlu0 %2946
        %2948 = vrot.lane.b32.xlu0 %v2484, 40
        %v2949 = vpop.permute.xlu0 %2948
        %2950 = vrot.lane.b32.xlu0 %v2486, 40
        %v2951 = vpop.permute.xlu0 %2950
        %2952 = vrot.lane.b32.xlu0 %v2489, 40
        %v2953 = vpop.permute.xlu0 %2952
        %2954 = vrot.lane.b32.xlu0 %v2491, 40
        %v2955 = vpop.permute.xlu0 %2954
        %2956 = vrot.lane.b32.xlu0 %v2494, 40
        %v2957 = vpop.permute.xlu0 %2956
        %2958 = vrot.lane.b32.xlu0 %v2496, 40
        %v2959 = vpop.permute.xlu0 %2958
        %2960 = vrot.lane.b32.xlu0 %v2499, 40
        %v2961 = vpop.permute.xlu0 %2960
        %2962 = vrot.lane.b32.xlu0 %v2501, 40
        %v2963 = vpop.permute.xlu0 %2962
        %2964 = vrot.lane.b32.xlu0 %v2504, 40
        %v2965 = vpop.permute.xlu0 %2964
        %2966 = vrot.lane.b32.xlu0 %v2506, 40
        %v2967 = vpop.permute.xlu0 %2966
        %2968 = vrot.lane.b32.xlu0 %v2509, 40
        %v2969 = vpop.permute.xlu0 %2968
        %2970 = vrot.lane.b32.xlu0 %v2511, 40
        %v2971 = vpop.permute.xlu0 %2970
        %2972 = vrot.lane.b32.xlu0 %v2514, 40
        %v2973 = vpop.permute.xlu0 %2972
        %2974 = vrot.lane.b32.xlu0 %v2516, 40
        %v2975 = vpop.permute.xlu0 %2974
        %2976 = vrot.lane.b32.xlu0 %v2519, 40
        %v2977 = vpop.permute.xlu0 %2976
        %2978 = vrot.lane.b32.xlu0 %v2521, 40
        %v2979 = vpop.permute.xlu0 %2978
        %2980 = vrot.lane.b32.xlu0 %v2524, 40
        %v2981 = vpop.permute.xlu0 %2980
        %2982 = vrot.lane.b32.xlu0 %v2526, 40
        %v2983 = vpop.permute.xlu0 %2982
        %2984 = vrot.lane.b32.xlu0 %v2529, 40
        %v2985 = vpop.permute.xlu0 %2984
        %2986 = vrot.lane.b32.xlu0 %v2531, 40
        %v2987 = vpop.permute.xlu0 %2986
        %2988 = vrot.lane.b32.xlu0 %v2541, 40
        %v2989 = vpop.permute.xlu0 %2988
        %2990 = vrot.lane.b32.xlu0 %v2543, 40
        %v2991 = vpop.permute.xlu0 %2990
        %3024 = vrot.lane.b32.xlu0 %v2306, 48
        %v3025 = vpop.permute.xlu0 %3024
        %3026 = vrot.lane.b32.xlu0 %v2212, 48
        %v3027 = vpop.permute.xlu0 %3026
        %3028 = vrot.lane.b32.xlu0 %v2307, 48
        %v3029 = vpop.permute.xlu0 %3028
        %3030 = vrot.lane.b32.xlu0 %v2215, 48
        %v3031 = vpop.permute.xlu0 %3030
        %3032 = vrot.lane.b32.xlu0 %v2308, 48
        %v3033 = vpop.permute.xlu0 %3032
        %3034 = vrot.lane.b32.xlu0 %v2218, 48
        %v3035 = vpop.permute.xlu0 %3034
        %3036 = vrot.lane.b32.xlu0 %v2309, 48
        %v3037 = vpop.permute.xlu0 %3036
        %3038 = vrot.lane.b32.xlu0 %v2221, 48
        %v3039 = vpop.permute.xlu0 %3038
        %3040 = vrot.lane.b32.xlu0 %v2310, 48
        %v3041 = vpop.permute.xlu0 %3040
        %3042 = vrot.lane.b32.xlu0 %v2224, 48
        %v3043 = vpop.permute.xlu0 %3042
        %3044 = vrot.lane.b32.xlu0 %v2311, 48
        %v3045 = vpop.permute.xlu0 %3044
        %3046 = vrot.lane.b32.xlu0 %v2227, 48
        %v3047 = vpop.permute.xlu0 %3046
        %3048 = vrot.lane.b32.xlu0 %v2312, 48
        %v3049 = vpop.permute.xlu0 %3048
        %3050 = vrot.lane.b32.xlu0 %v2230, 48
        %v3051 = vpop.permute.xlu0 %3050
        %3052 = vrot.lane.b32.xlu0 %v2313, 48
        %v3053 = vpop.permute.xlu0 %3052
        %3054 = vrot.lane.b32.xlu0 %v2233, 48
        %v3055 = vpop.permute.xlu0 %3054
        %3056 = vrot.lane.b32.xlu0 %v2314, 48
        %v3057 = vpop.permute.xlu0 %3056
        %3058 = vrot.lane.b32.xlu0 %v2236, 48
        %v3059 = vpop.permute.xlu0 %3058
        %3060 = vrot.lane.b32.xlu0 %v2315, 48
        %v3061 = vpop.permute.xlu0 %3060
        %3062 = vrot.lane.b32.xlu0 %v2239, 48
        %v3063 = vpop.permute.xlu0 %3062
        %3064 = vrot.lane.b32.xlu0 %v2316, 48
        %v3065 = vpop.permute.xlu0 %3064
        %3066 = vrot.lane.b32.xlu0 %v2242, 48
        %v3067 = vpop.permute.xlu0 %3066
        %3068 = vrot.lane.b32.xlu0 %v2317, 48
        %v3069 = vpop.permute.xlu0 %3068
        %3070 = vrot.lane.b32.xlu0 %v2245, 48
        %v3071 = vpop.permute.xlu0 %3070
        %3072 = vrot.lane.b32.xlu0 %v2318, 48
        %v3073 = vpop.permute.xlu0 %3072
        %3074 = vrot.lane.b32.xlu0 %v2248, 48
        %v3075 = vpop.permute.xlu0 %3074
        %3076 = vrot.lane.b32.xlu0 %v2319, 48
        %v3077 = vpop.permute.xlu0 %3076
        %3078 = vrot.lane.b32.xlu0 %v2251, 48
        %v3079 = vpop.permute.xlu0 %3078
        %3080 = vrot.lane.b32.xlu0 %v2320, 48
        %v3081 = vpop.permute.xlu0 %3080
        %3082 = vrot.lane.b32.xlu0 %v2254, 48
        %v3083 = vpop.permute.xlu0 %3082
        %3084 = vrot.lane.b32.xlu0 %v2304, 48
        %v3085 = vpop.permute.xlu0 %3084
        %3086 = vrot.lane.b32.xlu0 %v2206, 48
        %v3087 = vpop.permute.xlu0 %3086
        %3120 = vrot.lane.b32.xlu0 %v2383, 56
        %v3121 = vpop.permute.xlu0 %3120
        %3122 = vrot.lane.b32.xlu0 %v2385, 56
        %v3123 = vpop.permute.xlu0 %3122
        %3124 = vrot.lane.b32.xlu0 %v2388, 56
        %v3125 = vpop.permute.xlu0 %3124
        %3126 = vrot.lane.b32.xlu0 %v2390, 56
        %v3127 = vpop.permute.xlu0 %3126
        %3128 = vrot.lane.b32.xlu0 %v2393, 56
        %v3129 = vpop.permute.xlu0 %3128
        %3130 = vrot.lane.b32.xlu0 %v2395, 56
        %v3131 = vpop.permute.xlu0 %3130
        %3132 = vrot.lane.b32.xlu0 %v2398, 56
        %v3133 = vpop.permute.xlu0 %3132
        %3134 = vrot.lane.b32.xlu0 %v2400, 56
        %v3135 = vpop.permute.xlu0 %3134
        %3136 = vrot.lane.b32.xlu0 %v2403, 56
        %v3137 = vpop.permute.xlu0 %3136
        %3138 = vrot.lane.b32.xlu0 %v2405, 56
        %v3139 = vpop.permute.xlu0 %3138
        %3140 = vrot.lane.b32.xlu0 %v2408, 56
        %v3141 = vpop.permute.xlu0 %3140
        %3142 = vrot.lane.b32.xlu0 %v2410, 56
        %v3143 = vpop.permute.xlu0 %3142
        %3144 = vrot.lane.b32.xlu0 %v2413, 56
        %v3145 = vpop.permute.xlu0 %3144
        %3146 = vrot.lane.b32.xlu0 %v2415, 56
        %v3147 = vpop.permute.xlu0 %3146
        %3148 = vrot.lane.b32.xlu0 %v2418, 56
        %v3149 = vpop.permute.xlu0 %3148
        %3150 = vrot.lane.b32.xlu0 %v2420, 56
        %v3151 = vpop.permute.xlu0 %3150
        %3152 = vrot.lane.b32.xlu0 %v2423, 56
        %v3153 = vpop.permute.xlu0 %3152
        %3154 = vrot.lane.b32.xlu0 %v2425, 56
        %v3155 = vpop.permute.xlu0 %3154
        %3156 = vrot.lane.b32.xlu0 %v2428, 56
        %v3157 = vpop.permute.xlu0 %3156
        %3158 = vrot.lane.b32.xlu0 %v2430, 56
        %v3159 = vpop.permute.xlu0 %3158
        %3160 = vrot.lane.b32.xlu0 %v2433, 56
        %v3161 = vpop.permute.xlu0 %3160
        %3162 = vrot.lane.b32.xlu0 %v2435, 56
        %v3163 = vpop.permute.xlu0 %3162
        %3164 = vrot.lane.b32.xlu0 %v2438, 56
        %v3165 = vpop.permute.xlu0 %3164
        %3166 = vrot.lane.b32.xlu0 %v2440, 56
        %v3167 = vpop.permute.xlu0 %3166
        %3168 = vrot.lane.b32.xlu0 %v2443, 56
        %v3169 = vpop.permute.xlu0 %3168
        %3170 = vrot.lane.b32.xlu0 %v2445, 56
        %v3171 = vpop.permute.xlu0 %3170
        %3172 = vrot.lane.b32.xlu0 %v2448, 56
        %v3173 = vpop.permute.xlu0 %3172
        %3174 = vrot.lane.b32.xlu0 %v2450, 56
        %v3175 = vpop.permute.xlu0 %3174
        %3176 = vrot.lane.b32.xlu0 %v2536, 56
        %v3177 = vpop.permute.xlu0 %3176
        %3178 = vrot.lane.b32.xlu0 %v2538, 56
        %v3179 = vpop.permute.xlu0 %3178
        %3180 = vrot.lane.b32.xlu0 %v2373, 56
        %v3181 = vpop.permute.xlu0 %3180
        %3182 = vrot.lane.b32.xlu0 %v2375, 56
        %v3183 = vpop.permute.xlu0 %3182
        %3216 = vrot.lane.b32.xlu0 %v2464, 64
        %v3217 = vpop.permute.xlu0 %3216
        %3218 = vrot.lane.b32.xlu0 %v2466, 64
        %v3219 = vpop.permute.xlu0 %3218
        %3220 = vrot.lane.b32.xlu0 %v2469, 64
        %v3221 = vpop.permute.xlu0 %3220
        %3222 = vrot.lane.b32.xlu0 %v2471, 64
        %v3223 = vpop.permute.xlu0 %3222
        %3224 = vrot.lane.b32.xlu0 %v2474, 64
        %v3225 = vpop.permute.xlu0 %3224
        %3226 = vrot.lane.b32.xlu0 %v2476, 64
        %v3227 = vpop.permute.xlu0 %3226
        %3228 = vrot.lane.b32.xlu0 %v2479, 64
        %v3229 = vpop.permute.xlu0 %3228
        %3230 = vrot.lane.b32.xlu0 %v2481, 64
        %v3231 = vpop.permute.xlu0 %3230
        %3232 = vrot.lane.b32.xlu0 %v2484, 64
        %v3233 = vpop.permute.xlu0 %3232
        %3234 = vrot.lane.b32.xlu0 %v2486, 64
        %v3235 = vpop.permute.xlu0 %3234
        %3236 = vrot.lane.b32.xlu0 %v2489, 64
        %v3237 = vpop.permute.xlu0 %3236
        %3238 = vrot.lane.b32.xlu0 %v2491, 64
        %v3239 = vpop.permute.xlu0 %3238
        %3240 = vrot.lane.b32.xlu0 %v2494, 64
        %v3241 = vpop.permute.xlu0 %3240
        %3242 = vrot.lane.b32.xlu0 %v2496, 64
        %v3243 = vpop.permute.xlu0 %3242
        %3244 = vrot.lane.b32.xlu0 %v2499, 64
        %v3245 = vpop.permute.xlu0 %3244
        %3246 = vrot.lane.b32.xlu0 %v2501, 64
        %v3247 = vpop.permute.xlu0 %3246
        %3248 = vrot.lane.b32.xlu0 %v2504, 64
        %v3249 = vpop.permute.xlu0 %3248
        %3250 = vrot.lane.b32.xlu0 %v2506, 64
        %v3251 = vpop.permute.xlu0 %3250
        %3252 = vrot.lane.b32.xlu0 %v2509, 64
        %v3253 = vpop.permute.xlu0 %3252
        %3254 = vrot.lane.b32.xlu0 %v2511, 64
        %v3255 = vpop.permute.xlu0 %3254
        %3256 = vrot.lane.b32.xlu0 %v2514, 64
        %v3257 = vpop.permute.xlu0 %3256
        %3258 = vrot.lane.b32.xlu0 %v2516, 64
        %v3259 = vpop.permute.xlu0 %3258
        %3260 = vrot.lane.b32.xlu0 %v2519, 64
        %v3261 = vpop.permute.xlu0 %3260
        %3262 = vrot.lane.b32.xlu0 %v2521, 64
        %v3263 = vpop.permute.xlu0 %3262
        %3264 = vrot.lane.b32.xlu0 %v2524, 64
        %v3265 = vpop.permute.xlu0 %3264
        %3266 = vrot.lane.b32.xlu0 %v2526, 64
        %v3267 = vpop.permute.xlu0 %3266
        %3268 = vrot.lane.b32.xlu0 %v2529, 64
        %v3269 = vpop.permute.xlu0 %3268
        %3270 = vrot.lane.b32.xlu0 %v2531, 64
        %v3271 = vpop.permute.xlu0 %3270
        %3272 = vrot.lane.b32.xlu0 %v2541, 64
        %v3273 = vpop.permute.xlu0 %3272
        %3274 = vrot.lane.b32.xlu0 %v2543, 64
        %v3275 = vpop.permute.xlu0 %3274
        %3276 = vrot.lane.b32.xlu0 %v2454, 64
        %v3277 = vpop.permute.xlu0 %3276
        %3278 = vrot.lane.b32.xlu0 %v2456, 64
        %v3279 = vpop.permute.xlu0 %3278
        %3312 = vrot.lane.b32.xlu0 %v352, 72
        %v3313 = vpop.permute.xlu0 %3312
        %3314 = vrot.lane.b32.xlu0 %v353, 72
        %v3315 = vpop.permute.xlu0 %3314
        %3316 = vrot.lane.b32.xlu0 %v354, 72
        %v3317 = vpop.permute.xlu0 %3316
        %3318 = vrot.lane.b32.xlu0 %v355, 72
        %v3319 = vpop.permute.xlu0 %3318
        %3320 = vrot.lane.b32.xlu0 %v356, 72
        %v3321 = vpop.permute.xlu0 %3320
        %3322 = vrot.lane.b32.xlu0 %v357, 72
        %v3323 = vpop.permute.xlu0 %3322
        %3324 = vrot.lane.b32.xlu0 %v358, 72
        %v3325 = vpop.permute.xlu0 %3324
        %3326 = vrot.lane.b32.xlu0 %v359, 72
        %v3327 = vpop.permute.xlu0 %3326
        %3328 = vrot.lane.b32.xlu0 %v360, 72
        %v3329 = vpop.permute.xlu0 %3328
        %3330 = vrot.lane.b32.xlu0 %v361, 72
        %v3331 = vpop.permute.xlu0 %3330
        %3332 = vrot.lane.b32.xlu0 %v362, 72
        %v3333 = vpop.permute.xlu0 %3332
        %3334 = vrot.lane.b32.xlu0 %v363, 72
        %v3335 = vpop.permute.xlu0 %3334
        %3336 = vrot.lane.b32.xlu0 %v364, 72
        %v3337 = vpop.permute.xlu0 %3336
        %3338 = vrot.lane.b32.xlu0 %v365, 72
        %v3339 = vpop.permute.xlu0 %3338
        %3340 = vrot.lane.b32.xlu0 %v366, 72
        %v3341 = vpop.permute.xlu0 %3340
        %3342 = vrot.lane.b32.xlu0 %v367, 72
        %v3343 = vpop.permute.xlu0 %3342
        %3344 = vrot.lane.b32.xlu0 %v368, 72
        %v3345 = vpop.permute.xlu0 %3344
        %3346 = vrot.lane.b32.xlu0 %v369, 72
        %v3347 = vpop.permute.xlu0 %3346
        %3348 = vrot.lane.b32.xlu0 %v370, 72
        %v3349 = vpop.permute.xlu0 %3348
        %3350 = vrot.lane.b32.xlu0 %v371, 72
        %v3351 = vpop.permute.xlu0 %3350
        %3352 = vrot.lane.b32.xlu0 %v372, 72
        %v3353 = vpop.permute.xlu0 %3352
        %3354 = vrot.lane.b32.xlu0 %v373, 72
        %v3355 = vpop.permute.xlu0 %3354
        %3356 = vrot.lane.b32.xlu0 %v374, 72
        %v3357 = vpop.permute.xlu0 %3356
        %3358 = vrot.lane.b32.xlu0 %v375, 72
        %v3359 = vpop.permute.xlu0 %3358
        %3360 = vrot.lane.b32.xlu0 %v376, 72
        %v3361 = vpop.permute.xlu0 %3360
        %3362 = vrot.lane.b32.xlu0 %v377, 72
        %v3363 = vpop.permute.xlu0 %3362
        %3364 = vrot.lane.b32.xlu0 %v378, 72
        %v3365 = vpop.permute.xlu0 %3364
        %3366 = vrot.lane.b32.xlu0 %v379, 72
        %v3367 = vpop.permute.xlu0 %3366
        %3368 = vrot.lane.b32.xlu0 %v380, 72
        %v3369 = vpop.permute.xlu0 %3368
        %3370 = vrot.lane.b32.xlu0 %v381, 72
        %v3371 = vpop.permute.xlu0 %3370
        %3372 = vrot.lane.b32.xlu0 %v382, 72
        %v3373 = vpop.permute.xlu0 %3372
        %3374 = vrot.lane.b32.xlu0 %v383, 72
        %v3375 = vpop.permute.xlu0 %3374
        %v3408 = vsel %vm1570, %v2304, %v2545
        %v3409 = vsel %vm1570, %v2206, %v2547
        %v3410 = vsel %vm1570, %v2305, %v2549
        %v3411 = vsel %vm1570, %v2209, %v2551
        %v3412 = vsel %vm1570, %v2306, %v2553
        %v3413 = vsel %vm1570, %v2212, %v2555
        %v3414 = vsel %vm1570, %v2307, %v2557
        %v3415 = vsel %vm1570, %v2215, %v2559
        %v3416 = vsel %vm1570, %v2308, %v2561
        %v3417 = vsel %vm1570, %v2218, %v2563
        %v3418 = vsel %vm1570, %v2309, %v2565
        %v3419 = vsel %vm1570, %v2221, %v2567
        %v3420 = vsel %vm1570, %v2310, %v2569
        %v3421 = vsel %vm1570, %v2224, %v2571
        %v3422 = vsel %vm1570, %v2311, %v2573
        %v3423 = vsel %vm1570, %v2227, %v2575
        %v3424 = vsel %vm1570, %v2312, %v2577
        %v3425 = vsel %vm1570, %v2230, %v2579
        %v3426 = vsel %vm1570, %v2313, %v2581
        %v3427 = vsel %vm1570, %v2233, %v2583
        %v3428 = vsel %vm1570, %v2314, %v2585
        %v3429 = vsel %vm1570, %v2236, %v2587
        %v3430 = vsel %vm1570, %v2315, %v2589
        %v3431 = vsel %vm1570, %v2239, %v2591
        %v3432 = vsel %vm1570, %v2316, %v2593
        %v3433 = vsel %vm1570, %v2242, %v2595
        %v3434 = vsel %vm1570, %v2317, %v2597
        %v3435 = vsel %vm1570, %v2245, %v2599
        %v3436 = vsel %vm1570, %v2318, %v2601
        %v3437 = vsel %vm1570, %v2248, %v2603
        %v3438 = vsel %vm1570, %v2319, %v2605
        %v3439 = vsel %vm1570, %v2251, %v2607
        %v3440 = vsel %vm1636, %v3408, %v2641
        %v3441 = vsel %vm1636, %v3409, %v2643
        %v3442 = vsel %vm1636, %v3410, %v2645
        %v3443 = vsel %vm1636, %v3411, %v2647
        %v3444 = vsel %vm1636, %v3412, %v2649
        %v3445 = vsel %vm1636, %v3413, %v2651
        %v3446 = vsel %vm1636, %v3414, %v2653
        %v3447 = vsel %vm1636, %v3415, %v2655
        %v3448 = vsel %vm1636, %v3416, %v2657
        %v3449 = vsel %vm1636, %v3417, %v2659
        %v3450 = vsel %vm1636, %v3418, %v2661
        %v3451 = vsel %vm1636, %v3419, %v2663
        %v3452 = vsel %vm1636, %v3420, %v2665
        %v3453 = vsel %vm1636, %v3421, %v2667
        %v3454 = vsel %vm1636, %v3422, %v2669
        %v3455 = vsel %vm1636, %v3423, %v2671
        %v3456 = vsel %vm1636, %v3424, %v2673
        %v3457 = vsel %vm1636, %v3425, %v2675
        %v3458 = vsel %vm1636, %v3426, %v2677
        %v3459 = vsel %vm1636, %v3427, %v2679
        %v3460 = vsel %vm1636, %v3428, %v2681
        %v3461 = vsel %vm1636, %v3429, %v2683
        %v3462 = vsel %vm1636, %v3430, %v2685
        %v3463 = vsel %vm1636, %v3431, %v2687
        %v3464 = vsel %vm1636, %v3432, %v2689
        %v3465 = vsel %vm1636, %v3433, %v2691
        %v3466 = vsel %vm1636, %v3434, %v2693
        %v3467 = vsel %vm1636, %v3435, %v2695
        %v3468 = vsel %vm1636, %v3436, %v2697
        %v3469 = vsel %vm1636, %v3437, %v2699
        %v3470 = vsel %vm1636, %v3438, %v2701
        %v3471 = vsel %vm1636, %v3439, %v2703
        %v3472 = vsel %vm1702, %v3440, %v2737
        %v3473 = vsel %vm1702, %v3441, %v2739
        %v3474 = vsel %vm1702, %v3442, %v2741
        %v3475 = vsel %vm1702, %v3443, %v2743
        %v3476 = vsel %vm1702, %v3444, %v2745
        %v3477 = vsel %vm1702, %v3445, %v2747
        %v3478 = vsel %vm1702, %v3446, %v2749
        %v3479 = vsel %vm1702, %v3447, %v2751
        %v3480 = vsel %vm1702, %v3448, %v2753
        %v3481 = vsel %vm1702, %v3449, %v2755
        %v3482 = vsel %vm1702, %v3450, %v2757
        %v3483 = vsel %vm1702, %v3451, %v2759
        %v3484 = vsel %vm1702, %v3452, %v2761
        %v3485 = vsel %vm1702, %v3453, %v2763
        %v3486 = vsel %vm1702, %v3454, %v2765
        %v3487 = vsel %vm1702, %v3455, %v2767
        %v3488 = vsel %vm1702, %v3456, %v2769
        %v3489 = vsel %vm1702, %v3457, %v2771
        %v3490 = vsel %vm1702, %v3458, %v2773
        %v3491 = vsel %vm1702, %v3459, %v2775
        %v3492 = vsel %vm1702, %v3460, %v2777
        %v3493 = vsel %vm1702, %v3461, %v2779
        %v3494 = vsel %vm1702, %v3462, %v2781
        %v3495 = vsel %vm1702, %v3463, %v2783
        %v3496 = vsel %vm1702, %v3464, %v2785
        %v3497 = vsel %vm1702, %v3465, %v2787
        %v3498 = vsel %vm1702, %v3466, %v2789
        %v3499 = vsel %vm1702, %v3467, %v2791
        %v3500 = vsel %vm1702, %v3468, %v2793
        %v3501 = vsel %vm1702, %v3469, %v2795
        %v3502 = vsel %vm1702, %v3470, %v2797
        %v3503 = vsel %vm1702, %v3471, %v2799
        %v3504 = vsel %vm1768, %v3472, %v2833
        %v3505 = vsel %vm1768, %v3473, %v2835
        %v3506 = vsel %vm1768, %v3474, %v2837
        %v3507 = vsel %vm1768, %v3475, %v2839
        %v3508 = vsel %vm1768, %v3476, %v2841
        %v3509 = vsel %vm1768, %v3477, %v2843
        %v3510 = vsel %vm1768, %v3478, %v2845
        %v3511 = vsel %vm1768, %v3479, %v2847
        %v3512 = vsel %vm1768, %v3480, %v2849
        %v3513 = vsel %vm1768, %v3481, %v2851
        %v3514 = vsel %vm1768, %v3482, %v2853
        %v3515 = vsel %vm1768, %v3483, %v2855
        %v3516 = vsel %vm1768, %v3484, %v2857
        %v3517 = vsel %vm1768, %v3485, %v2859
        %v3518 = vsel %vm1768, %v3486, %v2861
        %v3519 = vsel %vm1768, %v3487, %v2863
        %v3520 = vsel %vm1768, %v3488, %v2865
        %v3521 = vsel %vm1768, %v3489, %v2867
        %v3522 = vsel %vm1768, %v3490, %v2869
        %v3523 = vsel %vm1768, %v3491, %v2871
        %v3524 = vsel %vm1768, %v3492, %v2873
        %v3525 = vsel %vm1768, %v3493, %v2875
        %v3526 = vsel %vm1768, %v3494, %v2877
        %v3527 = vsel %vm1768, %v3495, %v2879
        %v3528 = vsel %vm1768, %v3496, %v2881
        %v3529 = vsel %vm1768, %v3497, %v2883
        %v3530 = vsel %vm1768, %v3498, %v2885
        %v3531 = vsel %vm1768, %v3499, %v2887
        %v3532 = vsel %vm1768, %v3500, %v2889
        %v3533 = vsel %vm1768, %v3501, %v2891
        %v3534 = vsel %vm1768, %v3502, %v2893
        %v3535 = vsel %vm1768, %v3503, %v2895
        %vm3536 = vcmask 326656
        %v3537 = vsel %vm3536, %v3504, %v2929
        %v3538 = vsel %vm3536, %v3505, %v2931
        %v3539 = vsel %vm3536, %v3506, %v2933
        %v3540 = vsel %vm3536, %v3507, %v2935
        %v3541 = vsel %vm3536, %v3508, %v2937
        %v3542 = vsel %vm3536, %v3509, %v2939
        %v3543 = vsel %vm3536, %v3510, %v2941
        %v3544 = vsel %vm3536, %v3511, %v2943
        %v3545 = vsel %vm3536, %v3512, %v2945
        %v3546 = vsel %vm3536, %v3513, %v2947
        %v3547 = vsel %vm3536, %v3514, %v2949
        %v3548 = vsel %vm3536, %v3515, %v2951
        %v3549 = vsel %vm3536, %v3516, %v2953
        %v3550 = vsel %vm3536, %v3517, %v2955
        %v3551 = vsel %vm3536, %v3518, %v2957
        %v3552 = vsel %vm3536, %v3519, %v2959
        %v3553 = vsel %vm3536, %v3520, %v2961
        %v3554 = vsel %vm3536, %v3521, %v2963
        %v3555 = vsel %vm3536, %v3522, %v2965
        %v3556 = vsel %vm3536, %v3523, %v2967
        %v3557 = vsel %vm3536, %v3524, %v2969
        %v3558 = vsel %vm3536, %v3525, %v2971
        %v3559 = vsel %vm3536, %v3526, %v2973
        %v3560 = vsel %vm3536, %v3527, %v2975
        %v3561 = vsel %vm3536, %v3528, %v2977
        %v3562 = vsel %vm3536, %v3529, %v2979
        %v3563 = vsel %vm3536, %v3530, %v2981
        %v3564 = vsel %vm3536, %v3531, %v2983
        %v3565 = vsel %vm3536, %v3532, %v2985
        %v3566 = vsel %vm3536, %v3533, %v2987
        %v3567 = vsel %vm3536, %v3534, %v2989
        %v3568 = vsel %vm3536, %v3535, %v2991
        %vm3569 = vcmask 392192
        %v3570 = vsel %vm3569, %v3537, %v3025
        %v3571 = vsel %vm3569, %v3538, %v3027
        %v3572 = vsel %vm3569, %v3539, %v3029
        %v3573 = vsel %vm3569, %v3540, %v3031
        %v3574 = vsel %vm3569, %v3541, %v3033
        %v3575 = vsel %vm3569, %v3542, %v3035
        %v3576 = vsel %vm3569, %v3543, %v3037
        %v3577 = vsel %vm3569, %v3544, %v3039
        %v3578 = vsel %vm3569, %v3545, %v3041
        %v3579 = vsel %vm3569, %v3546, %v3043
        %v3580 = vsel %vm3569, %v3547, %v3045
        %v3581 = vsel %vm3569, %v3548, %v3047
        %v3582 = vsel %vm3569, %v3549, %v3049
        %v3583 = vsel %vm3569, %v3550, %v3051
        %v3584 = vsel %vm3569, %v3551, %v3053
        %v3585 = vsel %vm3569, %v3552, %v3055
        %v3586 = vsel %vm3569, %v3553, %v3057
        %v3587 = vsel %vm3569, %v3554, %v3059
        %v3588 = vsel %vm3569, %v3555, %v3061
        %v3589 = vsel %vm3569, %v3556, %v3063
        %v3590 = vsel %vm3569, %v3557, %v3065
        %v3591 = vsel %vm3569, %v3558, %v3067
        %v3592 = vsel %vm3569, %v3559, %v3069
        %v3593 = vsel %vm3569, %v3560, %v3071
        %v3594 = vsel %vm3569, %v3561, %v3073
        %v3595 = vsel %vm3569, %v3562, %v3075
        %v3596 = vsel %vm3569, %v3563, %v3077
        %v3597 = vsel %vm3569, %v3564, %v3079
        %v3598 = vsel %vm3569, %v3565, %v3081
        %v3599 = vsel %vm3569, %v3566, %v3083
        %v3600 = vsel %vm3569, %v3567, %v3085
        %v3601 = vsel %vm3569, %v3568, %v3087
        %vm3602 = vcmask 457728
        %v3603 = vsel %vm3602, %v3570, %v3121
        %v3604 = vsel %vm3602, %v3571, %v3123
        %v3605 = vsel %vm3602, %v3572, %v3125
        %v3606 = vsel %vm3602, %v3573, %v3127
        %v3607 = vsel %vm3602, %v3574, %v3129
        %v3608 = vsel %vm3602, %v3575, %v3131
        %v3609 = vsel %vm3602, %v3576, %v3133
        %v3610 = vsel %vm3602, %v3577, %v3135
        %v3611 = vsel %vm3602, %v3578, %v3137
        %v3612 = vsel %vm3602, %v3579, %v3139
        %v3613 = vsel %vm3602, %v3580, %v3141
        %v3614 = vsel %vm3602, %v3581, %v3143
        %v3615 = vsel %vm3602, %v3582, %v3145
        %v3616 = vsel %vm3602, %v3583, %v3147
        %v3617 = vsel %vm3602, %v3584, %v3149
        %v3618 = vsel %vm3602, %v3585, %v3151
        %v3619 = vsel %vm3602, %v3586, %v3153
        %v3620 = vsel %vm3602, %v3587, %v3155
        %v3621 = vsel %vm3602, %v3588, %v3157
        %v3622 = vsel %vm3602, %v3589, %v3159
        %v3623 = vsel %vm3602, %v3590, %v3161
        %v3624 = vsel %vm3602, %v3591, %v3163
        %v3625 = vsel %vm3602, %v3592, %v3165
        %v3626 = vsel %vm3602, %v3593, %v3167
        %v3627 = vsel %vm3602, %v3594, %v3169
        %v3628 = vsel %vm3602, %v3595, %v3171
        %v3629 = vsel %vm3602, %v3596, %v3173
        %v3630 = vsel %vm3602, %v3597, %v3175
        %v3631 = vsel %vm3602, %v3598, %v3177
        %v3632 = vsel %vm3602, %v3599, %v3179
        %v3633 = vsel %vm3602, %v3600, %v3181
        %v3634 = vsel %vm3602, %v3601, %v3183
        %vm3635 = vcmask 523264
        %v3636 = vsel %vm3635, %v3603, %v3217
        %v3637 = vsel %vm3635, %v3604, %v3219
        %v3638 = vsel %vm3635, %v3605, %v3221
        %v3639 = vsel %vm3635, %v3606, %v3223
        %v3640 = vsel %vm3635, %v3607, %v3225
        %v3641 = vsel %vm3635, %v3608, %v3227
        %v3642 = vsel %vm3635, %v3609, %v3229
        %v3643 = vsel %vm3635, %v3610, %v3231
        %v3644 = vsel %vm3635, %v3611, %v3233
        %v3645 = vsel %vm3635, %v3612, %v3235
        %v3646 = vsel %vm3635, %v3613, %v3237
        %v3647 = vsel %vm3635, %v3614, %v3239
        %v3648 = vsel %vm3635, %v3615, %v3241
        %v3649 = vsel %vm3635, %v3616, %v3243
        %v3650 = vsel %vm3635, %v3617, %v3245
        %v3651 = vsel %vm3635, %v3618, %v3247
        %v3652 = vsel %vm3635, %v3619, %v3249
        %v3653 = vsel %vm3635, %v3620, %v3251
        %v3654 = vsel %vm3635, %v3621, %v3253
        %v3655 = vsel %vm3635, %v3622, %v3255
        %v3656 = vsel %vm3635, %v3623, %v3257
        %v3657 = vsel %vm3635, %v3624, %v3259
        %v3658 = vsel %vm3635, %v3625, %v3261
        %v3659 = vsel %vm3635, %v3626, %v3263
        %v3660 = vsel %vm3635, %v3627, %v3265
        %v3661 = vsel %vm3635, %v3628, %v3267
        %v3662 = vsel %vm3635, %v3629, %v3269
        %v3663 = vsel %vm3635, %v3630, %v3271
        %v3664 = vsel %vm3635, %v3631, %v3273
        %v3665 = vsel %vm3635, %v3632, %v3275
        %v3666 = vsel %vm3635, %v3633, %v3277
        %v3667 = vsel %vm3635, %v3634, %v3279
        %vm3668 = vcmask 588800
        %v3669 = vsel %vm3668, %v3636, %v3313
        %v3670 = vsel %vm3668, %v3637, %v3315
        %v3671 = vsel %vm3668, %v3638, %v3317
        %v3672 = vsel %vm3668, %v3639, %v3319
        %v3673 = vsel %vm3668, %v3640, %v3321
        %v3674 = vsel %vm3668, %v3641, %v3323
        %v3675 = vsel %vm3668, %v3642, %v3325
        %v3676 = vsel %vm3668, %v3643, %v3327
        %v3677 = vsel %vm3668, %v3644, %v3329
        %v3678 = vsel %vm3668, %v3645, %v3331
        %v3679 = vsel %vm3668, %v3646, %v3333
        %v3680 = vsel %vm3668, %v3647, %v3335
        %v3681 = vsel %vm3668, %v3648, %v3337
        %v3682 = vsel %vm3668, %v3649, %v3339
        %v3683 = vsel %vm3668, %v3650, %v3341
        %v3684 = vsel %vm3668, %v3651, %v3343
        %v3685 = vsel %vm3668, %v3652, %v3345
        %v3686 = vsel %vm3668, %v3653, %v3347
        %v3687 = vsel %vm3668, %v3654, %v3349
        %v3688 = vsel %vm3668, %v3655, %v3351
        %v3689 = vsel %vm3668, %v3656, %v3353
        %v3690 = vsel %vm3668, %v3657, %v3355
        %v3691 = vsel %vm3668, %v3658, %v3357
        %v3692 = vsel %vm3668, %v3659, %v3359
        %v3693 = vsel %vm3668, %v3660, %v3361
        %v3694 = vsel %vm3668, %v3661, %v3363
        %v3695 = vsel %vm3668, %v3662, %v3365
        %v3696 = vsel %vm3668, %v3663, %v3367
        %v3697 = vsel %vm3668, %v3664, %v3369
        %v3698 = vsel %vm3668, %v3665, %v3371
        %v3699 = vsel %vm3668, %v3666, %v3373
        %v3700 = vsel %vm3668, %v3667, %v3375
        %v3701 = vld [vmem:[%s3] sm:$0xff]
        %v3702 = vld [vmem:[%s3 + $0x8] sm:$0xff]
        %v3703 = vld [vmem:[%s3 + $0x10] sm:$0xff]
        %v3704 = vld [vmem:[%s3 + $0x18] sm:$0xff]
        %v3705 = vld [vmem:[%s3 + $0x20] sm:$0xff]
        %v3706 = vld [vmem:[%s3 + $0x28] sm:$0xff]
        %v3707 = vld [vmem:[%s3 + $0x30] sm:$0xff]
        %v3708 = vld [vmem:[%s3 + $0x38] sm:$0xff]
        %v3709 = vld [vmem:[%s3 + $0x40] sm:$0xff]
        %v3710 = vld [vmem:[%s3 + $0x48] sm:$0xf]
        %vm3711 = vcmask 621568
        %v3713 = vsel %vm3711, %v3669, 0
        %v3716 = vsel %vm3711, %v3670, 0
        %v3719 = vsel %vm3711, %v3671, 0
        %v3722 = vsel %vm3711, %v3672, 0
        %v3725 = vsel %vm3711, %v3673, 0
        %v3728 = vsel %vm3711, %v3674, 0
        %v3731 = vsel %vm3711, %v3675, 0
        %v3734 = vsel %vm3711, %v3676, 0
        %v3737 = vsel %vm3711, %v3677, 0
        %v3740 = vsel %vm3711, %v3678, 0
        %v3743 = vsel %vm3711, %v3679, 0
        %v3746 = vsel %vm3711, %v3680, 0
        %v3749 = vsel %vm3711, %v3681, 0
        %v3752 = vsel %vm3711, %v3682, 0
        %v3755 = vsel %vm3711, %v3683, 0
        %v3758 = vsel %vm3711, %v3684, 0
        %v3761 = vsel %vm3711, %v3685, 0
        %v3764 = vsel %vm3711, %v3686, 0
        %v3767 = vsel %vm3711, %v3687, 0
        %v3770 = vsel %vm3711, %v3688, 0
        %v3773 = vsel %vm3711, %v3689, 0
        %v3776 = vsel %vm3711, %v3690, 0
        %v3779 = vsel %vm3711, %v3691, 0
        %v3782 = vsel %vm3711, %v3692, 0
        %v3785 = vsel %vm3711, %v3693, 0
        %v3788 = vsel %vm3711, %v3694, 0
        %v3791 = vsel %vm3711, %v3695, 0
        %v3794 = vsel %vm3711, %v3696, 0
        %v3797 = vsel %vm3711, %v3697, 0
        %v3800 = vsel %vm3711, %v3698, 0
        %v3803 = vsel %vm3711, %v3699, 0
        %v3806 = vsel %vm3711, %v3700, 0
        %v3809 = vsel %vm1910, %v3710, 0
        %3811 = vmatprep.subr.mxu0 0.0
        %3812 = vmatpush1.msra.mxu0 0.0
        %3813 = vmatprep.subr.mxu0 0.0
        %3814 = vmatpush1.msra.mxu0 0.0
        %3815 = vmatprep.subr.mxu0 0.0
        %3816 = vmatpush1.msra.mxu0 0.0
        %3817 = vmatprep.subr.mxu0 0.0
        %3818 = vmatpush1.msra.mxu0 0.0
        %3819 = vmatprep.subr.mxu0 0.0
        %3820 = vmatpush1.msra.mxu0 0.0
        %3821 = vmatprep.subr.mxu0 0.0
        %3822 = vmatpush1.msra.mxu0 0.0
        %3823 = vmatprep.subr.mxu0 0.0
        %3824 = vmatpush1.msra.mxu0 %v3809
        %3825 = vmatprep.subr.mxu0 0.0
        %3826 = vmatpush1.msra.mxu0 %v3709
        %3827 = vmatprep.subr.mxu0 0.0
        %3828 = vmatpush1.msra.mxu0 %v3708
        %3829 = vmatprep.subr.mxu0 0.0
        %3830 = vmatpush1.msra.mxu0 %v3707
        %3831 = vmatprep.subr.mxu0 0.0
        %3832 = vmatpush1.msra.mxu0 %v3706
        %3833 = vmatprep.subr.mxu0 0.0
        %3834 = vmatpush1.msra.mxu0 %v3705
        %3835 = vmatprep.subr.mxu0 0.0
        %3836 = vmatpush1.msra.mxu0 %v3704
        %3837 = vmatprep.subr.mxu0 0.0
        %3838 = vmatpush1.msra.mxu0 %v3703
        %3839 = vmatprep.subr.mxu0 0.0
        %3840 = vmatpush1.msra.mxu0 %v3702
        %3841 = vmatprep.subr.mxu0 0.0
        %3842 = vmatpush1.msra.mxu0 %v3701
        %3843 = vmatprep.subr.mxu0 0.0
        %3844 = vmatpush2.msra.mxu0 0.0
        %3845 = vmatprep.subr.mxu0 0.0
        %3846 = vmatpush2.msra.mxu0 0.0
        %3847 = vmatprep.subr.mxu0 0.0
        %3848 = vmatpush2.msra.mxu0 0.0
        %3849 = vmatprep.subr.mxu0 0.0
        %3850 = vmatpush2.msra.mxu0 0.0
        %3851 = vmatprep.subr.mxu0 0.0
        %3852 = vmatpush2.msra.mxu0 0.0
        %3853 = vmatprep.subr.mxu0 0.0
        %3854 = vmatpush2.msra.mxu0 0.0
        %3855 = vmatprep.subr.mxu0 0.0
        %3856 = vmatpush2.msra.mxu0 0.0
        %3857 = vmatprep.subr.mxu0 0.0
        %3858 = vmatpush2.msra.mxu0 0.0
        %3859 = vmatprep.subr.mxu0 0.0
        %3860 = vmatpush2.msra.mxu0 0.0
        %3861 = vmatprep.subr.mxu0 0.0
        %3862 = vmatpush2.msra.mxu0 0.0
        %3863 = vmatprep.subr.mxu0 0.0
        %3864 = vmatpush2.msra.mxu0 0.0
        %3865 = vmatprep.subr.mxu0 0.0
        %3866 = vmatpush2.msra.mxu0 0.0
        %3867 = vmatprep.subr.mxu0 0.0
        %3868 = vmatpush2.msra.mxu0 0.0
        %3869 = vmatprep.subr.mxu0 0.0
        %3870 = vmatpush2.msra.mxu0 0.0
        %3871 = vmatprep.subr.mxu0 0.0
        %3872 = vmatpush2.msra.mxu0 0.0
        %3873 = vmatprep.subr.mxu0 0.0
        %3874 = vmatpush2.msra.mxu0 0.0
        %3875 = vmatprep.mubr.f32.mxu0 0.0
        %3876 = vmatmul.mubr.f32.gmra.mxu0 %v3713
        %v3877 = vpop.f32.mrf.mxu0
        %v3878 = vadd.f32 0.0, %v3877
        %v3879 = vpop.f32.mrf.mxu0
        %3880 = vmatprep.mubr.f32.mxu0 0.0
        %3881 = vmatmul.mubr.f32.gmra.mxu0 %v3716
        %v3882 = vpop.f32.mrf.mxu0
        %v3883 = vadd.f32 0.0, %v3882
        %v3884 = vpop.f32.mrf.mxu0
        %3885 = vmatprep.mubr.f32.mxu0 0.0
        %3886 = vmatmul.mubr.f32.gmra.mxu0 %v3719
        %v3887 = vpop.f32.mrf.mxu0
        %v3888 = vadd.f32 0.0, %v3887
        %v3889 = vpop.f32.mrf.mxu0
        %3890 = vmatprep.mubr.f32.mxu0 0.0
        %3891 = vmatmul.mubr.f32.gmra.mxu0 %v3722
        %v3892 = vpop.f32.mrf.mxu0
        %v3893 = vadd.f32 0.0, %v3892
        %v3894 = vpop.f32.mrf.mxu0
        %3895 = vmatprep.mubr.f32.mxu0 0.0
        %3896 = vmatmul.mubr.f32.gmra.mxu0 %v3725
        %v3897 = vpop.f32.mrf.mxu0
        %v3898 = vadd.f32 0.0, %v3897
        %v3899 = vpop.f32.mrf.mxu0
        %3900 = vmatprep.mubr.f32.mxu0 0.0
        %3901 = vmatmul.mubr.f32.gmra.mxu0 %v3728
        %v3902 = vpop.f32.mrf.mxu0
        %v3903 = vadd.f32 0.0, %v3902
        %v3904 = vpop.f32.mrf.mxu0
        %3905 = vmatprep.mubr.f32.mxu0 0.0
        %3906 = vmatmul.mubr.f32.gmra.mxu0 %v3731
        %v3907 = vpop.f32.mrf.mxu0
        %v3908 = vadd.f32 0.0, %v3907
        %v3909 = vpop.f32.mrf.mxu0
        %3910 = vmatprep.mubr.f32.mxu0 0.0
        %3911 = vmatmul.mubr.f32.gmra.mxu0 %v3734
        %v3912 = vpop.f32.mrf.mxu0
        %v3913 = vadd.f32 0.0, %v3912
        %v3914 = vpop.f32.mrf.mxu0
        %3915 = vmatprep.mubr.f32.mxu0 0.0
        %3916 = vmatmul.mubr.f32.gmra.mxu0 %v3737
        %v3917 = vpop.f32.mrf.mxu0
        %v3918 = vadd.f32 0.0, %v3917
        %v3919 = vpop.f32.mrf.mxu0
        %3920 = vmatprep.mubr.f32.mxu0 0.0
        %3921 = vmatmul.mubr.f32.gmra.mxu0 %v3740
        %v3922 = vpop.f32.mrf.mxu0
        %v3923 = vadd.f32 0.0, %v3922
        %v3924 = vpop.f32.mrf.mxu0
        %3925 = vmatprep.mubr.f32.mxu0 0.0
        %3926 = vmatmul.mubr.f32.gmra.mxu0 %v3743
        %v3927 = vpop.f32.mrf.mxu0
        %v3928 = vadd.f32 0.0, %v3927
        %v3929 = vpop.f32.mrf.mxu0
        %3930 = vmatprep.mubr.f32.mxu0 0.0
        %3931 = vmatmul.mubr.f32.gmra.mxu0 %v3746
        %v3932 = vpop.f32.mrf.mxu0
        %v3933 = vadd.f32 0.0, %v3932
        %v3934 = vpop.f32.mrf.mxu0
        %3935 = vmatprep.mubr.f32.mxu0 0.0
        %3936 = vmatmul.mubr.f32.gmra.mxu0 %v3749
        %v3937 = vpop.f32.mrf.mxu0
        %v3938 = vadd.f32 0.0, %v3937
        %v3939 = vpop.f32.mrf.mxu0
        %3940 = vmatprep.mubr.f32.mxu0 0.0
        %3941 = vmatmul.mubr.f32.gmra.mxu0 %v3752
        %v3942 = vpop.f32.mrf.mxu0
        %v3943 = vadd.f32 0.0, %v3942
        %v3944 = vpop.f32.mrf.mxu0
        %3945 = vmatprep.mubr.f32.mxu0 0.0
        %3946 = vmatmul.mubr.f32.gmra.mxu0 %v3755
        %v3947 = vpop.f32.mrf.mxu0
        %v3948 = vadd.f32 0.0, %v3947
        %v3949 = vpop.f32.mrf.mxu0
        %3950 = vmatprep.mubr.f32.mxu0 0.0
        %3951 = vmatmul.mubr.f32.gmra.mxu0 %v3758
        %v3952 = vpop.f32.mrf.mxu0
        %v3953 = vadd.f32 0.0, %v3952
        %v3954 = vpop.f32.mrf.mxu0
        %3955 = vmatprep.mubr.f32.mxu0 0.0
        %3956 = vmatmul.mubr.f32.gmra.mxu0 %v3761
        %v3957 = vpop.f32.mrf.mxu0
        %v3958 = vadd.f32 0.0, %v3957
        %v3959 = vpop.f32.mrf.mxu0
        %3960 = vmatprep.mubr.f32.mxu0 0.0
        %3961 = vmatmul.mubr.f32.gmra.mxu0 %v3764
        %v3962 = vpop.f32.mrf.mxu0
        %v3963 = vadd.f32 0.0, %v3962
        %v3964 = vpop.f32.mrf.mxu0
        %3965 = vmatprep.mubr.f32.mxu0 0.0
        %3966 = vmatmul.mubr.f32.gmra.mxu0 %v3767
        %v3967 = vpop.f32.mrf.mxu0
        %v3968 = vadd.f32 0.0, %v3967
        %v3969 = vpop.f32.mrf.mxu0
        %3970 = vmatprep.mubr.f32.mxu0 0.0
        %3971 = vmatmul.mubr.f32.gmra.mxu0 %v3770
        %v3972 = vpop.f32.mrf.mxu0
        %v3973 = vadd.f32 0.0, %v3972
        %v3974 = vpop.f32.mrf.mxu0
        %3975 = vmatprep.mubr.f32.mxu0 0.0
        %3976 = vmatmul.mubr.f32.gmra.mxu0 %v3773
        %v3977 = vpop.f32.mrf.mxu0
        %v3978 = vadd.f32 0.0, %v3977
        %v3979 = vpop.f32.mrf.mxu0
        %3980 = vmatprep.mubr.f32.mxu0 0.0
        %3981 = vmatmul.mubr.f32.gmra.mxu0 %v3776
        %v3982 = vpop.f32.mrf.mxu0
        %v3983 = vadd.f32 0.0, %v3982
        %v3984 = vpop.f32.mrf.mxu0
        %3985 = vmatprep.mubr.f32.mxu0 0.0
        %3986 = vmatmul.mubr.f32.gmra.mxu0 %v3779
        %v3987 = vpop.f32.mrf.mxu0
        %v3988 = vadd.f32 0.0, %v3987
        %v3989 = vpop.f32.mrf.mxu0
        %3990 = vmatprep.mubr.f32.mxu0 0.0
        %3991 = vmatmul.mubr.f32.gmra.mxu0 %v3782
        %v3992 = vpop.f32.mrf.mxu0
        %v3993 = vadd.f32 0.0, %v3992
        %v3994 = vpop.f32.mrf.mxu0
        %3995 = vmatprep.mubr.f32.mxu0 0.0
        %3996 = vmatmul.mubr.f32.gmra.mxu0 %v3785
        %v3997 = vpop.f32.mrf.mxu0
        %v3998 = vadd.f32 0.0, %v3997
        %v3999 = vpop.f32.mrf.mxu0
        %4000 = vmatprep.mubr.f32.mxu0 0.0
        %4001 = vmatmul.mubr.f32.gmra.mxu0 %v3788
        %v4002 = vpop.f32.mrf.mxu0
        %v4003 = vadd.f32 0.0, %v4002
        %v4004 = vpop.f32.mrf.mxu0
        %4005 = vmatprep.mubr.f32.mxu0 0.0
        %4006 = vmatmul.mubr.f32.gmra.mxu0 %v3791
        %v4007 = vpop.f32.mrf.mxu0
        %v4008 = vadd.f32 0.0, %v4007
        %v4009 = vpop.f32.mrf.mxu0
        %4010 = vmatprep.mubr.f32.mxu0 0.0
        %4011 = vmatmul.mubr.f32.gmra.mxu0 %v3794
        %v4012 = vpop.f32.mrf.mxu0
        %v4013 = vadd.f32 0.0, %v4012
        %v4014 = vpop.f32.mrf.mxu0
        %4015 = vmatprep.mubr.f32.mxu0 0.0
        %4016 = vmatmul.mubr.f32.gmra.mxu0 %v3797
        %v4017 = vpop.f32.mrf.mxu0
        %v4018 = vadd.f32 0.0, %v4017
        %v4019 = vpop.f32.mrf.mxu0
        %4020 = vmatprep.mubr.f32.mxu0 0.0
        %4021 = vmatmul.mubr.f32.gmra.mxu0 %v3800
        %v4022 = vpop.f32.mrf.mxu0
        %v4023 = vadd.f32 0.0, %v4022
        %v4024 = vpop.f32.mrf.mxu0
        %4025 = vmatprep.mubr.f32.mxu0 0.0
        %4026 = vmatmul.mubr.f32.gmra.mxu0 %v3803
        %v4027 = vpop.f32.mrf.mxu0
        %v4028 = vadd.f32 0.0, %v4027
        %v4029 = vpop.f32.mrf.mxu0
        %4030 = vmatprep.mubr.f32.mxu0 0.0
        %4031 = vmatmul.mubr.f32.gmra.mxu0 %v3806
        %v4032 = vpop.f32.mrf.mxu0
        %v4033 = vadd.f32 0.0, %v4032
        %v4034 = vpop.f32.mrf.mxu0
        %4035 = vdwg.mxu0
        %v4068 = vcombine.high %v3878, %v3878
        %v4070 = vunpack.c.l.s4 1983009808
        %v4071 = vunpack.c.0.s8 %v4070
        %v4072 = vlaneseq
        %v4073 = vshrl.u32 %v4072, 7
        %v4074 = vsub.s32 %v4071, %v4073
        %v4075 = vrot.slane %v3878, %v4074
        %v4077 = vunpack.c.l.s4 1983009808
        %v4078 = vunpack.c.0.s8 %v4077
        %v4079 = vlaneseq
        %v4080 = vshrl.u32 %v4079, 7
        %v4081 = vsub.s32 %v4078, %v4080
        %v4082 = vrot.slane %v4068, %v4081
        %v4083 = vcombine.high %v4075, %v4075
        %v4084 = vcombine.high %v4082, %v4082
        %v4085 = vcombine.high %v3883, %v3883
        %v4087 = vunpack.c.l.s4 1983009808
        %v4088 = vunpack.c.0.s8 %v4087
        %v4089 = vlaneseq
        %v4090 = vshrl.u32 %v4089, 7
        %v4091 = vsub.s32 %v4088, %v4090
        %v4092 = vrot.slane %v3883, %v4091
        %v4094 = vunpack.c.l.s4 1983009808
        %v4095 = vunpack.c.0.s8 %v4094
        %v4096 = vlaneseq
        %v4097 = vshrl.u32 %v4096, 7
        %v4098 = vsub.s32 %v4095, %v4097
        %v4099 = vrot.slane %v4085, %v4098
        %v4100 = vcombine.high %v4092, %v4092
        %v4101 = vcombine.high %v4099, %v4099
        %v4102 = vcombine.high %v3888, %v3888
        %v4104 = vunpack.c.l.s4 1983009808
        %v4105 = vunpack.c.0.s8 %v4104
        %v4106 = vlaneseq
        %v4107 = vshrl.u32 %v4106, 7
        %v4108 = vsub.s32 %v4105, %v4107
        %v4109 = vrot.slane %v3888, %v4108
        %v4111 = vunpack.c.l.s4 1983009808
        %v4112 = vunpack.c.0.s8 %v4111
        %v4113 = vlaneseq
        %v4114 = vshrl.u32 %v4113, 7
        %v4115 = vsub.s32 %v4112, %v4114
        %v4116 = vrot.slane %v4102, %v4115
        %v4117 = vcombine.high %v4109, %v4109
        %v4118 = vcombine.high %v4116, %v4116
        %v4119 = vcombine.high %v3893, %v3893
        %v4121 = vunpack.c.l.s4 1983009808
        %v4122 = vunpack.c.0.s8 %v4121
        %v4123 = vlaneseq
        %v4124 = vshrl.u32 %v4123, 7
        %v4125 = vsub.s32 %v4122, %v4124
        %v4126 = vrot.slane %v3893, %v4125
        %v4128 = vunpack.c.l.s4 1983009808
        %v4129 = vunpack.c.0.s8 %v4128
        %v4130 = vlaneseq
        %v4131 = vshrl.u32 %v4130, 7
        %v4132 = vsub.s32 %v4129, %v4131
        %v4133 = vrot.slane %v4119, %v4132
        %v4134 = vcombine.high %v4126, %v4126
        %v4135 = vcombine.high %v4133, %v4133
        %v4136 = vcombine.high %v3898, %v3898
        %v4138 = vunpack.c.l.s4 1983009808
        %v4139 = vunpack.c.0.s8 %v4138
        %v4140 = vlaneseq
        %v4141 = vshrl.u32 %v4140, 7
        %v4142 = vsub.s32 %v4139, %v4141
        %v4143 = vrot.slane %v3898, %v4142
        %v4145 = vunpack.c.l.s4 1983009808
        %v4146 = vunpack.c.0.s8 %v4145
        %v4147 = vlaneseq
        %v4148 = vshrl.u32 %v4147, 7
        %v4149 = vsub.s32 %v4146, %v4148
        %v4150 = vrot.slane %v4136, %v4149
        %v4151 = vcombine.high %v4143, %v4143
        %v4152 = vcombine.high %v4150, %v4150
        %v4153 = vcombine.high %v3903, %v3903
        %v4155 = vunpack.c.l.s4 1983009808
        %v4156 = vunpack.c.0.s8 %v4155
        %v4157 = vlaneseq
        %v4158 = vshrl.u32 %v4157, 7
        %v4159 = vsub.s32 %v4156, %v4158
        %v4160 = vrot.slane %v3903, %v4159
        %v4162 = vunpack.c.l.s4 1983009808
        %v4163 = vunpack.c.0.s8 %v4162
        %v4164 = vlaneseq
        %v4165 = vshrl.u32 %v4164, 7
        %v4166 = vsub.s32 %v4163, %v4165
        %v4167 = vrot.slane %v4153, %v4166
        %v4168 = vcombine.high %v4160, %v4160
        %v4169 = vcombine.high %v4167, %v4167
        %v4170 = vcombine.high %v3908, %v3908
        %v4172 = vunpack.c.l.s4 1983009808
        %v4173 = vunpack.c.0.s8 %v4172
        %v4174 = vlaneseq
        %v4175 = vshrl.u32 %v4174, 7
        %v4176 = vsub.s32 %v4173, %v4175
        %v4177 = vrot.slane %v3908, %v4176
        %v4179 = vunpack.c.l.s4 1983009808
        %v4180 = vunpack.c.0.s8 %v4179
        %v4181 = vlaneseq
        %v4182 = vshrl.u32 %v4181, 7
        %v4183 = vsub.s32 %v4180, %v4182
        %v4184 = vrot.slane %v4170, %v4183
        %v4185 = vcombine.high %v4177, %v4177
        %v4186 = vcombine.high %v4184, %v4184
        %v4187 = vcombine.high %v3913, %v3913
        %v4189 = vunpack.c.l.s4 1983009808
        %v4190 = vunpack.c.0.s8 %v4189
        %v4191 = vlaneseq
        %v4192 = vshrl.u32 %v4191, 7
        %v4193 = vsub.s32 %v4190, %v4192
        %v4194 = vrot.slane %v3913, %v4193
        %v4196 = vunpack.c.l.s4 1983009808
        %v4197 = vunpack.c.0.s8 %v4196
        %v4198 = vlaneseq
        %v4199 = vshrl.u32 %v4198, 7
        %v4200 = vsub.s32 %v4197, %v4199
        %v4201 = vrot.slane %v4187, %v4200
        %v4202 = vcombine.high %v4194, %v4194
        %v4203 = vcombine.high %v4201, %v4201
        %v4204 = vcombine.high %v3918, %v3918
        %v4206 = vunpack.c.l.s4 1983009808
        %v4207 = vunpack.c.0.s8 %v4206
        %v4208 = vlaneseq
        %v4209 = vshrl.u32 %v4208, 7
        %v4210 = vsub.s32 %v4207, %v4209
        %v4211 = vrot.slane %v3918, %v4210
        %v4213 = vunpack.c.l.s4 1983009808
        %v4214 = vunpack.c.0.s8 %v4213
        %v4215 = vlaneseq
        %v4216 = vshrl.u32 %v4215, 7
        %v4217 = vsub.s32 %v4214, %v4216
        %v4218 = vrot.slane %v4204, %v4217
        %v4219 = vcombine.high %v4211, %v4211
        %v4220 = vcombine.high %v4218, %v4218
        %v4221 = vcombine.high %v3923, %v3923
        %v4223 = vunpack.c.l.s4 1983009808
        %v4224 = vunpack.c.0.s8 %v4223
        %v4225 = vlaneseq
        %v4226 = vshrl.u32 %v4225, 7
        %v4227 = vsub.s32 %v4224, %v4226
        %v4228 = vrot.slane %v3923, %v4227
        %v4230 = vunpack.c.l.s4 1983009808
        %v4231 = vunpack.c.0.s8 %v4230
        %v4232 = vlaneseq
        %v4233 = vshrl.u32 %v4232, 7
        %v4234 = vsub.s32 %v4231, %v4233
        %v4235 = vrot.slane %v4221, %v4234
        %v4236 = vcombine.high %v4228, %v4228
        %v4237 = vcombine.high %v4235, %v4235
        %v4238 = vcombine.high %v3928, %v3928
        %v4240 = vunpack.c.l.s4 1983009808
        %v4241 = vunpack.c.0.s8 %v4240
        %v4242 = vlaneseq
        %v4243 = vshrl.u32 %v4242, 7
        %v4244 = vsub.s32 %v4241, %v4243
        %v4245 = vrot.slane %v3928, %v4244
        %v4247 = vunpack.c.l.s4 1983009808
        %v4248 = vunpack.c.0.s8 %v4247
        %v4249 = vlaneseq
        %v4250 = vshrl.u32 %v4249, 7
        %v4251 = vsub.s32 %v4248, %v4250
        %v4252 = vrot.slane %v4238, %v4251
        %v4253 = vcombine.high %v4245, %v4245
        %v4254 = vcombine.high %v4252, %v4252
        %v4255 = vcombine.high %v3933, %v3933
        %v4257 = vunpack.c.l.s4 1983009808
        %v4258 = vunpack.c.0.s8 %v4257
        %v4259 = vlaneseq
        %v4260 = vshrl.u32 %v4259, 7
        %v4261 = vsub.s32 %v4258, %v4260
        %v4262 = vrot.slane %v3933, %v4261
        %v4264 = vunpack.c.l.s4 1983009808
        %v4265 = vunpack.c.0.s8 %v4264
        %v4266 = vlaneseq
        %v4267 = vshrl.u32 %v4266, 7
        %v4268 = vsub.s32 %v4265, %v4267
        %v4269 = vrot.slane %v4255, %v4268
        %v4270 = vcombine.high %v4262, %v4262
        %v4271 = vcombine.high %v4269, %v4269
        %v4272 = vcombine.high %v3938, %v3938
        %v4274 = vunpack.c.l.s4 1983009808
        %v4275 = vunpack.c.0.s8 %v4274
        %v4276 = vlaneseq
        %v4277 = vshrl.u32 %v4276, 7
        %v4278 = vsub.s32 %v4275, %v4277
        %v4279 = vrot.slane %v3938, %v4278
        %v4281 = vunpack.c.l.s4 1983009808
        %v4282 = vunpack.c.0.s8 %v4281
        %v4283 = vlaneseq
        %v4284 = vshrl.u32 %v4283, 7
        %v4285 = vsub.s32 %v4282, %v4284
        %v4286 = vrot.slane %v4272, %v4285
        %v4287 = vcombine.high %v4279, %v4279
        %v4288 = vcombine.high %v4286, %v4286
        %v4289 = vcombine.high %v3943, %v3943
        %v4291 = vunpack.c.l.s4 1983009808
        %v4292 = vunpack.c.0.s8 %v4291
        %v4293 = vlaneseq
        %v4294 = vshrl.u32 %v4293, 7
        %v4295 = vsub.s32 %v4292, %v4294
        %v4296 = vrot.slane %v3943, %v4295
        %v4298 = vunpack.c.l.s4 1983009808
        %v4299 = vunpack.c.0.s8 %v4298
        %v4300 = vlaneseq
        %v4301 = vshrl.u32 %v4300, 7
        %v4302 = vsub.s32 %v4299, %v4301
        %v4303 = vrot.slane %v4289, %v4302
        %v4304 = vcombine.high %v4296, %v4296
        %v4305 = vcombine.high %v4303, %v4303
        %v4306 = vcombine.high %v3948, %v3948
        %v4308 = vunpack.c.l.s4 1983009808
        %v4309 = vunpack.c.0.s8 %v4308
        %v4310 = vlaneseq
        %v4311 = vshrl.u32 %v4310, 7
        %v4312 = vsub.s32 %v4309, %v4311
        %v4313 = vrot.slane %v3948, %v4312
        %v4315 = vunpack.c.l.s4 1983009808
        %v4316 = vunpack.c.0.s8 %v4315
        %v4317 = vlaneseq
        %v4318 = vshrl.u32 %v4317, 7
        %v4319 = vsub.s32 %v4316, %v4318
        %v4320 = vrot.slane %v4306, %v4319
        %v4321 = vcombine.high %v4313, %v4313
        %v4322 = vcombine.high %v4320, %v4320
        %v4323 = vcombine.high %v3953, %v3953
        %v4325 = vunpack.c.l.s4 1983009808
        %v4326 = vunpack.c.0.s8 %v4325
        %v4327 = vlaneseq
        %v4328 = vshrl.u32 %v4327, 7
        %v4329 = vsub.s32 %v4326, %v4328
        %v4330 = vrot.slane %v3953, %v4329
        %v4332 = vunpack.c.l.s4 1983009808
        %v4333 = vunpack.c.0.s8 %v4332
        %v4334 = vlaneseq
        %v4335 = vshrl.u32 %v4334, 7
        %v4336 = vsub.s32 %v4333, %v4335
        %v4337 = vrot.slane %v4323, %v4336
        %v4338 = vcombine.high %v4330, %v4330
        %v4339 = vcombine.high %v4337, %v4337
        %v4340 = vcombine.high %v3958, %v3958
        %v4342 = vunpack.c.l.s4 1983009808
        %v4343 = vunpack.c.0.s8 %v4342
        %v4344 = vlaneseq
        %v4345 = vshrl.u32 %v4344, 7
        %v4346 = vsub.s32 %v4343, %v4345
        %v4347 = vrot.slane %v3958, %v4346
        %v4349 = vunpack.c.l.s4 1983009808
        %v4350 = vunpack.c.0.s8 %v4349
        %v4351 = vlaneseq
        %v4352 = vshrl.u32 %v4351, 7
        %v4353 = vsub.s32 %v4350, %v4352
        %v4354 = vrot.slane %v4340, %v4353
        %v4355 = vcombine.high %v4347, %v4347
        %v4356 = vcombine.high %v4354, %v4354
        %v4357 = vcombine.high %v3963, %v3963
        %v4359 = vunpack.c.l.s4 1983009808
        %v4360 = vunpack.c.0.s8 %v4359
        %v4361 = vlaneseq
        %v4362 = vshrl.u32 %v4361, 7
        %v4363 = vsub.s32 %v4360, %v4362
        %v4364 = vrot.slane %v3963, %v4363
        %v4366 = vunpack.c.l.s4 1983009808
        %v4367 = vunpack.c.0.s8 %v4366
        %v4368 = vlaneseq
        %v4369 = vshrl.u32 %v4368, 7
        %v4370 = vsub.s32 %v4367, %v4369
        %v4371 = vrot.slane %v4357, %v4370
        %v4372 = vcombine.high %v4364, %v4364
        %v4373 = vcombine.high %v4371, %v4371
        %v4374 = vcombine.high %v3968, %v3968
        %v4376 = vunpack.c.l.s4 1983009808
        %v4377 = vunpack.c.0.s8 %v4376
        %v4378 = vlaneseq
        %v4379 = vshrl.u32 %v4378, 7
        %v4380 = vsub.s32 %v4377, %v4379
        %v4381 = vrot.slane %v3968, %v4380
        %v4383 = vunpack.c.l.s4 1983009808
        %v4384 = vunpack.c.0.s8 %v4383
        %v4385 = vlaneseq
        %v4386 = vshrl.u32 %v4385, 7
        %v4387 = vsub.s32 %v4384, %v4386
        %v4388 = vrot.slane %v4374, %v4387
        %v4389 = vcombine.high %v4381, %v4381
        %v4390 = vcombine.high %v4388, %v4388
        %v4391 = vcombine.high %v3973, %v3973
        %v4393 = vunpack.c.l.s4 1983009808
        %v4394 = vunpack.c.0.s8 %v4393
        %v4395 = vlaneseq
        %v4396 = vshrl.u32 %v4395, 7
        %v4397 = vsub.s32 %v4394, %v4396
        %v4398 = vrot.slane %v3973, %v4397
        %v4400 = vunpack.c.l.s4 1983009808
        %v4401 = vunpack.c.0.s8 %v4400
        %v4402 = vlaneseq
        %v4403 = vshrl.u32 %v4402, 7
        %v4404 = vsub.s32 %v4401, %v4403
        %v4405 = vrot.slane %v4391, %v4404
        %v4406 = vcombine.high %v4398, %v4398
        %v4407 = vcombine.high %v4405, %v4405
        %v4408 = vcombine.high %v3978, %v3978
        %v4410 = vunpack.c.l.s4 1983009808
        %v4411 = vunpack.c.0.s8 %v4410
        %v4412 = vlaneseq
        %v4413 = vshrl.u32 %v4412, 7
        %v4414 = vsub.s32 %v4411, %v4413
        %v4415 = vrot.slane %v3978, %v4414
        %v4417 = vunpack.c.l.s4 1983009808
        %v4418 = vunpack.c.0.s8 %v4417
        %v4419 = vlaneseq
        %v4420 = vshrl.u32 %v4419, 7
        %v4421 = vsub.s32 %v4418, %v4420
        %v4422 = vrot.slane %v4408, %v4421
        %v4423 = vcombine.high %v4415, %v4415
        %v4424 = vcombine.high %v4422, %v4422
        %v4425 = vcombine.high %v3983, %v3983
        %v4427 = vunpack.c.l.s4 1983009808
        %v4428 = vunpack.c.0.s8 %v4427
        %v4429 = vlaneseq
        %v4430 = vshrl.u32 %v4429, 7
        %v4431 = vsub.s32 %v4428, %v4430
        %v4432 = vrot.slane %v3983, %v4431
        %v4434 = vunpack.c.l.s4 1983009808
        %v4435 = vunpack.c.0.s8 %v4434
        %v4436 = vlaneseq
        %v4437 = vshrl.u32 %v4436, 7
        %v4438 = vsub.s32 %v4435, %v4437
        %v4439 = vrot.slane %v4425, %v4438
        %v4440 = vcombine.high %v4432, %v4432
        %v4441 = vcombine.high %v4439, %v4439
        %v4442 = vcombine.high %v3988, %v3988
        %v4444 = vunpack.c.l.s4 1983009808
        %v4445 = vunpack.c.0.s8 %v4444
        %v4446 = vlaneseq
        %v4447 = vshrl.u32 %v4446, 7
        %v4448 = vsub.s32 %v4445, %v4447
        %v4449 = vrot.slane %v3988, %v4448
        %v4451 = vunpack.c.l.s4 1983009808
        %v4452 = vunpack.c.0.s8 %v4451
        %v4453 = vlaneseq
        %v4454 = vshrl.u32 %v4453, 7
        %v4455 = vsub.s32 %v4452, %v4454
        %v4456 = vrot.slane %v4442, %v4455
        %v4457 = vcombine.high %v4449, %v4449
        %v4458 = vcombine.high %v4456, %v4456
        %v4459 = vcombine.high %v3993, %v3993
        %v4461 = vunpack.c.l.s4 1983009808
        %v4462 = vunpack.c.0.s8 %v4461
        %v4463 = vlaneseq
        %v4464 = vshrl.u32 %v4463, 7
        %v4465 = vsub.s32 %v4462, %v4464
        %v4466 = vrot.slane %v3993, %v4465
        %v4468 = vunpack.c.l.s4 1983009808
        %v4469 = vunpack.c.0.s8 %v4468
        %v4470 = vlaneseq
        %v4471 = vshrl.u32 %v4470, 7
        %v4472 = vsub.s32 %v4469, %v4471
        %v4473 = vrot.slane %v4459, %v4472
        %v4474 = vcombine.high %v4466, %v4466
        %v4475 = vcombine.high %v4473, %v4473
        %v4476 = vcombine.high %v3998, %v3998
        %v4478 = vunpack.c.l.s4 1983009808
        %v4479 = vunpack.c.0.s8 %v4478
        %v4480 = vlaneseq
        %v4481 = vshrl.u32 %v4480, 7
        %v4482 = vsub.s32 %v4479, %v4481
        %v4483 = vrot.slane %v3998, %v4482
        %v4485 = vunpack.c.l.s4 1983009808
        %v4486 = vunpack.c.0.s8 %v4485
        %v4487 = vlaneseq
        %v4488 = vshrl.u32 %v4487, 7
        %v4489 = vsub.s32 %v4486, %v4488
        %v4490 = vrot.slane %v4476, %v4489
        %v4491 = vcombine.high %v4483, %v4483
        %v4492 = vcombine.high %v4490, %v4490
        %v4493 = vcombine.high %v4003, %v4003
        %v4495 = vunpack.c.l.s4 1983009808
        %v4496 = vunpack.c.0.s8 %v4495
        %v4497 = vlaneseq
        %v4498 = vshrl.u32 %v4497, 7
        %v4499 = vsub.s32 %v4496, %v4498
        %v4500 = vrot.slane %v4003, %v4499
        %v4502 = vunpack.c.l.s4 1983009808
        %v4503 = vunpack.c.0.s8 %v4502
        %v4504 = vlaneseq
        %v4505 = vshrl.u32 %v4504, 7
        %v4506 = vsub.s32 %v4503, %v4505
        %v4507 = vrot.slane %v4493, %v4506
        %v4508 = vcombine.high %v4500, %v4500
        %v4509 = vcombine.high %v4507, %v4507
        %v4510 = vcombine.high %v4008, %v4008
        %v4512 = vunpack.c.l.s4 1983009808
        %v4513 = vunpack.c.0.s8 %v4512
        %v4514 = vlaneseq
        %v4515 = vshrl.u32 %v4514, 7
        %v4516 = vsub.s32 %v4513, %v4515
        %v4517 = vrot.slane %v4008, %v4516
        %v4519 = vunpack.c.l.s4 1983009808
        %v4520 = vunpack.c.0.s8 %v4519
        %v4521 = vlaneseq
        %v4522 = vshrl.u32 %v4521, 7
        %v4523 = vsub.s32 %v4520, %v4522
        %v4524 = vrot.slane %v4510, %v4523
        %v4525 = vcombine.high %v4517, %v4517
        %v4526 = vcombine.high %v4524, %v4524
        %v4527 = vcombine.high %v4013, %v4013
        %v4529 = vunpack.c.l.s4 1983009808
        %v4530 = vunpack.c.0.s8 %v4529
        %v4531 = vlaneseq
        %v4532 = vshrl.u32 %v4531, 7
        %v4533 = vsub.s32 %v4530, %v4532
        %v4534 = vrot.slane %v4013, %v4533
        %v4536 = vunpack.c.l.s4 1983009808
        %v4537 = vunpack.c.0.s8 %v4536
        %v4538 = vlaneseq
        %v4539 = vshrl.u32 %v4538, 7
        %v4540 = vsub.s32 %v4537, %v4539
        %v4541 = vrot.slane %v4527, %v4540
        %v4542 = vcombine.high %v4534, %v4534
        %v4543 = vcombine.high %v4541, %v4541
        %v4544 = vcombine.high %v4018, %v4018
        %v4546 = vunpack.c.l.s4 1983009808
        %v4547 = vunpack.c.0.s8 %v4546
        %v4548 = vlaneseq
        %v4549 = vshrl.u32 %v4548, 7
        %v4550 = vsub.s32 %v4547, %v4549
        %v4551 = vrot.slane %v4018, %v4550
        %v4553 = vunpack.c.l.s4 1983009808
        %v4554 = vunpack.c.0.s8 %v4553
        %v4555 = vlaneseq
        %v4556 = vshrl.u32 %v4555, 7
        %v4557 = vsub.s32 %v4554, %v4556
        %v4558 = vrot.slane %v4544, %v4557
        %v4559 = vcombine.high %v4551, %v4551
        %v4560 = vcombine.high %v4558, %v4558
        %v4561 = vcombine.high %v4023, %v4023
        %v4563 = vunpack.c.l.s4 1983009808
        %v4564 = vunpack.c.0.s8 %v4563
        %v4565 = vlaneseq
        %v4566 = vshrl.u32 %v4565, 7
        %v4567 = vsub.s32 %v4564, %v4566
        %v4568 = vrot.slane %v4023, %v4567
        %v4570 = vunpack.c.l.s4 1983009808
        %v4571 = vunpack.c.0.s8 %v4570
        %v4572 = vlaneseq
        %v4573 = vshrl.u32 %v4572, 7
        %v4574 = vsub.s32 %v4571, %v4573
        %v4575 = vrot.slane %v4561, %v4574
        %v4576 = vcombine.high %v4568, %v4568
        %v4577 = vcombine.high %v4575, %v4575
        %v4578 = vcombine.high %v4028, %v4028
        %v4580 = vunpack.c.l.s4 1983009808
        %v4581 = vunpack.c.0.s8 %v4580
        %v4582 = vlaneseq
        %v4583 = vshrl.u32 %v4582, 7
        %v4584 = vsub.s32 %v4581, %v4583
        %v4585 = vrot.slane %v4028, %v4584
        %v4587 = vunpack.c.l.s4 1983009808
        %v4588 = vunpack.c.0.s8 %v4587
        %v4589 = vlaneseq
        %v4590 = vshrl.u32 %v4589, 7
        %v4591 = vsub.s32 %v4588, %v4590
        %v4592 = vrot.slane %v4578, %v4591
        %v4593 = vcombine.high %v4585, %v4585
        %v4594 = vcombine.high %v4592, %v4592
        %v4595 = vcombine.high %v4033, %v4033
        %v4597 = vunpack.c.l.s4 1983009808
        %v4598 = vunpack.c.0.s8 %v4597
        %v4599 = vlaneseq
        %v4600 = vshrl.u32 %v4599, 7
        %v4601 = vsub.s32 %v4598, %v4600
        %v4602 = vrot.slane %v4033, %v4601
        %v4604 = vunpack.c.l.s4 1983009808
        %v4605 = vunpack.c.0.s8 %v4604
        %v4606 = vlaneseq
        %v4607 = vshrl.u32 %v4606, 7
        %v4608 = vsub.s32 %v4605, %v4607
        %v4609 = vrot.slane %v4595, %v4608
        %v4610 = vcombine.high %v4602, %v4602
        %v4611 = vcombine.high %v4609, %v4609
        %v4740 = vrot.slane %v4075, 7
        %v4741 = vrot.slane %v4740, 2
        %v4742 = vrot.slane %v4083, 7
        %v4743 = vrot.slane %v4742, 2
        %v4744 = vrot.slane %v4082, 7
        %v4745 = vrot.slane %v4744, 2
        %v4746 = vrot.slane %v4084, 7
        %v4747 = vrot.slane %v4746, 2
        %v4748 = vrot.slane %v4092, 7
        %v4749 = vrot.slane %v4748, 2
        %v4750 = vrot.slane %v4100, 7
        %v4751 = vrot.slane %v4750, 2
        %v4752 = vrot.slane %v4099, 7
        %v4753 = vrot.slane %v4752, 2
        %v4754 = vrot.slane %v4101, 7
        %v4755 = vrot.slane %v4754, 2
        %v4756 = vrot.slane %v4143, 7
        %v4757 = vrot.slane %v4756, 2
        %v4758 = vrot.slane %v4151, 7
        %v4759 = vrot.slane %v4758, 2
        %v4760 = vrot.slane %v4150, 7
        %v4761 = vrot.slane %v4760, 2
        %v4762 = vrot.slane %v4152, 7
        %v4763 = vrot.slane %v4762, 2
        %v4764 = vrot.slane %v4160, 7
        %v4765 = vrot.slane %v4764, 2
        %v4766 = vrot.slane %v4168, 7
        %v4767 = vrot.slane %v4766, 2
        %v4768 = vrot.slane %v4167, 7
        %v4769 = vrot.slane %v4768, 2
        %v4770 = vrot.slane %v4169, 7
        %v4771 = vrot.slane %v4770, 2
        %v4772 = vrot.slane %v4211, 7
        %v4773 = vrot.slane %v4772, 2
        %v4774 = vrot.slane %v4219, 7
        %v4775 = vrot.slane %v4774, 2
        %v4776 = vrot.slane %v4218, 7
        %v4777 = vrot.slane %v4776, 2
        %v4778 = vrot.slane %v4220, 7
        %v4779 = vrot.slane %v4778, 2
        %v4780 = vrot.slane %v4228, 7
        %v4781 = vrot.slane %v4780, 2
        %v4782 = vrot.slane %v4236, 7
        %v4783 = vrot.slane %v4782, 2
        %v4784 = vrot.slane %v4235, 7
        %v4785 = vrot.slane %v4784, 2
        %v4786 = vrot.slane %v4237, 7
        %v4787 = vrot.slane %v4786, 2
        %v4788 = vrot.slane %v4279, 7
        %v4789 = vrot.slane %v4788, 2
        %v4790 = vrot.slane %v4287, 7
        %v4791 = vrot.slane %v4790, 2
        %v4792 = vrot.slane %v4286, 7
        %v4793 = vrot.slane %v4792, 2
        %v4794 = vrot.slane %v4288, 7
        %v4795 = vrot.slane %v4794, 2
        %v4796 = vrot.slane %v4296, 7
        %v4797 = vrot.slane %v4796, 2
        %v4798 = vrot.slane %v4304, 7
        %v4799 = vrot.slane %v4798, 2
        %v4800 = vrot.slane %v4303, 7
        %v4801 = vrot.slane %v4800, 2
        %v4802 = vrot.slane %v4305, 7
        %v4803 = vrot.slane %v4802, 2
        %v4804 = vrot.slane %v4347, 7
        %v4805 = vrot.slane %v4804, 2
        %v4806 = vrot.slane %v4355, 7
        %v4807 = vrot.slane %v4806, 2
        %v4808 = vrot.slane %v4354, 7
        %v4809 = vrot.slane %v4808, 2
        %v4810 = vrot.slane %v4356, 7
        %v4811 = vrot.slane %v4810, 2
        %v4812 = vrot.slane %v4364, 7
        %v4813 = vrot.slane %v4812, 2
        %v4814 = vrot.slane %v4372, 7
        %v4815 = vrot.slane %v4814, 2
        %v4816 = vrot.slane %v4371, 7
        %v4817 = vrot.slane %v4816, 2
        %v4818 = vrot.slane %v4373, 7
        %v4819 = vrot.slane %v4818, 2
        %v4820 = vrot.slane %v4415, 7
        %v4821 = vrot.slane %v4820, 2
        %v4822 = vrot.slane %v4423, 7
        %v4823 = vrot.slane %v4822, 2
        %v4824 = vrot.slane %v4422, 7
        %v4825 = vrot.slane %v4824, 2
        %v4826 = vrot.slane %v4424, 7
        %v4827 = vrot.slane %v4826, 2
        %v4828 = vrot.slane %v4432, 7
        %v4829 = vrot.slane %v4828, 2
        %v4830 = vrot.slane %v4440, 7
        %v4831 = vrot.slane %v4830, 2
        %v4832 = vrot.slane %v4439, 7
        %v4833 = vrot.slane %v4832, 2
        %v4834 = vrot.slane %v4441, 7
        %v4835 = vrot.slane %v4834, 2
        %v4836 = vrot.slane %v4483, 7
        %v4837 = vrot.slane %v4836, 2
        %v4838 = vrot.slane %v4491, 7
        %v4839 = vrot.slane %v4838, 2
        %v4840 = vrot.slane %v4490, 7
        %v4841 = vrot.slane %v4840, 2
        %v4842 = vrot.slane %v4492, 7
        %v4843 = vrot.slane %v4842, 2
        %v4844 = vrot.slane %v4500, 7
        %v4845 = vrot.slane %v4844, 2
        %v4846 = vrot.slane %v4508, 7
        %v4847 = vrot.slane %v4846, 2
        %v4848 = vrot.slane %v4507, 7
        %v4849 = vrot.slane %v4848, 2
        %v4850 = vrot.slane %v4509, 7
        %v4851 = vrot.slane %v4850, 2
        %v4852 = vrot.slane %v4551, 7
        %v4853 = vrot.slane %v4852, 2
        %v4854 = vrot.slane %v4559, 7
        %v4855 = vrot.slane %v4854, 2
        %v4856 = vrot.slane %v4558, 7
        %v4857 = vrot.slane %v4856, 2
        %v4858 = vrot.slane %v4560, 7
        %v4859 = vrot.slane %v4858, 2
        %v4860 = vrot.slane %v4568, 7
        %v4861 = vrot.slane %v4860, 2
        %v4862 = vrot.slane %v4576, 7
        %v4863 = vrot.slane %v4862, 2
        %v4864 = vrot.slane %v4575, 7
        %v4865 = vrot.slane %v4864, 2
        %v4866 = vrot.slane %v4577, 7
        %v4867 = vrot.slane %v4866, 2
        %v4932 = vadd.f32 %v4075, %v4741
        %v4933 = vadd.f32 %v4083, %v4743
        %v4934 = vadd.f32 %v4082, %v4745
        %v4935 = vadd.f32 %v4084, %v4747
        %v4936 = vadd.f32 %v4092, %v4749
        %v4937 = vadd.f32 %v4100, %v4751
        %v4938 = vadd.f32 %v4099, %v4753
        %v4939 = vadd.f32 %v4101, %v4755
        %v4940 = vadd.f32 %v4143, %v4757
        %v4941 = vadd.f32 %v4151, %v4759
        %v4942 = vadd.f32 %v4150, %v4761
        %v4943 = vadd.f32 %v4152, %v4763
        %v4944 = vadd.f32 %v4160, %v4765
        %v4945 = vadd.f32 %v4168, %v4767
        %v4946 = vadd.f32 %v4167, %v4769
        %v4947 = vadd.f32 %v4169, %v4771
        %v4948 = vadd.f32 %v4211, %v4773
        %v4949 = vadd.f32 %v4219, %v4775
        %v4950 = vadd.f32 %v4218, %v4777
        %v4951 = vadd.f32 %v4220, %v4779
        %v4952 = vadd.f32 %v4228, %v4781
        %v4953 = vadd.f32 %v4236, %v4783
        %v4954 = vadd.f32 %v4235, %v4785
        %v4955 = vadd.f32 %v4237, %v4787
        %v4956 = vadd.f32 %v4279, %v4789
        %v4957 = vadd.f32 %v4287, %v4791
        %v4958 = vadd.f32 %v4286, %v4793
        %v4959 = vadd.f32 %v4288, %v4795
        %v4960 = vadd.f32 %v4296, %v4797
        %v4961 = vadd.f32 %v4304, %v4799
        %v4962 = vadd.f32 %v4303, %v4801
        %v4963 = vadd.f32 %v4305, %v4803
        %v4964 = vadd.f32 %v4347, %v4805
        %v4965 = vadd.f32 %v4355, %v4807
        %v4966 = vadd.f32 %v4354, %v4809
        %v4967 = vadd.f32 %v4356, %v4811
        %v4968 = vadd.f32 %v4364, %v4813
        %v4969 = vadd.f32 %v4372, %v4815
        %v4970 = vadd.f32 %v4371, %v4817
        %v4971 = vadd.f32 %v4373, %v4819
        %v4972 = vadd.f32 %v4415, %v4821
        %v4973 = vadd.f32 %v4423, %v4823
        %v4974 = vadd.f32 %v4422, %v4825
        %v4975 = vadd.f32 %v4424, %v4827
        %v4976 = vadd.f32 %v4432, %v4829
        %v4977 = vadd.f32 %v4440, %v4831
        %v4978 = vadd.f32 %v4439, %v4833
        %v4979 = vadd.f32 %v4441, %v4835
        %v4980 = vadd.f32 %v4483, %v4837
        %v4981 = vadd.f32 %v4491, %v4839
        %v4982 = vadd.f32 %v4490, %v4841
        %v4983 = vadd.f32 %v4492, %v4843
        %v4984 = vadd.f32 %v4500, %v4845
        %v4985 = vadd.f32 %v4508, %v4847
        %v4986 = vadd.f32 %v4507, %v4849
        %v4987 = vadd.f32 %v4509, %v4851
        %v4988 = vadd.f32 %v4551, %v4853
        %v4989 = vadd.f32 %v4559, %v4855
        %v4990 = vadd.f32 %v4558, %v4857
        %v4991 = vadd.f32 %v4560, %v4859
        %v4992 = vadd.f32 %v4568, %v4861
        %v4993 = vadd.f32 %v4576, %v4863
        %v4994 = vadd.f32 %v4575, %v4865
        %v4995 = vadd.f32 %v4577, %v4867
        %v4996 = vadd.f32 %v4932, %v4109
        %v4997 = vadd.f32 %v4933, %v4117
        %v4998 = vadd.f32 %v4934, %v4116
        %v4999 = vadd.f32 %v4935, %v4118
        %v5000 = vadd.f32 %v4936, %v4126
        %v5001 = vadd.f32 %v4937, %v4134
        %v5002 = vadd.f32 %v4938, %v4133
        %v5003 = vadd.f32 %v4939, %v4135
        %v5004 = vadd.f32 %v4940, %v4177
        %v5005 = vadd.f32 %v4941, %v4185
        %v5006 = vadd.f32 %v4942, %v4184
        %v5007 = vadd.f32 %v4943, %v4186
        %v5008 = vadd.f32 %v4944, %v4194
        %v5009 = vadd.f32 %v4945, %v4202
        %v5010 = vadd.f32 %v4946, %v4201
        %v5011 = vadd.f32 %v4947, %v4203
        %v5012 = vadd.f32 %v4948, %v4245
        %v5013 = vadd.f32 %v4949, %v4253
        %v5014 = vadd.f32 %v4950, %v4252
        %v5015 = vadd.f32 %v4951, %v4254
        %v5016 = vadd.f32 %v4952, %v4262
        %v5017 = vadd.f32 %v4953, %v4270
        %v5018 = vadd.f32 %v4954, %v4269
        %v5019 = vadd.f32 %v4955, %v4271
        %v5020 = vadd.f32 %v4956, %v4313
        %v5021 = vadd.f32 %v4957, %v4321
        %v5022 = vadd.f32 %v4958, %v4320
        %v5023 = vadd.f32 %v4959, %v4322
        %v5024 = vadd.f32 %v4960, %v4330
        %v5025 = vadd.f32 %v4961, %v4338
        %v5026 = vadd.f32 %v4962, %v4337
        %v5027 = vadd.f32 %v4963, %v4339
        %v5028 = vadd.f32 %v4964, %v4381
        %v5029 = vadd.f32 %v4965, %v4389
        %v5030 = vadd.f32 %v4966, %v4388
        %v5031 = vadd.f32 %v4967, %v4390
        %v5032 = vadd.f32 %v4968, %v4398
        %v5033 = vadd.f32 %v4969, %v4406
        %v5034 = vadd.f32 %v4970, %v4405
        %v5035 = vadd.f32 %v4971, %v4407
        %v5036 = vadd.f32 %v4972, %v4449
        %v5037 = vadd.f32 %v4973, %v4457
        %v5038 = vadd.f32 %v4974, %v4456
        %v5039 = vadd.f32 %v4975, %v4458
        %v5040 = vadd.f32 %v4976, %v4466
        %v5041 = vadd.f32 %v4977, %v4474
        %v5042 = vadd.f32 %v4978, %v4473
        %v5043 = vadd.f32 %v4979, %v4475
        %v5044 = vadd.f32 %v4980, %v4517
        %v5045 = vadd.f32 %v4981, %v4525
        %v5046 = vadd.f32 %v4982, %v4524
        %v5047 = vadd.f32 %v4983, %v4526
        %v5048 = vadd.f32 %v4984, %v4534
        %v5049 = vadd.f32 %v4985, %v4542
        %v5050 = vadd.f32 %v4986, %v4541
        %v5051 = vadd.f32 %v4987, %v4543
        %v5052 = vadd.f32 %v4988, %v4585
        %v5053 = vadd.f32 %v4989, %v4593
        %v5054 = vadd.f32 %v4990, %v4592
        %v5055 = vadd.f32 %v4991, %v4594
        %v5056 = vadd.f32 %v4992, %v4602
        %v5057 = vadd.f32 %v4993, %v4610
        %v5058 = vadd.f32 %v4994, %v4609
        %v5059 = vadd.f32 %v4995, %v4611
        %v5060 = vrot.slane %v4109, 7
        %v5061 = vrot.slane %v5060, 2
        %v5062 = vrot.slane %v4117, 7
        %v5063 = vrot.slane %v5062, 2
        %v5064 = vrot.slane %v4116, 7
        %v5065 = vrot.slane %v5064, 2
        %v5066 = vrot.slane %v4118, 7
        %v5067 = vrot.slane %v5066, 2
        %v5068 = vrot.slane %v4126, 7
        %v5069 = vrot.slane %v5068, 2
        %v5070 = vrot.slane %v4134, 7
        %v5071 = vrot.slane %v5070, 2
        %v5072 = vrot.slane %v4133, 7
        %v5073 = vrot.slane %v5072, 2
        %v5074 = vrot.slane %v4135, 7
        %v5075 = vrot.slane %v5074, 2
        %v5076 = vrot.slane %v4177, 7
        %v5077 = vrot.slane %v5076, 2
        %v5078 = vrot.slane %v4185, 7
        %v5079 = vrot.slane %v5078, 2
        %v5080 = vrot.slane %v4184, 7
        %v5081 = vrot.slane %v5080, 2
        %v5082 = vrot.slane %v4186, 7
        %v5083 = vrot.slane %v5082, 2
        %v5084 = vrot.slane %v4194, 7
        %v5085 = vrot.slane %v5084, 2
        %v5086 = vrot.slane %v4202, 7
        %v5087 = vrot.slane %v5086, 2
        %v5088 = vrot.slane %v4201, 7
        %v5089 = vrot.slane %v5088, 2
        %v5090 = vrot.slane %v4203, 7
        %v5091 = vrot.slane %v5090, 2
        %v5092 = vrot.slane %v4245, 7
        %v5093 = vrot.slane %v5092, 2
        %v5094 = vrot.slane %v4253, 7
        %v5095 = vrot.slane %v5094, 2
        %v5096 = vrot.slane %v4252, 7
        %v5097 = vrot.slane %v5096, 2
        %v5098 = vrot.slane %v4254, 7
        %v5099 = vrot.slane %v5098, 2
        %v5100 = vrot.slane %v4262, 7
        %v5101 = vrot.slane %v5100, 2
        %v5102 = vrot.slane %v4270, 7
        %v5103 = vrot.slane %v5102, 2
        %v5104 = vrot.slane %v4269, 7
        %v5105 = vrot.slane %v5104, 2
        %v5106 = vrot.slane %v4271, 7
        %v5107 = vrot.slane %v5106, 2
        %v5108 = vrot.slane %v4313, 7
        %v5109 = vrot.slane %v5108, 2
        %v5110 = vrot.slane %v4321, 7
        %v5111 = vrot.slane %v5110, 2
        %v5112 = vrot.slane %v4320, 7
        %v5113 = vrot.slane %v5112, 2
        %v5114 = vrot.slane %v4322, 7
        %v5115 = vrot.slane %v5114, 2
        %v5116 = vrot.slane %v4330, 7
        %v5117 = vrot.slane %v5116, 2
        %v5118 = vrot.slane %v4338, 7
        %v5119 = vrot.slane %v5118, 2
        %v5120 = vrot.slane %v4337, 7
        %v5121 = vrot.slane %v5120, 2
        %v5122 = vrot.slane %v4339, 7
        %v5123 = vrot.slane %v5122, 2
        %v5124 = vrot.slane %v4381, 7
        %v5125 = vrot.slane %v5124, 2
        %v5126 = vrot.slane %v4389, 7
        %v5127 = vrot.slane %v5126, 2
        %v5128 = vrot.slane %v4388, 7
        %v5129 = vrot.slane %v5128, 2
        %v5130 = vrot.slane %v4390, 7
        %v5131 = vrot.slane %v5130, 2
        %v5132 = vrot.slane %v4398, 7
        %v5133 = vrot.slane %v5132, 2
        %v5134 = vrot.slane %v4406, 7
        %v5135 = vrot.slane %v5134, 2
        %v5136 = vrot.slane %v4405, 7
        %v5137 = vrot.slane %v5136, 2
        %v5138 = vrot.slane %v4407, 7
        %v5139 = vrot.slane %v5138, 2
        %v5140 = vrot.slane %v4449, 7
        %v5141 = vrot.slane %v5140, 2
        %v5142 = vrot.slane %v4457, 7
        %v5143 = vrot.slane %v5142, 2
        %v5144 = vrot.slane %v4456, 7
        %v5145 = vrot.slane %v5144, 2
        %v5146 = vrot.slane %v4458, 7
        %v5147 = vrot.slane %v5146, 2
        %v5148 = vrot.slane %v4466, 7
        %v5149 = vrot.slane %v5148, 2
        %v5150 = vrot.slane %v4474, 7
        %v5151 = vrot.slane %v5150, 2
        %v5152 = vrot.slane %v4473, 7
        %v5153 = vrot.slane %v5152, 2
        %v5154 = vrot.slane %v4475, 7
        %v5155 = vrot.slane %v5154, 2
        %v5156 = vrot.slane %v4517, 7
        %v5157 = vrot.slane %v5156, 2
        %v5158 = vrot.slane %v4525, 7
        %v5159 = vrot.slane %v5158, 2
        %v5160 = vrot.slane %v4524, 7
        %v5161 = vrot.slane %v5160, 2
        %v5162 = vrot.slane %v4526, 7
        %v5163 = vrot.slane %v5162, 2
        %v5164 = vrot.slane %v4534, 7
        %v5165 = vrot.slane %v5164, 2
        %v5166 = vrot.slane %v4542, 7
        %v5167 = vrot.slane %v5166, 2
        %v5168 = vrot.slane %v4541, 7
        %v5169 = vrot.slane %v5168, 2
        %v5170 = vrot.slane %v4543, 7
        %v5171 = vrot.slane %v5170, 2
        %v5172 = vrot.slane %v4585, 7
        %v5173 = vrot.slane %v5172, 2
        %v5174 = vrot.slane %v4593, 7
        %v5175 = vrot.slane %v5174, 2
        %v5176 = vrot.slane %v4592, 7
        %v5177 = vrot.slane %v5176, 2
        %v5178 = vrot.slane %v4594, 7
        %v5179 = vrot.slane %v5178, 2
        %v5180 = vrot.slane %v4602, 7
        %v5181 = vrot.slane %v5180, 2
        %v5182 = vrot.slane %v4610, 7
        %v5183 = vrot.slane %v5182, 2
        %v5184 = vrot.slane %v4609, 7
        %v5185 = vrot.slane %v5184, 2
        %v5186 = vrot.slane %v4611, 7
        %v5187 = vrot.slane %v5186, 2
        %v5252 = vadd.f32 %v4996, %v5061
        %v5253 = vadd.f32 %v4997, %v5063
        %v5254 = vadd.f32 %v4998, %v5065
        %v5255 = vadd.f32 %v4999, %v5067
        %v5256 = vadd.f32 %v5000, %v5069
        %v5257 = vadd.f32 %v5001, %v5071
        %v5258 = vadd.f32 %v5002, %v5073
        %v5259 = vadd.f32 %v5003, %v5075
        %v5260 = vadd.f32 %v5004, %v5077
        %v5261 = vadd.f32 %v5005, %v5079
        %v5262 = vadd.f32 %v5006, %v5081
        %v5263 = vadd.f32 %v5007, %v5083
        %v5264 = vadd.f32 %v5008, %v5085
        %v5265 = vadd.f32 %v5009, %v5087
        %v5266 = vadd.f32 %v5010, %v5089
        %v5267 = vadd.f32 %v5011, %v5091
        %v5268 = vadd.f32 %v5012, %v5093
        %v5269 = vadd.f32 %v5013, %v5095
        %v5270 = vadd.f32 %v5014, %v5097
        %v5271 = vadd.f32 %v5015, %v5099
        %v5272 = vadd.f32 %v5016, %v5101
        %v5273 = vadd.f32 %v5017, %v5103
        %v5274 = vadd.f32 %v5018, %v5105
        %v5275 = vadd.f32 %v5019, %v5107
        %v5276 = vadd.f32 %v5020, %v5109
        %v5277 = vadd.f32 %v5021, %v5111
        %v5278 = vadd.f32 %v5022, %v5113
        %v5279 = vadd.f32 %v5023, %v5115
        %v5280 = vadd.f32 %v5024, %v5117
        %v5281 = vadd.f32 %v5025, %v5119
        %v5282 = vadd.f32 %v5026, %v5121
        %v5283 = vadd.f32 %v5027, %v5123
        %v5284 = vadd.f32 %v5028, %v5125
        %v5285 = vadd.f32 %v5029, %v5127
        %v5286 = vadd.f32 %v5030, %v5129
        %v5287 = vadd.f32 %v5031, %v5131
        %v5288 = vadd.f32 %v5032, %v5133
        %v5289 = vadd.f32 %v5033, %v5135
        %v5290 = vadd.f32 %v5034, %v5137
        %v5291 = vadd.f32 %v5035, %v5139
        %v5292 = vadd.f32 %v5036, %v5141
        %v5293 = vadd.f32 %v5037, %v5143
        %v5294 = vadd.f32 %v5038, %v5145
        %v5295 = vadd.f32 %v5039, %v5147
        %v5296 = vadd.f32 %v5040, %v5149
        %v5297 = vadd.f32 %v5041, %v5151
        %v5298 = vadd.f32 %v5042, %v5153
        %v5299 = vadd.f32 %v5043, %v5155
        %v5300 = vadd.f32 %v5044, %v5157
        %v5301 = vadd.f32 %v5045, %v5159
        %v5302 = vadd.f32 %v5046, %v5161
        %v5303 = vadd.f32 %v5047, %v5163
        %v5304 = vadd.f32 %v5048, %v5165
        %v5305 = vadd.f32 %v5049, %v5167
        %v5306 = vadd.f32 %v5050, %v5169
        %v5307 = vadd.f32 %v5051, %v5171
        %v5308 = vadd.f32 %v5052, %v5173
        %v5309 = vadd.f32 %v5053, %v5175
        %v5310 = vadd.f32 %v5054, %v5177
        %v5311 = vadd.f32 %v5055, %v5179
        %v5312 = vadd.f32 %v5056, %v5181
        %v5313 = vadd.f32 %v5057, %v5183
        %v5314 = vadd.f32 %v5058, %v5185
        %v5315 = vadd.f32 %v5059, %v5187
        %v5316 = vld [vmem:[%s4] sm:$0x1]
        %v5318 = vlaneseq
        %v5319 = vshrl.u32 %v5318, 7
        %v5320 = vsub.s32 0, %v5319
        %v5321 = vrot.slane %v5316, %v5320
        %v5322 = vcombine.high %v5321, %v5321
        %v5324 = vunpack.c.l.s4 1983009808
        %v5325 = vunpack.c.0.s8 %v5324
        %v5326 = vlaneseq
        %v5327 = vshrl.u32 %v5326, 7
        %v5328 = vsub.s32 %v5325, %v5327
        %v5329 = vrot.slane %v5321, %v5328
        %v5331 = vunpack.c.l.s4 1983009808
        %v5332 = vunpack.c.0.s8 %v5331
        %v5333 = vlaneseq
        %v5334 = vshrl.u32 %v5333, 7
        %v5335 = vsub.s32 %v5332, %v5334
        %v5336 = vrot.slane %v5322, %v5335
        %v5337 = vcombine.high %v5329, %v5329
        %v5338 = vcombine.high %v5336, %v5336
        %v5339 = vrot.slane %v5329, 1
        %v5340 = vrot.slane %v5337, 1
        %v5341 = vrot.slane %v5336, 1
        %v5342 = vrot.slane %v5338, 1
        %v5351 = vadd.f32 %v5252, %v5329
        %v5352 = vadd.f32 %v5253, %v5339
        %v5353 = vadd.f32 %v5254, %v5337
        %v5354 = vadd.f32 %v5255, %v5340
        %v5355 = vadd.f32 %v5256, %v5336
        %v5356 = vadd.f32 %v5257, %v5341
        %v5357 = vadd.f32 %v5258, %v5338
        %v5358 = vadd.f32 %v5259, %v5342
        %v5359 = vadd.f32 %v5260, %v5329
        %v5360 = vadd.f32 %v5261, %v5339
        %v5361 = vadd.f32 %v5262, %v5337
        %v5362 = vadd.f32 %v5263, %v5340
        %v5363 = vadd.f32 %v5264, %v5336
        %v5364 = vadd.f32 %v5265, %v5341
        %v5365 = vadd.f32 %v5266, %v5338
        %v5366 = vadd.f32 %v5267, %v5342
        %v5367 = vadd.f32 %v5268, %v5329
        %v5368 = vadd.f32 %v5269, %v5339
        %v5369 = vadd.f32 %v5270, %v5337
        %v5370 = vadd.f32 %v5271, %v5340
        %v5371 = vadd.f32 %v5272, %v5336
        %v5372 = vadd.f32 %v5273, %v5341
        %v5373 = vadd.f32 %v5274, %v5338
        %v5374 = vadd.f32 %v5275, %v5342
        %v5375 = vadd.f32 %v5276, %v5329
        %v5376 = vadd.f32 %v5277, %v5339
        %v5377 = vadd.f32 %v5278, %v5337
        %v5378 = vadd.f32 %v5279, %v5340
        %v5379 = vadd.f32 %v5280, %v5336
        %v5380 = vadd.f32 %v5281, %v5341
        %v5381 = vadd.f32 %v5282, %v5338
        %v5382 = vadd.f32 %v5283, %v5342
        %v5383 = vadd.f32 %v5284, %v5329
        %v5384 = vadd.f32 %v5285, %v5339
        %v5385 = vadd.f32 %v5286, %v5337
        %v5386 = vadd.f32 %v5287, %v5340
        %v5387 = vadd.f32 %v5288, %v5336
        %v5388 = vadd.f32 %v5289, %v5341
        %v5389 = vadd.f32 %v5290, %v5338
        %v5390 = vadd.f32 %v5291, %v5342
        %v5391 = vadd.f32 %v5292, %v5329
        %v5392 = vadd.f32 %v5293, %v5339
        %v5393 = vadd.f32 %v5294, %v5337
        %v5394 = vadd.f32 %v5295, %v5340
        %v5395 = vadd.f32 %v5296, %v5336
        %v5396 = vadd.f32 %v5297, %v5341
        %v5397 = vadd.f32 %v5298, %v5338
        %v5398 = vadd.f32 %v5299, %v5342
        %v5399 = vadd.f32 %v5300, %v5329
        %v5400 = vadd.f32 %v5301, %v5339
        %v5401 = vadd.f32 %v5302, %v5337
        %v5402 = vadd.f32 %v5303, %v5340
        %v5403 = vadd.f32 %v5304, %v5336
        %v5404 = vadd.f32 %v5305, %v5341
        %v5405 = vadd.f32 %v5306, %v5338
        %v5406 = vadd.f32 %v5307, %v5342
        %v5407 = vadd.f32 %v5308, %v5329
        %v5408 = vadd.f32 %v5309, %v5339
        %v5409 = vadd.f32 %v5310, %v5337
        %v5410 = vadd.f32 %v5311, %v5340
        %v5411 = vadd.f32 %v5312, %v5336
        %v5412 = vadd.f32 %v5313, %v5341
        %v5413 = vadd.f32 %v5314, %v5338
        %v5414 = vadd.f32 %v5315, %v5342
        %v5479 = vlaneseq
        %v5480 = vshrl.u32 %v5479, 7
        %v5481 = vsub.s32 0, %v5480
        %v5482 = vrot.slane %v5351, %v5481
        %v5483 = vlaneseq
        %v5484 = vshrl.u32 %v5483, 7
        %v5485 = vsub.s32 0, %v5484
        %v5486 = vrot.slane %v5352, %v5485
        %v5487 = vlaneseq
        %v5488 = vshrl.u32 %v5487, 7
        %v5489 = vsub.s32 0, %v5488
        %v5490 = vrot.slane %v5353, %v5489
        %v5491 = vlaneseq
        %v5492 = vshrl.u32 %v5491, 7
        %v5493 = vsub.s32 0, %v5492
        %v5494 = vrot.slane %v5354, %v5493
        %v5495 = vlaneseq
        %v5496 = vshrl.u32 %v5495, 7
        %v5497 = vsub.s32 0, %v5496
        %v5498 = vrot.slane %v5355, %v5497
        %v5499 = vlaneseq
        %v5500 = vshrl.u32 %v5499, 7
        %v5501 = vsub.s32 0, %v5500
        %v5502 = vrot.slane %v5356, %v5501
        %v5503 = vlaneseq
        %v5504 = vshrl.u32 %v5503, 7
        %v5505 = vsub.s32 0, %v5504
        %v5506 = vrot.slane %v5357, %v5505
        %v5507 = vlaneseq
        %v5508 = vshrl.u32 %v5507, 7
        %v5509 = vsub.s32 0, %v5508
        %v5510 = vrot.slane %v5358, %v5509
        %v5511 = vlaneseq
        %v5512 = vshrl.u32 %v5511, 7
        %v5513 = vsub.s32 0, %v5512
        %v5514 = vrot.slane %v5359, %v5513
        %v5515 = vlaneseq
        %v5516 = vshrl.u32 %v5515, 7
        %v5517 = vsub.s32 0, %v5516
        %v5518 = vrot.slane %v5360, %v5517
        %v5519 = vlaneseq
        %v5520 = vshrl.u32 %v5519, 7
        %v5521 = vsub.s32 0, %v5520
        %v5522 = vrot.slane %v5361, %v5521
        %v5523 = vlaneseq
        %v5524 = vshrl.u32 %v5523, 7
        %v5525 = vsub.s32 0, %v5524
        %v5526 = vrot.slane %v5362, %v5525
        %v5527 = vlaneseq
        %v5528 = vshrl.u32 %v5527, 7
        %v5529 = vsub.s32 0, %v5528
        %v5530 = vrot.slane %v5363, %v5529
        %v5531 = vlaneseq
        %v5532 = vshrl.u32 %v5531, 7
        %v5533 = vsub.s32 0, %v5532
        %v5534 = vrot.slane %v5364, %v5533
        %v5535 = vlaneseq
        %v5536 = vshrl.u32 %v5535, 7
        %v5537 = vsub.s32 0, %v5536
        %v5538 = vrot.slane %v5365, %v5537
        %v5539 = vlaneseq
        %v5540 = vshrl.u32 %v5539, 7
        %v5541 = vsub.s32 0, %v5540
        %v5542 = vrot.slane %v5366, %v5541
        %v5543 = vlaneseq
        %v5544 = vshrl.u32 %v5543, 7
        %v5545 = vsub.s32 0, %v5544
        %v5546 = vrot.slane %v5367, %v5545
        %v5547 = vlaneseq
        %v5548 = vshrl.u32 %v5547, 7
        %v5549 = vsub.s32 0, %v5548
        %v5550 = vrot.slane %v5368, %v5549
        %v5551 = vlaneseq
        %v5552 = vshrl.u32 %v5551, 7
        %v5553 = vsub.s32 0, %v5552
        %v5554 = vrot.slane %v5369, %v5553
        %v5555 = vlaneseq
        %v5556 = vshrl.u32 %v5555, 7
        %v5557 = vsub.s32 0, %v5556
        %v5558 = vrot.slane %v5370, %v5557
        %v5559 = vlaneseq
        %v5560 = vshrl.u32 %v5559, 7
        %v5561 = vsub.s32 0, %v5560
        %v5562 = vrot.slane %v5371, %v5561
        %v5563 = vlaneseq
        %v5564 = vshrl.u32 %v5563, 7
        %v5565 = vsub.s32 0, %v5564
        %v5566 = vrot.slane %v5372, %v5565
        %v5567 = vlaneseq
        %v5568 = vshrl.u32 %v5567, 7
        %v5569 = vsub.s32 0, %v5568
        %v5570 = vrot.slane %v5373, %v5569
        %v5571 = vlaneseq
        %v5572 = vshrl.u32 %v5571, 7
        %v5573 = vsub.s32 0, %v5572
        %v5574 = vrot.slane %v5374, %v5573
        %v5575 = vlaneseq
        %v5576 = vshrl.u32 %v5575, 7
        %v5577 = vsub.s32 0, %v5576
        %v5578 = vrot.slane %v5375, %v5577
        %v5579 = vlaneseq
        %v5580 = vshrl.u32 %v5579, 7
        %v5581 = vsub.s32 0, %v5580
        %v5582 = vrot.slane %v5376, %v5581
        %v5583 = vlaneseq
        %v5584 = vshrl.u32 %v5583, 7
        %v5585 = vsub.s32 0, %v5584
        %v5586 = vrot.slane %v5377, %v5585
        %v5587 = vlaneseq
        %v5588 = vshrl.u32 %v5587, 7
        %v5589 = vsub.s32 0, %v5588
        %v5590 = vrot.slane %v5378, %v5589
        %v5591 = vlaneseq
        %v5592 = vshrl.u32 %v5591, 7
        %v5593 = vsub.s32 0, %v5592
        %v5594 = vrot.slane %v5379, %v5593
        %v5595 = vlaneseq
        %v5596 = vshrl.u32 %v5595, 7
        %v5597 = vsub.s32 0, %v5596
        %v5598 = vrot.slane %v5380, %v5597
        %v5599 = vlaneseq
        %v5600 = vshrl.u32 %v5599, 7
        %v5601 = vsub.s32 0, %v5600
        %v5602 = vrot.slane %v5381, %v5601
        %v5603 = vlaneseq
        %v5604 = vshrl.u32 %v5603, 7
        %v5605 = vsub.s32 0, %v5604
        %v5606 = vrot.slane %v5382, %v5605
        %v5607 = vlaneseq
        %v5608 = vshrl.u32 %v5607, 7
        %v5609 = vsub.s32 0, %v5608
        %v5610 = vrot.slane %v5383, %v5609
        %v5611 = vlaneseq
        %v5612 = vshrl.u32 %v5611, 7
        %v5613 = vsub.s32 0, %v5612
        %v5614 = vrot.slane %v5384, %v5613
        %v5615 = vlaneseq
        %v5616 = vshrl.u32 %v5615, 7
        %v5617 = vsub.s32 0, %v5616
        %v5618 = vrot.slane %v5385, %v5617
        %v5619 = vlaneseq
        %v5620 = vshrl.u32 %v5619, 7
        %v5621 = vsub.s32 0, %v5620
        %v5622 = vrot.slane %v5386, %v5621
        %v5623 = vlaneseq
        %v5624 = vshrl.u32 %v5623, 7
        %v5625 = vsub.s32 0, %v5624
        %v5626 = vrot.slane %v5387, %v5625
        %v5627 = vlaneseq
        %v5628 = vshrl.u32 %v5627, 7
        %v5629 = vsub.s32 0, %v5628
        %v5630 = vrot.slane %v5388, %v5629
        %v5631 = vlaneseq
        %v5632 = vshrl.u32 %v5631, 7
        %v5633 = vsub.s32 0, %v5632
        %v5634 = vrot.slane %v5389, %v5633
        %v5635 = vlaneseq
        %v5636 = vshrl.u32 %v5635, 7
        %v5637 = vsub.s32 0, %v5636
        %v5638 = vrot.slane %v5390, %v5637
        %v5639 = vlaneseq
        %v5640 = vshrl.u32 %v5639, 7
        %v5641 = vsub.s32 0, %v5640
        %v5642 = vrot.slane %v5391, %v5641
        %v5643 = vlaneseq
        %v5644 = vshrl.u32 %v5643, 7
        %v5645 = vsub.s32 0, %v5644
        %v5646 = vrot.slane %v5392, %v5645
        %v5647 = vlaneseq
        %v5648 = vshrl.u32 %v5647, 7
        %v5649 = vsub.s32 0, %v5648
        %v5650 = vrot.slane %v5393, %v5649
        %v5651 = vlaneseq
        %v5652 = vshrl.u32 %v5651, 7
        %v5653 = vsub.s32 0, %v5652
        %v5654 = vrot.slane %v5394, %v5653
        %v5655 = vlaneseq
        %v5656 = vshrl.u32 %v5655, 7
        %v5657 = vsub.s32 0, %v5656
        %v5658 = vrot.slane %v5395, %v5657
        %v5659 = vlaneseq
        %v5660 = vshrl.u32 %v5659, 7
        %v5661 = vsub.s32 0, %v5660
        %v5662 = vrot.slane %v5396, %v5661
        %v5663 = vlaneseq
        %v5664 = vshrl.u32 %v5663, 7
        %v5665 = vsub.s32 0, %v5664
        %v5666 = vrot.slane %v5397, %v5665
        %v5667 = vlaneseq
        %v5668 = vshrl.u32 %v5667, 7
        %v5669 = vsub.s32 0, %v5668
        %v5670 = vrot.slane %v5398, %v5669
        %v5671 = vlaneseq
        %v5672 = vshrl.u32 %v5671, 7
        %v5673 = vsub.s32 0, %v5672
        %v5674 = vrot.slane %v5399, %v5673
        %v5675 = vlaneseq
        %v5676 = vshrl.u32 %v5675, 7
        %v5677 = vsub.s32 0, %v5676
        %v5678 = vrot.slane %v5400, %v5677
        %v5679 = vlaneseq
        %v5680 = vshrl.u32 %v5679, 7
        %v5681 = vsub.s32 0, %v5680
        %v5682 = vrot.slane %v5401, %v5681
        %v5683 = vlaneseq
        %v5684 = vshrl.u32 %v5683, 7
        %v5685 = vsub.s32 0, %v5684
        %v5686 = vrot.slane %v5402, %v5685
        %v5687 = vlaneseq
        %v5688 = vshrl.u32 %v5687, 7
        %v5689 = vsub.s32 0, %v5688
        %v5690 = vrot.slane %v5403, %v5689
        %v5691 = vlaneseq
        %v5692 = vshrl.u32 %v5691, 7
        %v5693 = vsub.s32 0, %v5692
        %v5694 = vrot.slane %v5404, %v5693
        %v5695 = vlaneseq
        %v5696 = vshrl.u32 %v5695, 7
        %v5697 = vsub.s32 0, %v5696
        %v5698 = vrot.slane %v5405, %v5697
        %v5699 = vlaneseq
        %v5700 = vshrl.u32 %v5699, 7
        %v5701 = vsub.s32 0, %v5700
        %v5702 = vrot.slane %v5406, %v5701
        %v5703 = vlaneseq
        %v5704 = vshrl.u32 %v5703, 7
        %v5705 = vsub.s32 0, %v5704
        %v5706 = vrot.slane %v5407, %v5705
        %v5707 = vlaneseq
        %v5708 = vshrl.u32 %v5707, 7
        %v5709 = vsub.s32 0, %v5708
        %v5710 = vrot.slane %v5408, %v5709
        %v5711 = vlaneseq
        %v5712 = vshrl.u32 %v5711, 7
        %v5713 = vsub.s32 0, %v5712
        %v5714 = vrot.slane %v5409, %v5713
        %v5715 = vlaneseq
        %v5716 = vshrl.u32 %v5715, 7
        %v5717 = vsub.s32 0, %v5716
        %v5718 = vrot.slane %v5410, %v5717
        %v5719 = vlaneseq
        %v5720 = vshrl.u32 %v5719, 7
        %v5721 = vsub.s32 0, %v5720
        %v5722 = vrot.slane %v5411, %v5721
        %v5723 = vlaneseq
        %v5724 = vshrl.u32 %v5723, 7
        %v5725 = vsub.s32 0, %v5724
        %v5726 = vrot.slane %v5412, %v5725
        %v5727 = vlaneseq
        %v5728 = vshrl.u32 %v5727, 7
        %v5729 = vsub.s32 0, %v5728
        %v5730 = vrot.slane %v5413, %v5729
        %v5731 = vlaneseq
        %v5732 = vshrl.u32 %v5731, 7
        %v5733 = vsub.s32 0, %v5732
        %v5734 = vrot.slane %v5414, %v5733
        %vm5735 = vcmask 1041409
        %v5736 = vsel %vm5735, %v5486, %v5482
        %vm5737 = vcmask 1042434
        %v5738 = vsel %vm5737, %v5490, %v5736
        %vm5739 = vcmask 1043459
        %v5740 = vsel %vm5739, %v5494, %v5738
        %vm5741 = vcmask 1044484
        %v5742 = vsel %vm5741, %v5498, %v5740
        %vm5743 = vcmask 1045509
        %v5744 = vsel %vm5743, %v5502, %v5742
        %vm5745 = vcmask 1046534
        %v5746 = vsel %vm5745, %v5506, %v5744
        %vm5747 = vcmask 1047559
        %v5748 = vsel %vm5747, %v5510, %v5746
        %v5749 = vsel %vm5735, %v5518, %v5514
        %v5750 = vsel %vm5737, %v5522, %v5749
        %v5751 = vsel %vm5739, %v5526, %v5750
        %v5752 = vsel %vm5741, %v5530, %v5751
        %v5753 = vsel %vm5743, %v5534, %v5752
        %v5754 = vsel %vm5745, %v5538, %v5753
        %v5755 = vsel %vm5747, %v5542, %v5754
        %v5756 = vsel %vm5735, %v5550, %v5546
        %v5757 = vsel %vm5737, %v5554, %v5756
        %v5758 = vsel %vm5739, %v5558, %v5757
        %v5759 = vsel %vm5741, %v5562, %v5758
        %v5760 = vsel %vm5743, %v5566, %v5759
        %v5761 = vsel %vm5745, %v5570, %v5760
        %v5762 = vsel %vm5747, %v5574, %v5761
        %v5763 = vsel %vm5735, %v5582, %v5578
        %v5764 = vsel %vm5737, %v5586, %v5763
        %v5765 = vsel %vm5739, %v5590, %v5764
        %v5766 = vsel %vm5741, %v5594, %v5765
        %v5767 = vsel %vm5743, %v5598, %v5766
        %v5768 = vsel %vm5745, %v5602, %v5767
        %v5769 = vsel %vm5747, %v5606, %v5768
        %v5770 = vsel %vm5735, %v5614, %v5610
        %v5771 = vsel %vm5737, %v5618, %v5770
        %v5772 = vsel %vm5739, %v5622, %v5771
        %v5773 = vsel %vm5741, %v5626, %v5772
        %v5774 = vsel %vm5743, %v5630, %v5773
        %v5775 = vsel %vm5745, %v5634, %v5774
        %v5776 = vsel %vm5747, %v5638, %v5775
        %v5777 = vsel %vm5735, %v5646, %v5642
        %v5778 = vsel %vm5737, %v5650, %v5777
        %v5779 = vsel %vm5739, %v5654, %v5778
        %v5780 = vsel %vm5741, %v5658, %v5779
        %v5781 = vsel %vm5743, %v5662, %v5780
        %v5782 = vsel %vm5745, %v5666, %v5781
        %v5783 = vsel %vm5747, %v5670, %v5782
        %v5784 = vsel %vm5735, %v5678, %v5674
        %v5785 = vsel %vm5737, %v5682, %v5784
        %v5786 = vsel %vm5739, %v5686, %v5785
        %v5787 = vsel %vm5741, %v5690, %v5786
        %v5788 = vsel %vm5743, %v5694, %v5787
        %v5789 = vsel %vm5745, %v5698, %v5788
        %v5790 = vsel %vm5747, %v5702, %v5789
        %v5791 = vsel %vm5735, %v5710, %v5706
        %v5792 = vsel %vm5737, %v5714, %v5791
        %v5793 = vsel %vm5739, %v5718, %v5792
        %v5794 = vsel %vm5741, %v5722, %v5793
        %v5795 = vsel %vm5743, %v5726, %v5794
        %v5796 = vsel %vm5745, %v5730, %v5795
        %v5797 = vsel %vm5747, %v5734, %v5796
        %5806 = vst.msk [vmem:[%s217] sm:$0xff] %vm1570, %v5748
        %5807 = vst.msk [vmem:[%s217 + $0x8] sm:$0xff] %vm1570, %v5755
        %5808 = vst.msk [vmem:[%s217 + $0x10] sm:$0xff] %vm1570, %v5762
        %5809 = vst.msk [vmem:[%s217 + $0x18] sm:$0xff] %vm1570, %v5769
        %5810 = vst.msk [vmem:[%s217 + $0x20] sm:$0xff] %vm1570, %v5776
        %5811 = vst.msk [vmem:[%s217 + $0x28] sm:$0xff] %vm1570, %v5783
        %5812 = vst.msk [vmem:[%s217 + $0x30] sm:$0xff] %vm1570, %v5790
        %5813 = vst.msk [vmem:[%s217 + $0x38] sm:$0xff] %vm1570, %v5797
        %s5814 = sand.u32 %s137, 1
        %s5815 = scalar_lea.sflag [#allocation3], %s5814
        %s5816 = sand.u32 %s137, 1
        %s5817 = smul.addr %s5816, 64
        %s5818 = scalar_lea.vmem [#allocation2], %s5817
        // Predicated region
        $region41: #{tpu_custom_call.1} parent=39 // pred_check
          %p5819 = pneg %p147
        $region42: #{tpu_custom_call.1} parent=39 // pred_check_branch
          %5821 = sbr.rel (%p5819) target = $region44
        $region43: #{tpu_custom_call.1} parent=39 // pred_region
          %s5823 = ssub.s32 1024, 1024
          %5824 = vsyncadd %s5815, %s5823
          %s5825 = smul.addr %s19, 8
          %s5826 = smul.addr %s5825, 128
          %s5827 = scalar_lea.hbm %s5, %s5826
          %s5828 = sshll.u32 %s5818, 4
          %s5829 = int_to_ptr.vmem [resolvable:$true] %s5828
          %5834 = dma.vmem_to_hbm [thread:$0]  %s5829, 1024, %s5827, %s5815, 128, 128, 8
        $region44: #{tpu_custom_call.1} parent=39 // pred_fallthru
          _
      $region40: #{tpu_custom_call.1} parent=5 // pred_fallthru
        _
      %p5835 = scmp.le.s32.totalorder 2, %s14
      // Predicated region
      $region45: #{tpu_custom_call.1} parent=5 // pred_check
        %p5836 = pneg %p5835
      $region46: #{tpu_custom_call.1} parent=5 // pred_check_branch
        %5838 = sbr.rel (%p5836) target = $region48
      $region47: #{tpu_custom_call.1} parent=5 // pred_region
        %s5839 = ssub.s32 %s14, 2
        // Predicated region
        $region49: #{tpu_custom_call.1} parent=47 // pred_check
          %p5840 = pneg %p153
        $region50: #{tpu_custom_call.1} parent=47 // pred_check_branch
          %5842 = sbr.rel (%p5840) target = $region52
        $region51: #{tpu_custom_call.1} parent=47 // pred_region
          %s5843 = sand.u32 %s138, 1
          %s5844 = scalar_lea.sflag [#allocation3], %s5843
          %s5845 = sand.u32 %s138, 1
          %s5846 = smul.addr %s5845, 64
          %s5847 = scalar_lea.vmem [#allocation2], %s5846
          %5848 = dma.done %s5844, 1024
        $region52: #{tpu_custom_call.1} parent=47 // pred_fallthru
          _
      $region48: #{tpu_custom_call.1} parent=5 // pred_fallthru
        _
    $region6: #{tpu_custom_call.1} parent=1 // loop_footer
      %s18 = sadd.s32 1, %s14
    $region7: #{tpu_custom_call.1} parent=1 // loop_footer_branch
      %13 = sbr.rel target = $region3
    $region8: #{tpu_custom_call.1} parent=1 // loop_exit
      _
    %5849 = vsyncpa [#allocation3], 1
    %s5850 = scalar_lea.sflag [#allocation3], 1
    %5851 = vsyncpa %s5850, 1

</llo_original>
